<compile_context>
chip_gen: v7x
topology: tpu7x:2x2x1
jax: 0.10.0
libtpu: 0.0.40
codegen_flags: <defaults>
</compile_context>

<pallas_src>
import jax
import jax.numpy as jnp
from jax.experimental import pallas as pl
from jax.experimental.pallas import tpu as pltpu


# -----------------------------------------------------------------------------
# Fused LeNet kernel (one grid step = one image)
# -----------------------------------------------------------------------------
def _lenet_kernel(x_ref, t1_ref, b1_ref, sc1_ref, sr1_ref,
                  t2_ref, b2_ref, sc2_ref, sr2_ref,
                  w1_ref, fb1_ref, w2_ref, fb2_ref, w3_ref, fb3_ref,
                  o_ref, p1_s, p2_s):
    f32 = jnp.float32

    # ---- conv1 5x5 (padding pre-applied to the 32x32 input) + bias + ReLU --
    # acc1[i, j*6+o] = sum_{ki,kj} x[i+ki, j+kj] * w1[o, 0, ki, kj]
    acc1 = jnp.dot(x_ref[0, 0:28, :], t1_ref[0], preferred_element_type=f32)
    for ki in range(1, 5):
        acc1 = acc1 + jnp.dot(x_ref[0, ki:ki + 28, :], t1_ref[ki],
                              preferred_element_type=f32)
    a1 = jnp.maximum(acc1 + b1_ref[...], 0.0)                       # (28, 168)

    # ---- maxpool 2x2 stride 2 (in VMEM, parity selection on the MXU) -------
    lane_max = jnp.maximum(
        jnp.dot(a1, sc1_ref[0], preferred_element_type=f32),        # even cols
        jnp.dot(a1, sc1_ref[1], preferred_element_type=f32))        # odd cols
    p1_s[...] = jnp.maximum(
        jnp.dot(sr1_ref[0], lane_max, preferred_element_type=f32),  # even rows
        jnp.dot(sr1_ref[1], lane_max, preferred_element_type=f32))  # (14, 84)

    # ---- conv2 5x5 valid + bias + ReLU -------------------------------------
    acc2 = jnp.dot(p1_s[0:10, :], t2_ref[0], preferred_element_type=f32)
    for ki in range(1, 5):
        acc2 = acc2 + jnp.dot(p1_s[ki:ki + 10, :], t2_ref[ki],
                              preferred_element_type=f32)
    a2 = jnp.maximum(acc2 + b2_ref[...], 0.0)                       # (10, 160)

    # ---- maxpool 2x2 stride 2 ----------------------------------------------
    lane_max2 = jnp.maximum(
        jnp.dot(a2, sc2_ref[0], preferred_element_type=f32),
        jnp.dot(a2, sc2_ref[1], preferred_element_type=f32))
    p2_s[...] = jnp.maximum(
        jnp.dot(sr2_ref[0], lane_max2, preferred_element_type=f32),
        jnp.dot(sr2_ref[1], lane_max2, preferred_element_type=f32))  # (5, 80)

    # ---- fused FC stack (PyTorch flatten order folded into w1 at prep) -----
    h = fb1_ref[...]                                                # (1, 120)
    for p in range(5):
        h = h + jnp.dot(p2_s[p:p + 1, :], w1_ref[p],
                        preferred_element_type=f32)
    h = jnp.maximum(h, 0.0)
    h = jnp.maximum(jnp.dot(h, w2_ref[...], preferred_element_type=f32)
                    + fb2_ref[...], 0.0)                            # (1, 84)
    out = jnp.dot(h, w3_ref[...], preferred_element_type=f32) + fb3_ref[...]
    o_ref[0] = out.astype(o_ref.dtype)                              # (1, classes)


# -----------------------------------------------------------------------------
# One-time parameter preparation (all layout work lives here, not per call)
# -----------------------------------------------------------------------------
def _build_toeplitz(w, in_w, out_w):
    """PyTorch conv weight (O, Ci, K, K) -> T of shape (K, in_w*Ci, out_w*O)
    with T[ki, c*Ci+ch, j*O+o] = w[o, ch, ki, c-j] if 0 <= c-j < K else 0, so
    conv = sum_ki  x_rows[ki:ki+out_h, :] @ T[ki]."""
    O, Ci, K, _ = w.shape
    c = jnp.arange(in_w)[:, None]
    j = jnp.arange(out_w)[None, :]
    kj = c - j
    valid = ((kj >= 0) & (kj < K)).astype(w.dtype)
    kj_c = jnp.clip(kj, 0, K - 1)
    wt = jnp.transpose(w, (2, 1, 3, 0))                     # (ki, ch, kj, o)
    t = wt[:, :, kj_c, :] * valid[None, None, :, :, None]   # (ki, ch, c, j, o)
    t = jnp.transpose(t, (0, 2, 1, 3, 4))                   # (ki, c, ch, j, o)
    return t.reshape(K, in_w * Ci, out_w * O)


def _pool_selectors(out_hw, n_chan, dtype=jnp.float32):
    """Selection matrices so 2x2/stride-2 max pool of an (2hw, 2hw*C) slab
    (lane = col*C + chan) becomes max(A@SCe, A@SCo) then max(SRe@., SRo@.)."""
    q = jnp.arange(out_hw)
    j = jnp.arange(2 * out_hw)
    eye = jnp.eye(n_chan, dtype=dtype)
    col_even = (j[:, None] == 2 * q[None, :]).astype(dtype)
    col_odd = (j[:, None] == 2 * q[None, :] + 1).astype(dtype)
    sc = jnp.stack([jnp.kron(col_even, eye), jnp.kron(col_odd, eye)])
    row_even = (j[None, :] == 2 * q[:, None]).astype(dtype)
    row_odd = (j[None, :] == 2 * q[:, None] + 1).astype(dtype)
    sr = jnp.stack([row_even, row_odd])
    return sc, sr


def prepare_params(params):
    f32 = jnp.float32
    sc1, sr1 = _pool_selectors(14, 6)
    sc2, sr2 = _pool_selectors(5, 16)
    fw1 = params["fc1_w"].astype(f32)
    fw1 = fw1.reshape(fw1.shape[0], 16, 5, 5)                 # (n, o, p, q)
    w1p = jnp.transpose(fw1, (2, 3, 1, 0)).reshape(5, 80, fw1.shape[0])
    return {
        "t1": _build_toeplitz(params["conv1_w"].astype(f32), 32, 28),  # (5,32,168)
        "b1": jnp.tile(params["conv1_b"].astype(f32), 28)[None, :],
        "sc1": sc1, "sr1": sr1,
        "t2": _build_toeplitz(params["conv2_w"].astype(f32), 14, 10),  # (5,84,160)
        "b2": jnp.tile(params["conv2_b"].astype(f32), 10)[None, :],
        "sc2": sc2, "sr2": sr2,
        "w1": w1p,                                            # (5, 80, 120)
        "fb1": params["fc1_b"].astype(f32)[None, :],
        "w2": params["fc2_w"].astype(f32).T,                  # (120, 84)
        "fb2": params["fc2_b"].astype(f32)[None, :],
        "w3": params["fc3_w"].astype(f32).T,                  # (84, classes)
        "fb3": params["fc3_b"].astype(f32)[None, :],
    }


# -----------------------------------------------------------------------------
# Forward
# -----------------------------------------------------------------------------
def _resident(arr):
    zeros = (0,) * arr.ndim
    return pl.BlockSpec(arr.shape, lambda b, _z=zeros: _z)


@jax.jit
def lenet_forward(x_nchw, prepped):
    B = x_nchw.shape[0]
    classes = prepped["w3"].shape[1]
    # NCHW (C=1) -> zero-padded (B, 32, 32); the only per-call XLA glue.
    x = jnp.pad(x_nchw.astype(jnp.float32),
                ((0, 0), (0, 0), (2, 2), (2, 2))).reshape(B, 32, 32)

    names = ("t1", "b1", "sc1", "sr1", "t2", "b2", "sc2", "sr2",
             "w1", "fb1", "w2", "fb2", "w3", "fb3")
    weights = [prepped[k] for k in names]

    out = pl.pallas_call(
        _lenet_kernel,
        out_shape=jax.ShapeDtypeStruct((B, 1, classes), jnp.float32),
        grid=(B,),
        in_specs=[pl.BlockSpec((1, 32, 32), lambda b: (b, 0, 0))]
                 + [_resident(w) for w in weights],
        out_specs=pl.BlockSpec((1, 1, classes), lambda b: (b, 0, 0)),
        scratch_shapes=[pltpu.VMEM((14, 84), jnp.float32),   # pooled conv1
                        pltpu.VMEM((5, 80), jnp.float32)],   # pooled conv2
        compiler_params=pltpu.CompilerParams(
            dimension_semantics=("parallel",),
            vmem_limit_bytes=32 * 1024 * 1024),
    )(x, *weights)
    return out.reshape(B, classes)


# -----------------------------------------------------------------------------
# Params + pure-XLA reference (for a sanity check only)
# -----------------------------------------------------------------------------
def init_lenet_params(key, classes=10):
    ks = jax.random.split(key, 10)
    s = 0.05
    return {
        "conv1_w": jax.random.normal(ks[0], (6, 1, 5, 5), jnp.float32) * s,
        "conv1_b": jax.random.normal(ks[1], (6,), jnp.float32) * s,
        "conv2_w": jax.random.normal(ks[2], (16, 6, 5, 5), jnp.float32) * s,
        "conv2_b": jax.random.normal(ks[3], (16,), jnp.float32) * s,
        "fc1_w": jax.random.normal(ks[4], (120, 400), jnp.float32) * s,
        "fc1_b": jax.random.normal(ks[5], (120,), jnp.float32) * s,
        "fc2_w": jax.random.normal(ks[6], (84, 120), jnp.float32) * s,
        "fc2_b": jax.random.normal(ks[7], (84,), jnp.float32) * s,
        "fc3_w": jax.random.normal(ks[8], (classes, 84), jnp.float32) * s,
        "fc3_b": jax.random.normal(ks[9], (classes,), jnp.float32) * s,
    }


def lenet_reference(x_nchw, params):
    x = x_nchw.astype(jnp.float32)
    dn = ("NCHW", "OIHW", "NCHW")
    y = jax.lax.conv_general_dilated(x, params["conv1_w"], (1, 1),
                                     ((2, 2), (2, 2)), dimension_numbers=dn)
    y = jax.nn.relu(y + params["conv1_b"][None, :, None, None])
    y = jax.lax.reduce_window(y, -jnp.inf, jax.lax.max,
                              (1, 1, 2, 2), (1, 1, 2, 2), "VALID")
    y = jax.lax.conv_general_dilated(y, params["conv2_w"], (1, 1),
                                     "VALID", dimension_numbers=dn)
    y = jax.nn.relu(y + params["conv2_b"][None, :, None, None])
    y = jax.lax.reduce_window(y, -jnp.inf, jax.lax.max,
                              (1, 1, 2, 2), (1, 1, 2, 2), "VALID")
    y = y.reshape(y.shape[0], -1)                       # PyTorch (C,H,W) order
    y = jax.nn.relu(y @ params["fc1_w"].T + params["fc1_b"])
    y = jax.nn.relu(y @ params["fc2_w"].T + params["fc2_b"])
    return y @ params["fc3_w"].T + params["fc3_b"]


if __name__ == "__main__":
    key = jax.random.PRNGKey(0)
    k_param, k_x = jax.random.split(key)

    params = init_lenet_params(k_param, classes=10)
    prepped = prepare_params(params)

    # Flatten->Linear(400) implies 28x28 single-channel input.
    x = jax.random.normal(k_x, (2, 1, 28, 28), jnp.float32)

    out = jax.block_until_ready(lenet_forward(x, prepped))
    assert out.shape == (2, 10)

    ref = jax.block_until_ready(lenet_reference(x, params))
    err = float(jnp.max(jnp.abs(out - ref)))
    assert err < 2e-2, f"mismatch vs reference: {err}"

    print("KERNEL_OK")
</pallas_src>

<mosaic_0001>
module attributes {stable_mosaic.version = 11 : i64} {
  func.func @_lenet_kernel(%arg0: i32, %arg1: memref<1x32x32xf32, #tpu.memory_space<vmem>>, %arg2: memref<5x32x168xf32, #tpu.memory_space<vmem>>, %arg3: memref<1x168xf32, #tpu.memory_space<vmem>>, %arg4: memref<2x168x84xf32, #tpu.memory_space<vmem>>, %arg5: memref<2x14x28xf32, #tpu.memory_space<vmem>>, %arg6: memref<5x84x160xf32, #tpu.memory_space<vmem>>, %arg7: memref<1x160xf32, #tpu.memory_space<vmem>>, %arg8: memref<2x160x80xf32, #tpu.memory_space<vmem>>, %arg9: memref<2x5x10xf32, #tpu.memory_space<vmem>>, %arg10: memref<5x80x120xf32, #tpu.memory_space<vmem>>, %arg11: memref<1x120xf32, #tpu.memory_space<vmem>>, %arg12: memref<120x84xf32, #tpu.memory_space<vmem>>, %arg13: memref<1x84xf32, #tpu.memory_space<vmem>>, %arg14: memref<84x10xf32, #tpu.memory_space<vmem>>, %arg15: memref<1x10xf32, #tpu.memory_space<vmem>>, %arg16: memref<1x1x10xf32, #tpu.memory_space<vmem>>, %arg17: memref<14x84xf32, #tpu.memory_space<vmem>>, %arg18: memref<5x80xf32, #tpu.memory_space<vmem>>) attributes {dimension_semantics = [#tpu.dimension_semantics<parallel>], iteration_bounds = array<i64: 2>, scalar_prefetch = 0 : i64, scratch_operands = 2 : i64, tpu.core_type = #tpu.core_type<tc>, window_params = [{transform_indices = @transform_0, window_bounds = array<i64: 1, 32, 32>}, {pipeline_mode = #tpu.pipeline_mode<synchronous>, transform_indices = @transform_1, window_bounds = array<i64: 5, 32, 168>}, {pipeline_mode = #tpu.pipeline_mode<synchronous>, transform_indices = @transform_2, window_bounds = array<i64: 1, 168>}, {pipeline_mode = #tpu.pipeline_mode<synchronous>, transform_indices = @transform_3, window_bounds = array<i64: 2, 168, 84>}, {pipeline_mode = #tpu.pipeline_mode<synchronous>, transform_indices = @transform_4, window_bounds = array<i64: 2, 14, 28>}, {pipeline_mode = #tpu.pipeline_mode<synchronous>, transform_indices = @transform_5, window_bounds = array<i64: 5, 84, 160>}, {pipeline_mode = #tpu.pipeline_mode<synchronous>, transform_indices = @transform_6, window_bounds = array<i64: 1, 160>}, {pipeline_mode = #tpu.pipeline_mode<synchronous>, transform_indices = @transform_7, window_bounds = array<i64: 2, 160, 80>}, {pipeline_mode = #tpu.pipeline_mode<synchronous>, transform_indices = @transform_8, window_bounds = array<i64: 2, 5, 10>}, {pipeline_mode = #tpu.pipeline_mode<synchronous>, transform_indices = @transform_9, window_bounds = array<i64: 5, 80, 120>}, {pipeline_mode = #tpu.pipeline_mode<synchronous>, transform_indices = @transform_10, window_bounds = array<i64: 1, 120>}, {pipeline_mode = #tpu.pipeline_mode<synchronous>, transform_indices = @transform_11, window_bounds = array<i64: 120, 84>}, {pipeline_mode = #tpu.pipeline_mode<synchronous>, transform_indices = @transform_12, window_bounds = array<i64: 1, 84>}, {pipeline_mode = #tpu.pipeline_mode<synchronous>, transform_indices = @transform_13, window_bounds = array<i64: 84, 10>}, {pipeline_mode = #tpu.pipeline_mode<synchronous>, transform_indices = @transform_14, window_bounds = array<i64: 1, 10>}, {transform_indices = @transform_15, window_bounds = array<i64: 1, 1, 10>}]} {
    %c0 = arith.constant 0 : index
    %c0_0 = arith.constant 0 : index
    %c0_1 = arith.constant 0 : index
    %0 = vector.load %arg1[%c0, %c0_0, %c0_1] : memref<1x32x32xf32, #tpu.memory_space<vmem>>, vector<1x28x32xf32>
    %1 = vector.shape_cast %0 : vector<1x28x32xf32> to vector<28x32xf32>
    %c0_2 = arith.constant 0 : index
    %c0_3 = arith.constant 0 : index
    %c0_4 = arith.constant 0 : index
    %2 = vector.load %arg2[%c0_2, %c0_3, %c0_4] : memref<5x32x168xf32, #tpu.memory_space<vmem>>, vector<1x32x168xf32>
    %3 = vector.shape_cast %2 : vector<1x32x168xf32> to vector<32x168xf32>
    %cst = arith.constant dense<0.000000e+00> : vector<28x168xf32>
    %4 = tpu.matmul %1, %3, %cst {dimension_numbers = #tpu.dot_dimension_numbers<[1], [0], [0], [1], [0, 0, 1, 1], [], []>} : vector<28x32xf32>, vector<32x168xf32>, vector<28x168xf32> -> vector<28x168xf32>
    %c0_5 = arith.constant 0 : index
    %c1 = arith.constant 1 : index
    %c0_6 = arith.constant 0 : index
    %5 = vector.load %arg1[%c0_5, %c1, %c0_6] : memref<1x32x32xf32, #tpu.memory_space<vmem>>, vector<1x28x32xf32>
    %6 = vector.shape_cast %5 : vector<1x28x32xf32> to vector<28x32xf32>
    %c1_7 = arith.constant 1 : index
    %c0_8 = arith.constant 0 : index
    %c0_9 = arith.constant 0 : index
    %7 = vector.load %arg2[%c1_7, %c0_8, %c0_9] : memref<5x32x168xf32, #tpu.memory_space<vmem>>, vector<1x32x168xf32>
    %8 = vector.shape_cast %7 : vector<1x32x168xf32> to vector<32x168xf32>
    %cst_10 = arith.constant dense<0.000000e+00> : vector<28x168xf32>
    %9 = tpu.matmul %6, %8, %cst_10 {dimension_numbers = #tpu.dot_dimension_numbers<[1], [0], [0], [1], [0, 0, 1, 1], [], []>} : vector<28x32xf32>, vector<32x168xf32>, vector<28x168xf32> -> vector<28x168xf32>
    %10 = arith.addf %4, %9 : vector<28x168xf32>
    %c0_11 = arith.constant 0 : index
    %c2 = arith.constant 2 : index
    %c0_12 = arith.constant 0 : index
    %11 = vector.load %arg1[%c0_11, %c2, %c0_12] : memref<1x32x32xf32, #tpu.memory_space<vmem>>, vector<1x28x32xf32>
    %12 = vector.shape_cast %11 : vector<1x28x32xf32> to vector<28x32xf32>
    %c2_13 = arith.constant 2 : index
    %c0_14 = arith.constant 0 : index
    %c0_15 = arith.constant 0 : index
    %13 = vector.load %arg2[%c2_13, %c0_14, %c0_15] : memref<5x32x168xf32, #tpu.memory_space<vmem>>, vector<1x32x168xf32>
    %14 = vector.shape_cast %13 : vector<1x32x168xf32> to vector<32x168xf32>
    %cst_16 = arith.constant dense<0.000000e+00> : vector<28x168xf32>
    %15 = tpu.matmul %12, %14, %cst_16 {dimension_numbers = #tpu.dot_dimension_numbers<[1], [0], [0], [1], [0, 0, 1, 1], [], []>} : vector<28x32xf32>, vector<32x168xf32>, vector<28x168xf32> -> vector<28x168xf32>
    %16 = arith.addf %10, %15 : vector<28x168xf32>
    %c0_17 = arith.constant 0 : index
    %c3 = arith.constant 3 : index
    %c0_18 = arith.constant 0 : index
    %17 = vector.load %arg1[%c0_17, %c3, %c0_18] : memref<1x32x32xf32, #tpu.memory_space<vmem>>, vector<1x28x32xf32>
    %18 = vector.shape_cast %17 : vector<1x28x32xf32> to vector<28x32xf32>
    %c3_19 = arith.constant 3 : index
    %c0_20 = arith.constant 0 : index
    %c0_21 = arith.constant 0 : index
    %19 = vector.load %arg2[%c3_19, %c0_20, %c0_21] : memref<5x32x168xf32, #tpu.memory_space<vmem>>, vector<1x32x168xf32>
    %20 = vector.shape_cast %19 : vector<1x32x168xf32> to vector<32x168xf32>
    %cst_22 = arith.constant dense<0.000000e+00> : vector<28x168xf32>
    %21 = tpu.matmul %18, %20, %cst_22 {dimension_numbers = #tpu.dot_dimension_numbers<[1], [0], [0], [1], [0, 0, 1, 1], [], []>} : vector<28x32xf32>, vector<32x168xf32>, vector<28x168xf32> -> vector<28x168xf32>
    %22 = arith.addf %16, %21 : vector<28x168xf32>
    %c0_23 = arith.constant 0 : index
    %c4 = arith.constant 4 : index
    %c0_24 = arith.constant 0 : index
    %23 = vector.load %arg1[%c0_23, %c4, %c0_24] : memref<1x32x32xf32, #tpu.memory_space<vmem>>, vector<1x28x32xf32>
    %24 = vector.shape_cast %23 : vector<1x28x32xf32> to vector<28x32xf32>
    %c4_25 = arith.constant 4 : index
    %c0_26 = arith.constant 0 : index
    %c0_27 = arith.constant 0 : index
    %25 = vector.load %arg2[%c4_25, %c0_26, %c0_27] : memref<5x32x168xf32, #tpu.memory_space<vmem>>, vector<1x32x168xf32>
    %26 = vector.shape_cast %25 : vector<1x32x168xf32> to vector<32x168xf32>
    %cst_28 = arith.constant dense<0.000000e+00> : vector<28x168xf32>
    %27 = tpu.matmul %24, %26, %cst_28 {dimension_numbers = #tpu.dot_dimension_numbers<[1], [0], [0], [1], [0, 0, 1, 1], [], []>} : vector<28x32xf32>, vector<32x168xf32>, vector<28x168xf32> -> vector<28x168xf32>
    %28 = arith.addf %22, %27 : vector<28x168xf32>
    %c0_29 = arith.constant 0 : index
    %c0_30 = arith.constant 0 : index
    %29 = vector.load %arg3[%c0_29, %c0_30] : memref<1x168xf32, #tpu.memory_space<vmem>>, vector<1x168xf32>
    %30 = vector.broadcast %29 : vector<1x168xf32> to vector<28x168xf32>
    %31 = arith.addf %28, %30 : vector<28x168xf32>
    %cst_31 = arith.constant 0.000000e+00 : f32
    %32 = vector.broadcast %cst_31 : f32 to vector<28x168xf32>
    %33 = arith.maximumf %31, %32 : vector<28x168xf32>
    %c0_32 = arith.constant 0 : index
    %c0_33 = arith.constant 0 : index
    %c0_34 = arith.constant 0 : index
    %34 = vector.load %arg4[%c0_32, %c0_33, %c0_34] : memref<2x168x84xf32, #tpu.memory_space<vmem>>, vector<1x168x84xf32>
    %35 = vector.shape_cast %34 : vector<1x168x84xf32> to vector<168x84xf32>
    %cst_35 = arith.constant dense<0.000000e+00> : vector<28x84xf32>
    %36 = tpu.matmul %33, %35, %cst_35 {dimension_numbers = #tpu.dot_dimension_numbers<[1], [0], [0], [1], [0, 0, 1, 1], [], []>} : vector<28x168xf32>, vector<168x84xf32>, vector<28x84xf32> -> vector<28x84xf32>
    %c1_36 = arith.constant 1 : index
    %c0_37 = arith.constant 0 : index
    %c0_38 = arith.constant 0 : index
    %37 = vector.load %arg4[%c1_36, %c0_37, %c0_38] : memref<2x168x84xf32, #tpu.memory_space<vmem>>, vector<1x168x84xf32>
    %38 = vector.shape_cast %37 : vector<1x168x84xf32> to vector<168x84xf32>
    %cst_39 = arith.constant dense<0.000000e+00> : vector<28x84xf32>
    %39 = tpu.matmul %33, %38, %cst_39 {dimension_numbers = #tpu.dot_dimension_numbers<[1], [0], [0], [1], [0, 0, 1, 1], [], []>} : vector<28x168xf32>, vector<168x84xf32>, vector<28x84xf32> -> vector<28x84xf32>
    %40 = arith.maximumf %36, %39 : vector<28x84xf32>
    %c0_40 = arith.constant 0 : index
    %c0_41 = arith.constant 0 : index
    %c0_42 = arith.constant 0 : index
    %41 = vector.load %arg5[%c0_40, %c0_41, %c0_42] : memref<2x14x28xf32, #tpu.memory_space<vmem>>, vector<1x14x28xf32>
    %42 = vector.shape_cast %41 : vector<1x14x28xf32> to vector<14x28xf32>
    %cst_43 = arith.constant dense<0.000000e+00> : vector<14x84xf32>
    %43 = tpu.matmul %42, %40, %cst_43 {dimension_numbers = #tpu.dot_dimension_numbers<[1], [0], [0], [1], [0, 0, 1, 1], [], []>} : vector<14x28xf32>, vector<28x84xf32>, vector<14x84xf32> -> vector<14x84xf32>
    %c1_44 = arith.constant 1 : index
    %c0_45 = arith.constant 0 : index
    %c0_46 = arith.constant 0 : index
    %44 = vector.load %arg5[%c1_44, %c0_45, %c0_46] : memref<2x14x28xf32, #tpu.memory_space<vmem>>, vector<1x14x28xf32>
    %45 = vector.shape_cast %44 : vector<1x14x28xf32> to vector<14x28xf32>
    %cst_47 = arith.constant dense<0.000000e+00> : vector<14x84xf32>
    %46 = tpu.matmul %45, %40, %cst_47 {dimension_numbers = #tpu.dot_dimension_numbers<[1], [0], [0], [1], [0, 0, 1, 1], [], []>} : vector<14x28xf32>, vector<28x84xf32>, vector<14x84xf32> -> vector<14x84xf32>
    %47 = arith.maximumf %43, %46 : vector<14x84xf32>
    %c0_48 = arith.constant 0 : index
    %c0_49 = arith.constant 0 : index
    %48 = vector.load %arg17[%c0_48, %c0_49] : memref<14x84xf32, #tpu.memory_space<vmem>>, vector<14x84xf32>
    tpu.vector_store %arg17[%c0_48, %c0_49], %47 {strides = array<i32>} : memref<14x84xf32, #tpu.memory_space<vmem>>, vector<14x84xf32>,
    %c0_50 = arith.constant 0 : index
    %c0_51 = arith.constant 0 : index
    %49 = vector.load %arg17[%c0_50, %c0_51] : memref<14x84xf32, #tpu.memory_space<vmem>>, vector<10x84xf32>
    %c0_52 = arith.constant 0 : index
    %c0_53 = arith.constant 0 : index
    %c0_54 = arith.constant 0 : index
    %50 = vector.load %arg6[%c0_52, %c0_53, %c0_54] : memref<5x84x160xf32, #tpu.memory_space<vmem>>, vector<1x84x160xf32>
    %51 = vector.shape_cast %50 : vector<1x84x160xf32> to vector<84x160xf32>
    %cst_55 = arith.constant dense<0.000000e+00> : vector<10x160xf32>
    %52 = tpu.matmul %49, %51, %cst_55 {dimension_numbers = #tpu.dot_dimension_numbers<[1], [0], [0], [1], [0, 0, 1, 1], [], []>} : vector<10x84xf32>, vector<84x160xf32>, vector<10x160xf32> -> vector<10x160xf32>
    %c1_56 = arith.constant 1 : index
    %c0_57 = arith.constant 0 : index
    %53 = vector.load %arg17[%c1_56, %c0_57] : memref<14x84xf32, #tpu.memory_space<vmem>>, vector<10x84xf32>
    %c1_58 = arith.constant 1 : index
    %c0_59 = arith.constant 0 : index
    %c0_60 = arith.constant 0 : index
    %54 = vector.load %arg6[%c1_58, %c0_59, %c0_60] : memref<5x84x160xf32, #tpu.memory_space<vmem>>, vector<1x84x160xf32>
    %55 = vector.shape_cast %54 : vector<1x84x160xf32> to vector<84x160xf32>
    %cst_61 = arith.constant dense<0.000000e+00> : vector<10x160xf32>
    %56 = tpu.matmul %53, %55, %cst_61 {dimension_numbers = #tpu.dot_dimension_numbers<[1], [0], [0], [1], [0, 0, 1, 1], [], []>} : vector<10x84xf32>, vector<84x160xf32>, vector<10x160xf32> -> vector<10x160xf32>
    %57 = arith.addf %52, %56 : vector<10x160xf32>
    %c2_62 = arith.constant 2 : index
    %c0_63 = arith.constant 0 : index
    %58 = vector.load %arg17[%c2_62, %c0_63] : memref<14x84xf32, #tpu.memory_space<vmem>>, vector<10x84xf32>
    %c2_64 = arith.constant 2 : index
    %c0_65 = arith.constant 0 : index
    %c0_66 = arith.constant 0 : index
    %59 = vector.load %arg6[%c2_64, %c0_65, %c0_66] : memref<5x84x160xf32, #tpu.memory_space<vmem>>, vector<1x84x160xf32>
    %60 = vector.shape_cast %59 : vector<1x84x160xf32> to vector<84x160xf32>
    %cst_67 = arith.constant dense<0.000000e+00> : vector<10x160xf32>
    %61 = tpu.matmul %58, %60, %cst_67 {dimension_numbers = #tpu.dot_dimension_numbers<[1], [0], [0], [1], [0, 0, 1, 1], [], []>} : vector<10x84xf32>, vector<84x160xf32>, vector<10x160xf32> -> vector<10x160xf32>
    %62 = arith.addf %57, %61 : vector<10x160xf32>
    %c3_68 = arith.constant 3 : index
    %c0_69 = arith.constant 0 : index
    %63 = vector.load %arg17[%c3_68, %c0_69] : memref<14x84xf32, #tpu.memory_space<vmem>>, vector<10x84xf32>
    %c3_70 = arith.constant 3 : index
    %c0_71 = arith.constant 0 : index
    %c0_72 = arith.constant 0 : index
    %64 = vector.load %arg6[%c3_70, %c0_71, %c0_72] : memref<5x84x160xf32, #tpu.memory_space<vmem>>, vector<1x84x160xf32>
    %65 = vector.shape_cast %64 : vector<1x84x160xf32> to vector<84x160xf32>
    %cst_73 = arith.constant dense<0.000000e+00> : vector<10x160xf32>
    %66 = tpu.matmul %63, %65, %cst_73 {dimension_numbers = #tpu.dot_dimension_numbers<[1], [0], [0], [1], [0, 0, 1, 1], [], []>} : vector<10x84xf32>, vector<84x160xf32>, vector<10x160xf32> -> vector<10x160xf32>
    %67 = arith.addf %62, %66 : vector<10x160xf32>
    %c4_74 = arith.constant 4 : index
    %c0_75 = arith.constant 0 : index
    %68 = vector.load %arg17[%c4_74, %c0_75] : memref<14x84xf32, #tpu.memory_space<vmem>>, vector<10x84xf32>
    %c4_76 = arith.constant 4 : index
    %c0_77 = arith.constant 0 : index
    %c0_78 = arith.constant 0 : index
    %69 = vector.load %arg6[%c4_76, %c0_77, %c0_78] : memref<5x84x160xf32, #tpu.memory_space<vmem>>, vector<1x84x160xf32>
    %70 = vector.shape_cast %69 : vector<1x84x160xf32> to vector<84x160xf32>
    %cst_79 = arith.constant dense<0.000000e+00> : vector<10x160xf32>
    %71 = tpu.matmul %68, %70, %cst_79 {dimension_numbers = #tpu.dot_dimension_numbers<[1], [0], [0], [1], [0, 0, 1, 1], [], []>} : vector<10x84xf32>, vector<84x160xf32>, vector<10x160xf32> -> vector<10x160xf32>
    %72 = arith.addf %67, %71 : vector<10x160xf32>
    %c0_80 = arith.constant 0 : index
    %c0_81 = arith.constant 0 : index
    %73 = vector.load %arg7[%c0_80, %c0_81] : memref<1x160xf32, #tpu.memory_space<vmem>>, vector<1x160xf32>
    %74 = vector.broadcast %73 : vector<1x160xf32> to vector<10x160xf32>
    %75 = arith.addf %72, %74 : vector<10x160xf32>
    %cst_82 = arith.constant 0.000000e+00 : f32
    %76 = vector.broadcast %cst_82 : f32 to vector<10x160xf32>
    %77 = arith.maximumf %75, %76 : vector<10x160xf32>
    %c0_83 = arith.constant 0 : index
    %c0_84 = arith.constant 0 : index
    %c0_85 = arith.constant 0 : index
    %78 = vector.load %arg8[%c0_83, %c0_84, %c0_85] : memref<2x160x80xf32, #tpu.memory_space<vmem>>, vector<1x160x80xf32>
    %79 = vector.shape_cast %78 : vector<1x160x80xf32> to vector<160x80xf32>
    %cst_86 = arith.constant dense<0.000000e+00> : vector<10x80xf32>
    %80 = tpu.matmul %77, %79, %cst_86 {dimension_numbers = #tpu.dot_dimension_numbers<[1], [0], [0], [1], [0, 0, 1, 1], [], []>} : vector<10x160xf32>, vector<160x80xf32>, vector<10x80xf32> -> vector<10x80xf32>
    %c1_87 = arith.constant 1 : index
    %c0_88 = arith.constant 0 : index
    %c0_89 = arith.constant 0 : index
    %81 = vector.load %arg8[%c1_87, %c0_88, %c0_89] : memref<2x160x80xf32, #tpu.memory_space<vmem>>, vector<1x160x80xf32>
    %82 = vector.shape_cast %81 : vector<1x160x80xf32> to vector<160x80xf32>
    %cst_90 = arith.constant dense<0.000000e+00> : vector<10x80xf32>
    %83 = tpu.matmul %77, %82, %cst_90 {dimension_numbers = #tpu.dot_dimension_numbers<[1], [0], [0], [1], [0, 0, 1, 1], [], []>} : vector<10x160xf32>, vector<160x80xf32>, vector<10x80xf32> -> vector<10x80xf32>
    %84 = arith.maximumf %80, %83 : vector<10x80xf32>
    %c0_91 = arith.constant 0 : index
    %c0_92 = arith.constant 0 : index
    %c0_93 = arith.constant 0 : index
    %85 = vector.load %arg9[%c0_91, %c0_92, %c0_93] : memref<2x5x10xf32, #tpu.memory_space<vmem>>, vector<1x5x10xf32>
    %86 = vector.shape_cast %85 : vector<1x5x10xf32> to vector<5x10xf32>
    %cst_94 = arith.constant dense<0.000000e+00> : vector<5x80xf32>
    %87 = tpu.matmul %86, %84, %cst_94 {dimension_numbers = #tpu.dot_dimension_numbers<[1], [0], [0], [1], [0, 0, 1, 1], [], []>} : vector<5x10xf32>, vector<10x80xf32>, vector<5x80xf32> -> vector<5x80xf32>
    %c1_95 = arith.constant 1 : index
    %c0_96 = arith.constant 0 : index
    %c0_97 = arith.constant 0 : index
    %88 = vector.load %arg9[%c1_95, %c0_96, %c0_97] : memref<2x5x10xf32, #tpu.memory_space<vmem>>, vector<1x5x10xf32>
    %89 = vector.shape_cast %88 : vector<1x5x10xf32> to vector<5x10xf32>
    %cst_98 = arith.constant dense<0.000000e+00> : vector<5x80xf32>
    %90 = tpu.matmul %89, %84, %cst_98 {dimension_numbers = #tpu.dot_dimension_numbers<[1], [0], [0], [1], [0, 0, 1, 1], [], []>} : vector<5x10xf32>, vector<10x80xf32>, vector<5x80xf32> -> vector<5x80xf32>
    %91 = arith.maximumf %87, %90 : vector<5x80xf32>
    %c0_99 = arith.constant 0 : index
    %c0_100 = arith.constant 0 : index
    %92 = vector.load %arg18[%c0_99, %c0_100] : memref<5x80xf32, #tpu.memory_space<vmem>>, vector<5x80xf32>
    tpu.vector_store %arg18[%c0_99, %c0_100], %91 {strides = array<i32>} : memref<5x80xf32, #tpu.memory_space<vmem>>, vector<5x80xf32>,
    %c0_101 = arith.constant 0 : index
    %c0_102 = arith.constant 0 : index
    %93 = vector.load %arg11[%c0_101, %c0_102] : memref<1x120xf32, #tpu.memory_space<vmem>>, vector<1x120xf32>
    %c0_103 = arith.constant 0 : index
    %c0_104 = arith.constant 0 : index
    %94 = vector.load %arg18[%c0_103, %c0_104] : memref<5x80xf32, #tpu.memory_space<vmem>>, vector<1x80xf32>
    %c0_105 = arith.constant 0 : index
    %c0_106 = arith.constant 0 : index
    %c0_107 = arith.constant 0 : index
    %95 = vector.load %arg10[%c0_105, %c0_106, %c0_107] : memref<5x80x120xf32, #tpu.memory_space<vmem>>, vector<1x80x120xf32>
    %96 = vector.shape_cast %95 : vector<1x80x120xf32> to vector<80x120xf32>
    %cst_108 = arith.constant dense<0.000000e+00> : vector<1x120xf32>
    %97 = tpu.matmul %94, %96, %cst_108 {dimension_numbers = #tpu.dot_dimension_numbers<[1], [0], [0], [1], [0, 0, 1, 1], [], []>} : vector<1x80xf32>, vector<80x120xf32>, vector<1x120xf32> -> vector<1x120xf32>
    %98 = arith.addf %93, %97 : vector<1x120xf32>
    %c1_109 = arith.constant 1 : index
    %c0_110 = arith.constant 0 : index
    %99 = vector.load %arg18[%c1_109, %c0_110] : memref<5x80xf32, #tpu.memory_space<vmem>>, vector<1x80xf32>
    %c1_111 = arith.constant 1 : index
    %c0_112 = arith.constant 0 : index
    %c0_113 = arith.constant 0 : index
    %100 = vector.load %arg10[%c1_111, %c0_112, %c0_113] : memref<5x80x120xf32, #tpu.memory_space<vmem>>, vector<1x80x120xf32>
    %101 = vector.shape_cast %100 : vector<1x80x120xf32> to vector<80x120xf32>
    %cst_114 = arith.constant dense<0.000000e+00> : vector<1x120xf32>
    %102 = tpu.matmul %99, %101, %cst_114 {dimension_numbers = #tpu.dot_dimension_numbers<[1], [0], [0], [1], [0, 0, 1, 1], [], []>} : vector<1x80xf32>, vector<80x120xf32>, vector<1x120xf32> -> vector<1x120xf32>
    %103 = arith.addf %98, %102 : vector<1x120xf32>
    %c2_115 = arith.constant 2 : index
    %c0_116 = arith.constant 0 : index
    %104 = vector.load %arg18[%c2_115, %c0_116] : memref<5x80xf32, #tpu.memory_space<vmem>>, vector<1x80xf32>
    %c2_117 = arith.constant 2 : index
    %c0_118 = arith.constant 0 : index
    %c0_119 = arith.constant 0 : index
    %105 = vector.load %arg10[%c2_117, %c0_118, %c0_119] : memref<5x80x120xf32, #tpu.memory_space<vmem>>, vector<1x80x120xf32>
    %106 = vector.shape_cast %105 : vector<1x80x120xf32> to vector<80x120xf32>
    %cst_120 = arith.constant dense<0.000000e+00> : vector<1x120xf32>
    %107 = tpu.matmul %104, %106, %cst_120 {dimension_numbers = #tpu.dot_dimension_numbers<[1], [0], [0], [1], [0, 0, 1, 1], [], []>} : vector<1x80xf32>, vector<80x120xf32>, vector<1x120xf32> -> vector<1x120xf32>
    %108 = arith.addf %103, %107 : vector<1x120xf32>
    %c3_121 = arith.constant 3 : index
    %c0_122 = arith.constant 0 : index
    %109 = vector.load %arg18[%c3_121, %c0_122] : memref<5x80xf32, #tpu.memory_space<vmem>>, vector<1x80xf32>
    %c3_123 = arith.constant 3 : index
    %c0_124 = arith.constant 0 : index
    %c0_125 = arith.constant 0 : index
    %110 = vector.load %arg10[%c3_123, %c0_124, %c0_125] : memref<5x80x120xf32, #tpu.memory_space<vmem>>, vector<1x80x120xf32>
    %111 = vector.shape_cast %110 : vector<1x80x120xf32> to vector<80x120xf32>
    %cst_126 = arith.constant dense<0.000000e+00> : vector<1x120xf32>
    %112 = tpu.matmul %109, %111, %cst_126 {dimension_numbers = #tpu.dot_dimension_numbers<[1], [0], [0], [1], [0, 0, 1, 1], [], []>} : vector<1x80xf32>, vector<80x120xf32>, vector<1x120xf32> -> vector<1x120xf32>
    %113 = arith.addf %108, %112 : vector<1x120xf32>
    %c4_127 = arith.constant 4 : index
    %c0_128 = arith.constant 0 : index
    %114 = vector.load %arg18[%c4_127, %c0_128] : memref<5x80xf32, #tpu.memory_space<vmem>>, vector<1x80xf32>
    %c4_129 = arith.constant 4 : index
    %c0_130 = arith.constant 0 : index
    %c0_131 = arith.constant 0 : index
    %115 = vector.load %arg10[%c4_129, %c0_130, %c0_131] : memref<5x80x120xf32, #tpu.memory_space<vmem>>, vector<1x80x120xf32>
    %116 = vector.shape_cast %115 : vector<1x80x120xf32> to vector<80x120xf32>
    %cst_132 = arith.constant dense<0.000000e+00> : vector<1x120xf32>
    %117 = tpu.matmul %114, %116, %cst_132 {dimension_numbers = #tpu.dot_dimension_numbers<[1], [0], [0], [1], [0, 0, 1, 1], [], []>} : vector<1x80xf32>, vector<80x120xf32>, vector<1x120xf32> -> vector<1x120xf32>
    %118 = arith.addf %113, %117 : vector<1x120xf32>
    %cst_133 = arith.constant 0.000000e+00 : f32
    %119 = vector.broadcast %cst_133 : f32 to vector<1x120xf32>
    %120 = arith.maximumf %118, %119 : vector<1x120xf32>
    %c0_134 = arith.constant 0 : index
    %c0_135 = arith.constant 0 : index
    %121 = vector.load %arg12[%c0_134, %c0_135] : memref<120x84xf32, #tpu.memory_space<vmem>>, vector<120x84xf32>
    %cst_136 = arith.constant dense<0.000000e+00> : vector<1x84xf32>
    %122 = tpu.matmul %120, %121, %cst_136 {dimension_numbers = #tpu.dot_dimension_numbers<[1], [0], [0], [1], [0, 0, 1, 1], [], []>} : vector<1x120xf32>, vector<120x84xf32>, vector<1x84xf32> -> vector<1x84xf32>
    %c0_137 = arith.constant 0 : index
    %c0_138 = arith.constant 0 : index
    %123 = vector.load %arg13[%c0_137, %c0_138] : memref<1x84xf32, #tpu.memory_space<vmem>>, vector<1x84xf32>
    %124 = arith.addf %122, %123 : vector<1x84xf32>
    %cst_139 = arith.constant 0.000000e+00 : f32
    %125 = vector.broadcast %cst_139 : f32 to vector<1x84xf32>
    %126 = arith.maximumf %124, %125 : vector<1x84xf32>
    %c0_140 = arith.constant 0 : index
    %c0_141 = arith.constant 0 : index
    %127 = vector.load %arg14[%c0_140, %c0_141] : memref<84x10xf32, #tpu.memory_space<vmem>>, vector<84x10xf32>
    %cst_142 = arith.constant dense<0.000000e+00> : vector<1x10xf32>
    %128 = tpu.matmul %126, %127, %cst_142 {dimension_numbers = #tpu.dot_dimension_numbers<[1], [0], [0], [1], [0, 0, 1, 1], [], []>} : vector<1x84xf32>, vector<84x10xf32>, vector<1x10xf32> -> vector<1x10xf32>
    %c0_143 = arith.constant 0 : index
    %c0_144 = arith.constant 0 : index
    %129 = vector.load %arg15[%c0_143, %c0_144] : memref<1x10xf32, #tpu.memory_space<vmem>>, vector<1x10xf32>
    %130 = arith.addf %128, %129 : vector<1x10xf32>
    %c0_145 = arith.constant 0 : index
    %c0_146 = arith.constant 0 : index
    %c0_147 = arith.constant 0 : index
    %131 = vector.load %arg16[%c0_145, %c0_146, %c0_147] : memref<1x1x10xf32, #tpu.memory_space<vmem>>, vector<1x1x10xf32>
    %132 = vector.shape_cast %131 : vector<1x1x10xf32> to vector<1x10xf32>
    %133 = vector.shape_cast %130 : vector<1x10xf32> to vector<1x1x10xf32>
    tpu.vector_store %arg16[%c0_145, %c0_146, %c0_147], %133 {strides = array<i32>} : memref<1x1x10xf32, #tpu.memory_space<vmem>>, vector<1x1x10xf32>,
    return
  }
  func.func @transform_0(%arg0: i32) -> (i32, i32, i32) {
    %c0_i32 = arith.constant 0 : i32
    %c0_i32_0 = arith.constant 0 : i32
    %c0_i32_1 = arith.constant 0 : i32
    return %arg0, %c0_i32, %c0_i32_0 : i32, i32, i32
  }
  func.func @transform_1(%arg0: i32) -> (i32, i32, i32) {
    %c0_i32 = arith.constant 0 : i32
    %c0_i32_0 = arith.constant 0 : i32
    %c0_i32_1 = arith.constant 0 : i32
    %c0_i32_2 = arith.constant 0 : i32
    return %c0_i32, %c0_i32_0, %c0_i32_1 : i32, i32, i32
  }
  func.func @transform_2(%arg0: i32) -> (i32, i32) {
    %c0_i32 = arith.constant 0 : i32
    %c0_i32_0 = arith.constant 0 : i32
    %c0_i32_1 = arith.constant 0 : i32
    return %c0_i32, %c0_i32_0 : i32, i32
  }
  func.func @transform_3(%arg0: i32) -> (i32, i32, i32) {
    %c0_i32 = arith.constant 0 : i32
    %c0_i32_0 = arith.constant 0 : i32
    %c0_i32_1 = arith.constant 0 : i32
    %c0_i32_2 = arith.constant 0 : i32
    return %c0_i32, %c0_i32_0, %c0_i32_1 : i32, i32, i32
  }
  func.func @transform_4(%arg0: i32) -> (i32, i32, i32) {
    %c0_i32 = arith.constant 0 : i32
    %c0_i32_0 = arith.constant 0 : i32
    %c0_i32_1 = arith.constant 0 : i32
    %c0_i32_2 = arith.constant 0 : i32
    return %c0_i32, %c0_i32_0, %c0_i32_1 : i32, i32, i32
  }
  func.func @transform_5(%arg0: i32) -> (i32, i32, i32) {
    %c0_i32 = arith.constant 0 : i32
    %c0_i32_0 = arith.constant 0 : i32
    %c0_i32_1 = arith.constant 0 : i32
    %c0_i32_2 = arith.constant 0 : i32
    return %c0_i32, %c0_i32_0, %c0_i32_1 : i32, i32, i32
  }
  func.func @transform_6(%arg0: i32) -> (i32, i32) {
    %c0_i32 = arith.constant 0 : i32
    %c0_i32_0 = arith.constant 0 : i32
    %c0_i32_1 = arith.constant 0 : i32
    return %c0_i32, %c0_i32_0 : i32, i32
  }
  func.func @transform_7(%arg0: i32) -> (i32, i32, i32) {
    %c0_i32 = arith.constant 0 : i32
    %c0_i32_0 = arith.constant 0 : i32
    %c0_i32_1 = arith.constant 0 : i32
    %c0_i32_2 = arith.constant 0 : i32
    return %c0_i32, %c0_i32_0, %c0_i32_1 : i32, i32, i32
  }
  func.func @transform_8(%arg0: i32) -> (i32, i32, i32) {
    %c0_i32 = arith.constant 0 : i32
    %c0_i32_0 = arith.constant 0 : i32
    %c0_i32_1 = arith.constant 0 : i32
    %c0_i32_2 = arith.constant 0 : i32
    return %c0_i32, %c0_i32_0, %c0_i32_1 : i32, i32, i32
  }
  func.func @transform_9(%arg0: i32) -> (i32, i32, i32) {
    %c0_i32 = arith.constant 0 : i32
    %c0_i32_0 = arith.constant 0 : i32
    %c0_i32_1 = arith.constant 0 : i32
    %c0_i32_2 = arith.constant 0 : i32
    return %c0_i32, %c0_i32_0, %c0_i32_1 : i32, i32, i32
  }
  func.func @transform_10(%arg0: i32) -> (i32, i32) {
    %c0_i32 = arith.constant 0 : i32
    %c0_i32_0 = arith.constant 0 : i32
    %c0_i32_1 = arith.constant 0 : i32
    return %c0_i32, %c0_i32_0 : i32, i32
  }
  func.func @transform_11(%arg0: i32) -> (i32, i32) {
    %c0_i32 = arith.constant 0 : i32
    %c0_i32_0 = arith.constant 0 : i32
    %c0_i32_1 = arith.constant 0 : i32
    return %c0_i32, %c0_i32_0 : i32, i32
  }
  func.func @transform_12(%arg0: i32) -> (i32, i32) {
    %c0_i32 = arith.constant 0 : i32
    %c0_i32_0 = arith.constant 0 : i32
    %c0_i32_1 = arith.constant 0 : i32
    return %c0_i32, %c0_i32_0 : i32, i32
  }
  func.func @transform_13(%arg0: i32) -> (i32, i32) {
    %c0_i32 = arith.constant 0 : i32
    %c0_i32_0 = arith.constant 0 : i32
    %c0_i32_1 = arith.constant 0 : i32
    return %c0_i32, %c0_i32_0 : i32, i32
  }
  func.func @transform_14(%arg0: i32) -> (i32, i32) {
    %c0_i32 = arith.constant 0 : i32
    %c0_i32_0 = arith.constant 0 : i32
    %c0_i32_1 = arith.constant 0 : i32
    return %c0_i32, %c0_i32_0 : i32, i32
  }
  func.func @transform_15(%arg0: i32) -> (i32, i32, i32) {
    %c0_i32 = arith.constant 0 : i32
    %c0_i32_0 = arith.constant 0 : i32
    %c0_i32_1 = arith.constant 0 : i32
    return %arg0, %c0_i32, %c0_i32_0 : i32, i32, i32
  }
}

</mosaic_0001>

<llo_original>
// kernel: lenet_forward.1
$region0: #{lenet_forward.1}
  #allocation0 [shape = 'u32[]', space=smem, size = 0x4, offset = 0x4, fixed_abs, tag = 'smem constant byte address 0x4 - core index']
  #allocation1 [shape = 'u32[144,128]{1,0:T(1,128)}', space=vmem, size = 0x12000, scoped, tag = 'internal scratch']
  #allocation2 [shape = 'f32[14,84]{1,0:T(8,128)}', space=vmem, size = 0x2000, scoped, tag = 'scratch operand']
  #allocation3 [shape = 'f32[5,80]{1,0:T(8,128)}', space=vmem, size = 0x1000, scoped, tag = 'scratch operand']
  %s0 = inlined_call_operand.vmem [shape: f32[2,32,32], index: 0, kind: input, shape index: {}]
  %s1 = inlined_call_operand.vmem [shape: f32[5,32,168], index: 1, kind: input, shape index: {}]
  %s2 = inlined_call_operand.vmem [shape: f32[1,168], index: 2, kind: input, shape index: {}]
  %s3 = inlined_call_operand.vmem [shape: f32[2,168,84], index: 3, kind: input, shape index: {}]
  %s4 = inlined_call_operand.vmem [shape: f32[2,14,28], index: 4, kind: input, shape index: {}]
  %s5 = inlined_call_operand.vmem [shape: f32[5,84,160], index: 5, kind: input, shape index: {}]
  %s6 = inlined_call_operand.vmem [shape: f32[1,160], index: 6, kind: input, shape index: {}]
  %s7 = inlined_call_operand.vmem [shape: f32[2,160,80], index: 7, kind: input, shape index: {}]
  %s8 = inlined_call_operand.vmem [shape: f32[2,5,10], index: 8, kind: input, shape index: {}]
  %s9 = inlined_call_operand.vmem [shape: f32[5,80,120], index: 9, kind: input, shape index: {}]
  %s10 = inlined_call_operand.vmem [shape: f32[1,120], index: 10, kind: input, shape index: {}]
  %s11 = inlined_call_operand.vmem [shape: f32[120,84], index: 11, kind: input, shape index: {}]
  %s12 = inlined_call_operand.vmem [shape: f32[1,84], index: 12, kind: input, shape index: {}]
  %s13 = inlined_call_operand.vmem [shape: f32[84,10], index: 13, kind: input, shape index: {}]
  %s14 = inlined_call_operand.vmem [shape: f32[1,10], index: 14, kind: input, shape index: {}]
  %s15 = inlined_call_operand.hbm [shape: f32[2,1,10], index: 15, kind: output, shape index: {}]
  %s16 = sld [smem:[#allocation0]]
  $region93: #{lenet_forward.1} parent=0
    _
  %s18 = ssub.s32 1, %s16
  %s19 = scalar_select 0, %s18, %s16
  $region1: #{lenet_forward.1} parent=0
    #allocation4 [shape = 'u8[1024]{0}', space=vmem, size = 0x400, scoped, tag = 'output window, operand 0']
    #allocation5 [shape = 's32[2]{0}', space=sflag, size = 0x8, scoped, tag = 'scoped memory for lenet_forward.1']
    %20 = vsyncpa [#allocation5], 0
    %s21 = scalar_lea.sflag [#allocation5], 1
    %22 = vsyncpa %s21, 0
    loop: start=0, step=1, limit=4
    $region2: #{lenet_forward.1} parent=1 // loop_pre_header
      _
    $region3: #{lenet_forward.1} parent=1 // loop_header
      %s24 = sphi 0, %s28
      %p25 = scmp.ge.s32.totalorder %s24, 4
      %s34 = sphi 0, %s36
      %s37 = sphi 0, %s34
      %s38 = sphi 0, %s37
      %s54 = sphi 0, %s38
      %s58 = sphi 0, %s58
      %s60 = sphi 0, %s58
      %s61 = sphi 0, %s60
      %s75 = sphi 0, %s61
      %s79 = sphi 0, %s79
      %s81 = sphi 0, %s79
      %s82 = sphi 0, %s81
      %s96 = sphi 0, %s82
      %s100 = sphi 0, %s100
      %s102 = sphi 0, %s100
      %s103 = sphi 0, %s102
      %s117 = sphi 0, %s103
      %s121 = sphi 0, %s121
      %s123 = sphi 0, %s121
      %s124 = sphi 0, %s123
      %s138 = sphi 0, %s124
      %s142 = sphi 0, %s142
      %s144 = sphi 0, %s142
      %s145 = sphi 0, %s144
      %s159 = sphi 0, %s145
      %s163 = sphi 0, %s163
      %s165 = sphi 0, %s163
      %s166 = sphi 0, %s165
      %s180 = sphi 0, %s166
      %s184 = sphi 0, %s184
      %s186 = sphi 0, %s184
      %s187 = sphi 0, %s186
      %s201 = sphi 0, %s187
      %s205 = sphi 0, %s205
      %s207 = sphi 0, %s205
      %s208 = sphi 0, %s207
      %s222 = sphi 0, %s208
      %s226 = sphi 0, %s226
      %s228 = sphi 0, %s226
      %s229 = sphi 0, %s228
      %s243 = sphi 0, %s229
      %s247 = sphi 0, %s247
      %s249 = sphi 0, %s247
      %s250 = sphi 0, %s249
      %s264 = sphi 0, %s250
      %s268 = sphi 0, %s268
      %s270 = sphi 0, %s268
      %s271 = sphi 0, %s270
      %s285 = sphi 0, %s271
      %s289 = sphi 0, %s289
      %s291 = sphi 0, %s289
      %s292 = sphi 0, %s291
      %s306 = sphi 0, %s292
      %s310 = sphi 0, %s310
      %s312 = sphi 0, %s310
      %s313 = sphi 0, %s312
      %s327 = sphi 0, %s313
      %s331 = sphi 0, %s331
      %s333 = sphi 0, %s331
      %s334 = sphi 0, %s333
      %s348 = sphi 0, %s334
      %s354 = sphi 0, %s356
      %s357 = sphi 0, %s354
      %s358 = sphi 0, %s357
      %s374 = sphi 0, %s358
    $region4: #{lenet_forward.1} parent=1 // loop_header_branch
      %27 = sbr.rel (%p25) target = $region8
    $region5: #{lenet_forward.1} parent=1 // loop_body
      %s29 = ssub.s32 %s24, 1
      %s30 = ssub.s32 %s24, 2
      %s31 = sadd.s32 %s24, 1
      %s32 = ssub.s32 %s24, %s31
      %p33 = scmp.eq.s32.totalorder %s32, 0
      %s35 = sadd.s32 %s34, 1
      %s36 = scalar_select %p33, %s34, %s35
      %p39 = pneg %p33
      %p40 = scmp.eq.s32.totalorder %s24, 1
      %p41 = por %p39, %p40
      %p42 = scmp.ne.s32.totalorder %s34, %s37
      %p43 = scmp.eq.s32.totalorder %s24, 0
      %p44 = por %p42, %p43
      %p45 = scmp.ne.s32.totalorder %s34, %s37
      %p46 = scmp.eq.s32.totalorder %s29, 1
      %p47 = por %p45, %p46
      %p48 = scmp.ne.s32.totalorder %s37, %s38
      %p49 = scmp.eq.s32.totalorder %s29, 0
      %p50 = por %p48, %p49
      %p51 = scmp.ne.s32.totalorder %s37, %s38
      %p52 = scmp.eq.s32.totalorder %s30, 1
      %p53 = por %p51, %p52
      %p55 = scmp.ne.s32.totalorder %s38, %s54
      %p56 = scmp.eq.s32.totalorder %s30, 0
      %p57 = por %p55, %p56
      %s59 = sadd.s32 %s58, 1
      %p62 = scmp.eq.s32.totalorder %s24, 1
      %p63 = scmp.ne.s32.totalorder %s58, %s60
      %p64 = scmp.eq.s32.totalorder %s24, 0
      %p65 = por %p63, %p64
      %p66 = scmp.ne.s32.totalorder %s58, %s60
      %p67 = scmp.eq.s32.totalorder %s29, 1
      %p68 = por %p66, %p67
      %p69 = scmp.ne.s32.totalorder %s60, %s61
      %p70 = scmp.eq.s32.totalorder %s29, 0
      %p71 = por %p69, %p70
      %p72 = scmp.ne.s32.totalorder %s60, %s61
      %p73 = scmp.eq.s32.totalorder %s30, 1
      %p74 = por %p72, %p73
      %p76 = scmp.ne.s32.totalorder %s61, %s75
      %p77 = scmp.eq.s32.totalorder %s30, 0
      %p78 = por %p76, %p77
      %s80 = sadd.s32 %s79, 1
      %p83 = scmp.eq.s32.totalorder %s24, 1
      %p84 = scmp.ne.s32.totalorder %s79, %s81
      %p85 = scmp.eq.s32.totalorder %s24, 0
      %p86 = por %p84, %p85
      %p87 = scmp.ne.s32.totalorder %s79, %s81
      %p88 = scmp.eq.s32.totalorder %s29, 1
      %p89 = por %p87, %p88
      %p90 = scmp.ne.s32.totalorder %s81, %s82
      %p91 = scmp.eq.s32.totalorder %s29, 0
      %p92 = por %p90, %p91
      %p93 = scmp.ne.s32.totalorder %s81, %s82
      %p94 = scmp.eq.s32.totalorder %s30, 1
      %p95 = por %p93, %p94
      %p97 = scmp.ne.s32.totalorder %s82, %s96
      %p98 = scmp.eq.s32.totalorder %s30, 0
      %p99 = por %p97, %p98
      %s101 = sadd.s32 %s100, 1
      %p104 = scmp.eq.s32.totalorder %s24, 1
      %p105 = scmp.ne.s32.totalorder %s100, %s102
      %p106 = scmp.eq.s32.totalorder %s24, 0
      %p107 = por %p105, %p106
      %p108 = scmp.ne.s32.totalorder %s100, %s102
      %p109 = scmp.eq.s32.totalorder %s29, 1
      %p110 = por %p108, %p109
      %p111 = scmp.ne.s32.totalorder %s102, %s103
      %p112 = scmp.eq.s32.totalorder %s29, 0
      %p113 = por %p111, %p112
      %p114 = scmp.ne.s32.totalorder %s102, %s103
      %p115 = scmp.eq.s32.totalorder %s30, 1
      %p116 = por %p114, %p115
      %p118 = scmp.ne.s32.totalorder %s103, %s117
      %p119 = scmp.eq.s32.totalorder %s30, 0
      %p120 = por %p118, %p119
      %s122 = sadd.s32 %s121, 1
      %p125 = scmp.eq.s32.totalorder %s24, 1
      %p126 = scmp.ne.s32.totalorder %s121, %s123
      %p127 = scmp.eq.s32.totalorder %s24, 0
      %p128 = por %p126, %p127
      %p129 = scmp.ne.s32.totalorder %s121, %s123
      %p130 = scmp.eq.s32.totalorder %s29, 1
      %p131 = por %p129, %p130
      %p132 = scmp.ne.s32.totalorder %s123, %s124
      %p133 = scmp.eq.s32.totalorder %s29, 0
      %p134 = por %p132, %p133
      %p135 = scmp.ne.s32.totalorder %s123, %s124
      %p136 = scmp.eq.s32.totalorder %s30, 1
      %p137 = por %p135, %p136
      %p139 = scmp.ne.s32.totalorder %s124, %s138
      %p140 = scmp.eq.s32.totalorder %s30, 0
      %p141 = por %p139, %p140
      %s143 = sadd.s32 %s142, 1
      %p146 = scmp.eq.s32.totalorder %s24, 1
      %p147 = scmp.ne.s32.totalorder %s142, %s144
      %p148 = scmp.eq.s32.totalorder %s24, 0
      %p149 = por %p147, %p148
      %p150 = scmp.ne.s32.totalorder %s142, %s144
      %p151 = scmp.eq.s32.totalorder %s29, 1
      %p152 = por %p150, %p151
      %p153 = scmp.ne.s32.totalorder %s144, %s145
      %p154 = scmp.eq.s32.totalorder %s29, 0
      %p155 = por %p153, %p154
      %p156 = scmp.ne.s32.totalorder %s144, %s145
      %p157 = scmp.eq.s32.totalorder %s30, 1
      %p158 = por %p156, %p157
      %p160 = scmp.ne.s32.totalorder %s145, %s159
      %p161 = scmp.eq.s32.totalorder %s30, 0
      %p162 = por %p160, %p161
      %s164 = sadd.s32 %s163, 1
      %p167 = scmp.eq.s32.totalorder %s24, 1
      %p168 = scmp.ne.s32.totalorder %s163, %s165
      %p169 = scmp.eq.s32.totalorder %s24, 0
      %p170 = por %p168, %p169
      %p171 = scmp.ne.s32.totalorder %s163, %s165
      %p172 = scmp.eq.s32.totalorder %s29, 1
      %p173 = por %p171, %p172
      %p174 = scmp.ne.s32.totalorder %s165, %s166
      %p175 = scmp.eq.s32.totalorder %s29, 0
      %p176 = por %p174, %p175
      %p177 = scmp.ne.s32.totalorder %s165, %s166
      %p178 = scmp.eq.s32.totalorder %s30, 1
      %p179 = por %p177, %p178
      %p181 = scmp.ne.s32.totalorder %s166, %s180
      %p182 = scmp.eq.s32.totalorder %s30, 0
      %p183 = por %p181, %p182
      %s185 = sadd.s32 %s184, 1
      %p188 = scmp.eq.s32.totalorder %s24, 1
      %p189 = scmp.ne.s32.totalorder %s184, %s186
      %p190 = scmp.eq.s32.totalorder %s24, 0
      %p191 = por %p189, %p190
      %p192 = scmp.ne.s32.totalorder %s184, %s186
      %p193 = scmp.eq.s32.totalorder %s29, 1
      %p194 = por %p192, %p193
      %p195 = scmp.ne.s32.totalorder %s186, %s187
      %p196 = scmp.eq.s32.totalorder %s29, 0
      %p197 = por %p195, %p196
      %p198 = scmp.ne.s32.totalorder %s186, %s187
      %p199 = scmp.eq.s32.totalorder %s30, 1
      %p200 = por %p198, %p199
      %p202 = scmp.ne.s32.totalorder %s187, %s201
      %p203 = scmp.eq.s32.totalorder %s30, 0
      %p204 = por %p202, %p203
      %s206 = sadd.s32 %s205, 1
      %p209 = scmp.eq.s32.totalorder %s24, 1
      %p210 = scmp.ne.s32.totalorder %s205, %s207
      %p211 = scmp.eq.s32.totalorder %s24, 0
      %p212 = por %p210, %p211
      %p213 = scmp.ne.s32.totalorder %s205, %s207
      %p214 = scmp.eq.s32.totalorder %s29, 1
      %p215 = por %p213, %p214
      %p216 = scmp.ne.s32.totalorder %s207, %s208
      %p217 = scmp.eq.s32.totalorder %s29, 0
      %p218 = por %p216, %p217
      %p219 = scmp.ne.s32.totalorder %s207, %s208
      %p220 = scmp.eq.s32.totalorder %s30, 1
      %p221 = por %p219, %p220
      %p223 = scmp.ne.s32.totalorder %s208, %s222
      %p224 = scmp.eq.s32.totalorder %s30, 0
      %p225 = por %p223, %p224
      %s227 = sadd.s32 %s226, 1
      %p230 = scmp.eq.s32.totalorder %s24, 1
      %p231 = scmp.ne.s32.totalorder %s226, %s228
      %p232 = scmp.eq.s32.totalorder %s24, 0
      %p233 = por %p231, %p232
      %p234 = scmp.ne.s32.totalorder %s226, %s228
      %p235 = scmp.eq.s32.totalorder %s29, 1
      %p236 = por %p234, %p235
      %p237 = scmp.ne.s32.totalorder %s228, %s229
      %p238 = scmp.eq.s32.totalorder %s29, 0
      %p239 = por %p237, %p238
      %p240 = scmp.ne.s32.totalorder %s228, %s229
      %p241 = scmp.eq.s32.totalorder %s30, 1
      %p242 = por %p240, %p241
      %p244 = scmp.ne.s32.totalorder %s229, %s243
      %p245 = scmp.eq.s32.totalorder %s30, 0
      %p246 = por %p244, %p245
      %s248 = sadd.s32 %s247, 1
      %p251 = scmp.eq.s32.totalorder %s24, 1
      %p252 = scmp.ne.s32.totalorder %s247, %s249
      %p253 = scmp.eq.s32.totalorder %s24, 0
      %p254 = por %p252, %p253
      %p255 = scmp.ne.s32.totalorder %s247, %s249
      %p256 = scmp.eq.s32.totalorder %s29, 1
      %p257 = por %p255, %p256
      %p258 = scmp.ne.s32.totalorder %s249, %s250
      %p259 = scmp.eq.s32.totalorder %s29, 0
      %p260 = por %p258, %p259
      %p261 = scmp.ne.s32.totalorder %s249, %s250
      %p262 = scmp.eq.s32.totalorder %s30, 1
      %p263 = por %p261, %p262
      %p265 = scmp.ne.s32.totalorder %s250, %s264
      %p266 = scmp.eq.s32.totalorder %s30, 0
      %p267 = por %p265, %p266
      %s269 = sadd.s32 %s268, 1
      %p272 = scmp.eq.s32.totalorder %s24, 1
      %p273 = scmp.ne.s32.totalorder %s268, %s270
      %p274 = scmp.eq.s32.totalorder %s24, 0
      %p275 = por %p273, %p274
      %p276 = scmp.ne.s32.totalorder %s268, %s270
      %p277 = scmp.eq.s32.totalorder %s29, 1
      %p278 = por %p276, %p277
      %p279 = scmp.ne.s32.totalorder %s270, %s271
      %p280 = scmp.eq.s32.totalorder %s29, 0
      %p281 = por %p279, %p280
      %p282 = scmp.ne.s32.totalorder %s270, %s271
      %p283 = scmp.eq.s32.totalorder %s30, 1
      %p284 = por %p282, %p283
      %p286 = scmp.ne.s32.totalorder %s271, %s285
      %p287 = scmp.eq.s32.totalorder %s30, 0
      %p288 = por %p286, %p287
      %s290 = sadd.s32 %s289, 1
      %p293 = scmp.eq.s32.totalorder %s24, 1
      %p294 = scmp.ne.s32.totalorder %s289, %s291
      %p295 = scmp.eq.s32.totalorder %s24, 0
      %p296 = por %p294, %p295
      %p297 = scmp.ne.s32.totalorder %s289, %s291
      %p298 = scmp.eq.s32.totalorder %s29, 1
      %p299 = por %p297, %p298
      %p300 = scmp.ne.s32.totalorder %s291, %s292
      %p301 = scmp.eq.s32.totalorder %s29, 0
      %p302 = por %p300, %p301
      %p303 = scmp.ne.s32.totalorder %s291, %s292
      %p304 = scmp.eq.s32.totalorder %s30, 1
      %p305 = por %p303, %p304
      %p307 = scmp.ne.s32.totalorder %s292, %s306
      %p308 = scmp.eq.s32.totalorder %s30, 0
      %p309 = por %p307, %p308
      %s311 = sadd.s32 %s310, 1
      %p314 = scmp.eq.s32.totalorder %s24, 1
      %p315 = scmp.ne.s32.totalorder %s310, %s312
      %p316 = scmp.eq.s32.totalorder %s24, 0
      %p317 = por %p315, %p316
      %p318 = scmp.ne.s32.totalorder %s310, %s312
      %p319 = scmp.eq.s32.totalorder %s29, 1
      %p320 = por %p318, %p319
      %p321 = scmp.ne.s32.totalorder %s312, %s313
      %p322 = scmp.eq.s32.totalorder %s29, 0
      %p323 = por %p321, %p322
      %p324 = scmp.ne.s32.totalorder %s312, %s313
      %p325 = scmp.eq.s32.totalorder %s30, 1
      %p326 = por %p324, %p325
      %p328 = scmp.ne.s32.totalorder %s313, %s327
      %p329 = scmp.eq.s32.totalorder %s30, 0
      %p330 = por %p328, %p329
      %s332 = sadd.s32 %s331, 1
      %p335 = scmp.eq.s32.totalorder %s24, 1
      %p336 = scmp.ne.s32.totalorder %s331, %s333
      %p337 = scmp.eq.s32.totalorder %s24, 0
      %p338 = por %p336, %p337
      %p339 = scmp.ne.s32.totalorder %s331, %s333
      %p340 = scmp.eq.s32.totalorder %s29, 1
      %p341 = por %p339, %p340
      %p342 = scmp.ne.s32.totalorder %s333, %s334
      %p343 = scmp.eq.s32.totalorder %s29, 0
      %p344 = por %p342, %p343
      %p345 = scmp.ne.s32.totalorder %s333, %s334
      %p346 = scmp.eq.s32.totalorder %s30, 1
      %p347 = por %p345, %p346
      %p349 = scmp.ne.s32.totalorder %s334, %s348
      %p350 = scmp.eq.s32.totalorder %s30, 0
      %p351 = por %p349, %p350
      %s352 = ssub.s32 %s24, %s31
      %p353 = scmp.eq.s32.totalorder %s352, 0
      %s355 = sadd.s32 %s354, 1
      %s356 = scalar_select %p353, %s354, %s355
      %p359 = pneg %p353
      %p360 = scmp.eq.s32.totalorder %s24, 1
      %p361 = por %p359, %p360
      %p362 = scmp.ne.s32.totalorder %s354, %s357
      %p363 = scmp.eq.s32.totalorder %s24, 0
      %p364 = por %p362, %p363
      %p365 = scmp.ne.s32.totalorder %s354, %s357
      %p366 = scmp.eq.s32.totalorder %s29, 1
      %p367 = por %p365, %p366
      %p368 = scmp.ne.s32.totalorder %s357, %s358
      %p369 = scmp.eq.s32.totalorder %s29, 0
      %p370 = por %p368, %p369
      %p371 = scmp.ne.s32.totalorder %s357, %s358
      %p372 = scmp.eq.s32.totalorder %s30, 1
      %p373 = por %p371, %p372
      %p375 = scmp.ne.s32.totalorder %s358, %s374
      %p376 = scmp.eq.s32.totalorder %s30, 0
      %p377 = por %p375, %p376
      %p378 = scmp.le.s32.totalorder 1, %s24
      %p379 = scmp.lt.s32.totalorder %s24, 3
      %p380 = pnand %p378, %p379
      %p381 = pneg %p380
      // Predicated region
      $region9: #{lenet_forward.1} parent=5 // pred_check
        _
      $region10: #{lenet_forward.1} parent=5 // pred_check_branch
        %383 = sbr.rel (%p380) target = $region12
      $region11: #{lenet_forward.1} parent=5 // pred_region
        %s384 = ssub.s32 %s24, 1
        // Predicated region
        $region13: #{lenet_forward.1} parent=11 // pred_check
          %p385 = pneg %p71
        $region14: #{lenet_forward.1} parent=11 // pred_check_branch
          %387 = sbr.rel (%p385) target = $region16
        $region15: #{lenet_forward.1} parent=11 // pred_region
          _
        $region16: #{lenet_forward.1} parent=11 // pred_fallthru
          _
        // Predicated region
        $region17: #{lenet_forward.1} parent=11 // pred_check
          %p388 = pneg %p92
        $region18: #{lenet_forward.1} parent=11 // pred_check_branch
          %390 = sbr.rel (%p388) target = $region20
        $region19: #{lenet_forward.1} parent=11 // pred_region
          _
        $region20: #{lenet_forward.1} parent=11 // pred_fallthru
          _
        // Predicated region
        $region21: #{lenet_forward.1} parent=11 // pred_check
          %p391 = pneg %p113
        $region22: #{lenet_forward.1} parent=11 // pred_check_branch
          %393 = sbr.rel (%p391) target = $region24
        $region23: #{lenet_forward.1} parent=11 // pred_region
          _
        $region24: #{lenet_forward.1} parent=11 // pred_fallthru
          _
        // Predicated region
        $region25: #{lenet_forward.1} parent=11 // pred_check
          %p394 = pneg %p134
        $region26: #{lenet_forward.1} parent=11 // pred_check_branch
          %396 = sbr.rel (%p394) target = $region28
        $region27: #{lenet_forward.1} parent=11 // pred_region
          _
        $region28: #{lenet_forward.1} parent=11 // pred_fallthru
          _
        // Predicated region
        $region29: #{lenet_forward.1} parent=11 // pred_check
          %p397 = pneg %p155
        $region30: #{lenet_forward.1} parent=11 // pred_check_branch
          %399 = sbr.rel (%p397) target = $region32
        $region31: #{lenet_forward.1} parent=11 // pred_region
          _
        $region32: #{lenet_forward.1} parent=11 // pred_fallthru
          _
        // Predicated region
        $region33: #{lenet_forward.1} parent=11 // pred_check
          %p400 = pneg %p176
        $region34: #{lenet_forward.1} parent=11 // pred_check_branch
          %402 = sbr.rel (%p400) target = $region36
        $region35: #{lenet_forward.1} parent=11 // pred_region
          _
        $region36: #{lenet_forward.1} parent=11 // pred_fallthru
          _
        // Predicated region
        $region37: #{lenet_forward.1} parent=11 // pred_check
          %p403 = pneg %p197
        $region38: #{lenet_forward.1} parent=11 // pred_check_branch
          %405 = sbr.rel (%p403) target = $region40
        $region39: #{lenet_forward.1} parent=11 // pred_region
          _
        $region40: #{lenet_forward.1} parent=11 // pred_fallthru
          _
        // Predicated region
        $region41: #{lenet_forward.1} parent=11 // pred_check
          %p406 = pneg %p218
        $region42: #{lenet_forward.1} parent=11 // pred_check_branch
          %408 = sbr.rel (%p406) target = $region44
        $region43: #{lenet_forward.1} parent=11 // pred_region
          _
        $region44: #{lenet_forward.1} parent=11 // pred_fallthru
          _
        // Predicated region
        $region45: #{lenet_forward.1} parent=11 // pred_check
          %p409 = pneg %p239
        $region46: #{lenet_forward.1} parent=11 // pred_check_branch
          %411 = sbr.rel (%p409) target = $region48
        $region47: #{lenet_forward.1} parent=11 // pred_region
          _
        $region48: #{lenet_forward.1} parent=11 // pred_fallthru
          _
        // Predicated region
        $region49: #{lenet_forward.1} parent=11 // pred_check
          %p412 = pneg %p260
        $region50: #{lenet_forward.1} parent=11 // pred_check_branch
          %414 = sbr.rel (%p412) target = $region52
        $region51: #{lenet_forward.1} parent=11 // pred_region
          _
        $region52: #{lenet_forward.1} parent=11 // pred_fallthru
          _
        // Predicated region
        $region53: #{lenet_forward.1} parent=11 // pred_check
          %p415 = pneg %p281
        $region54: #{lenet_forward.1} parent=11 // pred_check_branch
          %417 = sbr.rel (%p415) target = $region56
        $region55: #{lenet_forward.1} parent=11 // pred_region
          _
        $region56: #{lenet_forward.1} parent=11 // pred_fallthru
          _
        // Predicated region
        $region57: #{lenet_forward.1} parent=11 // pred_check
          %p418 = pneg %p302
        $region58: #{lenet_forward.1} parent=11 // pred_check_branch
          %420 = sbr.rel (%p418) target = $region60
        $region59: #{lenet_forward.1} parent=11 // pred_region
          _
        $region60: #{lenet_forward.1} parent=11 // pred_fallthru
          _
        // Predicated region
        $region61: #{lenet_forward.1} parent=11 // pred_check
          %p421 = pneg %p323
        $region62: #{lenet_forward.1} parent=11 // pred_check_branch
          %423 = sbr.rel (%p421) target = $region64
        $region63: #{lenet_forward.1} parent=11 // pred_region
          _
        $region64: #{lenet_forward.1} parent=11 // pred_fallthru
          _
        // Predicated region
        $region65: #{lenet_forward.1} parent=11 // pred_check
          %p424 = pneg %p344
        $region66: #{lenet_forward.1} parent=11 // pred_check_branch
          %426 = sbr.rel (%p424) target = $region68
        $region67: #{lenet_forward.1} parent=11 // pred_region
          _
        $region68: #{lenet_forward.1} parent=11 // pred_fallthru
          _
      $region12: #{lenet_forward.1} parent=5 // pred_fallthru
        _
      %p427 = scmp.lt.s32.totalorder %s24, 2
      // Predicated region
      $region69: #{lenet_forward.1} parent=5 // pred_check
        %p428 = pneg %p427
      $region70: #{lenet_forward.1} parent=5 // pred_check_branch
        %430 = sbr.rel (%p428) target = $region72
      $region71: #{lenet_forward.1} parent=5 // pred_region
        // Predicated region
        $region73: #{lenet_forward.1} parent=71 // pred_check
          %p431 = pneg %p44
        $region74: #{lenet_forward.1} parent=71 // pred_check_branch
          %433 = sbr.rel (%p431) target = $region76
        $region75: #{lenet_forward.1} parent=71 // pred_region
          %p434 = scmp.lt.s32.totalorder %s24, 1
          %s435 = scalar_select %p434, %s24, 1
          %s436 = smul.addr %s435, 4
          %s437 = smul.addr %s436, 8
          %s438 = scalar_lea.vmem %s0, %s437
        $region76: #{lenet_forward.1} parent=71 // pred_fallthru
          _
      $region72: #{lenet_forward.1} parent=5 // pred_fallthru
        _
      %p439 = scmp.le.s32.totalorder 1, %s24
      %p440 = scmp.lt.s32.totalorder %s24, 3
      %p441 = pnand %p439, %p440
      %p442 = pneg %p441
      // Predicated region
      $region77: #{lenet_forward.1} parent=5 // pred_check
        _
      $region78: #{lenet_forward.1} parent=5 // pred_check_branch
        %444 = sbr.rel (%p441) target = $region80
      $region79: #{lenet_forward.1} parent=5 // pred_region
        %s445 = ssub.s32 %s24, 1
        %p446 = scmp.lt.s32.totalorder %s29, 1
        %s447 = scalar_select %p446, %s29, 1
        %s448 = smul.addr %s447, 4
        %s449 = smul.addr %s448, 8
        %s450 = scalar_lea.vmem %s0, %s449
        %p451 = pneg %p50
        %p452 = pneg %p47
        %p453 = pneg %p71
        %p454 = pneg %p68
        %p455 = pneg %p92
        %p456 = pneg %p89
        %p457 = pneg %p113
        %p458 = pneg %p110
        %p459 = pneg %p134
        %p460 = pneg %p131
        %p461 = pneg %p155
        %p462 = pneg %p152
        %p463 = pneg %p176
        %p464 = pneg %p173
        %p465 = pneg %p197
        %p466 = pneg %p194
        %p467 = pneg %p218
        %p468 = pneg %p215
        %p469 = pneg %p239
        %p470 = pneg %p236
        %p471 = pneg %p260
        %p472 = pneg %p257
        %p473 = pneg %p281
        %p474 = pneg %p278
        %p475 = pneg %p302
        %p476 = pneg %p299
        %p477 = pneg %p323
        %p478 = pneg %p320
        %p479 = pneg %p344
        %p480 = pneg %p341
        %p481 = pneg %p370
        %p482 = pneg %p367
        %s483 = sand.u32 %s357, 1
        %s484 = scalar_lea.sflag [#allocation5], %s483
        %s485 = sand.u32 %s357, 1
        %s486 = scalar_lea.vmem [#allocation4], %s485
        %p487 = scmp.lt.s32.totalorder %s29, 1
        %s488 = scalar_select %p487, %s29, 1
        %s489 = smul.addr %s488, 4
        %s490 = smul.addr %s489, 8
        %s491 = scalar_lea.vmem %s0, %s490
        %v492 = vld [vmem:[%s491] sm:$0xff]
        %v493 = vld [vmem:[%s491 + $0x8] sm:$0xff]
        %v494 = vld [vmem:[%s491 + $0x10] sm:$0xff]
        %v495 = vld [vmem:[%s491 + $0x18] sm:$0xf]
        %v496 = vld [vmem:[%s1] sm:$0xff]
        %v497 = vld [vmem:[%s1 + $0x8] sm:$0xff]
        %v498 = vld [vmem:[%s1 + $0x10] sm:$0xff]
        %v499 = vld [vmem:[%s1 + $0x18] sm:$0xff]
        %v500 = vld [vmem:[%s1 + $0x20] sm:$0xff]
        %v501 = vld [vmem:[%s1 + $0x28] sm:$0xff]
        %v502 = vld [vmem:[%s1 + $0x30] sm:$0xff]
        %v503 = vld [vmem:[%s1 + $0x38] sm:$0xff]
        %v504 = vld [vmem:[%s491 + $0x1] sm:$0xff]
        %v505 = vld [vmem:[%s491 + $0x9] sm:$0xff]
        %v506 = vld [vmem:[%s491 + $0x11] sm:$0xff]
        %v507 = vld [vmem:[%s491 + $0x19] sm:$0xf]
        %s508 = scalar_lea.vmem %s1, 64
        %v509 = vld [vmem:[%s508] sm:$0xff]
        %v510 = vld [vmem:[%s508 + $0x8] sm:$0xff]
        %v511 = vld [vmem:[%s508 + $0x10] sm:$0xff]
        %v512 = vld [vmem:[%s508 + $0x18] sm:$0xff]
        %v513 = vld [vmem:[%s508 + $0x20] sm:$0xff]
        %v514 = vld [vmem:[%s508 + $0x28] sm:$0xff]
        %v515 = vld [vmem:[%s508 + $0x30] sm:$0xff]
        %v516 = vld [vmem:[%s508 + $0x38] sm:$0xff]
        %vm517 = vcmask 261120
        %v519 = vsel %vm517, %v504, 0
        %v522 = vsel %vm517, %v505, 0
        %v525 = vsel %vm517, %v506, 0
        %v528 = vsel %vm517, %v507, 0
        %530 = vmatprep.subr.mxu0 %v510
        %531 = vmatpush1.msra.mxu0 %v509
        %532 = vmatprep.subr.mxu0 %v512
        %533 = vmatpush1.msra.mxu0 %v511
        %534 = vmatprep.subr.mxu0 %v514
        %535 = vmatpush1.msra.mxu0 %v513
        %536 = vmatprep.subr.mxu0 %v516
        %537 = vmatpush1.msra.mxu0 %v515
        %538 = vmatprep.subr.mxu0 0.0
        %539 = vmatpush1.msra.mxu0 0.0
        %540 = vmatprep.subr.mxu0 0.0
        %541 = vmatpush1.msra.mxu0 0.0
        %542 = vmatprep.subr.mxu0 0.0
        %543 = vmatpush1.msra.mxu0 0.0
        %544 = vmatprep.subr.mxu0 0.0
        %545 = vmatpush1.msra.mxu0 0.0
        %546 = vmatprep.subr.mxu0 0.0
        %547 = vmatpush1.msra.mxu0 0.0
        %548 = vmatprep.subr.mxu0 0.0
        %549 = vmatpush1.msra.mxu0 0.0
        %550 = vmatprep.subr.mxu0 0.0
        %551 = vmatpush1.msra.mxu0 0.0
        %552 = vmatprep.subr.mxu0 0.0
        %553 = vmatpush1.msra.mxu0 0.0
        %554 = vmatprep.subr.mxu0 0.0
        %555 = vmatpush1.msra.mxu0 0.0
        %556 = vmatprep.subr.mxu0 0.0
        %557 = vmatpush1.msra.mxu0 0.0
        %558 = vmatprep.subr.mxu0 0.0
        %559 = vmatpush1.msra.mxu0 0.0
        %560 = vmatprep.subr.mxu0 0.0
        %561 = vmatpush1.msra.mxu0 0.0
        %562 = vmatprep.subr.mxu0 0.0
        %563 = vmatpush1.msra.mxu0 0.0
        %564 = vmatprep.subr.mxu0 0.0
        %565 = vmatpush1.msra.mxu0 0.0
        %566 = vmatprep.subr.mxu0 0.0
        %567 = vmatpush1.msra.mxu0 0.0
        %568 = vmatprep.subr.mxu0 0.0
        %569 = vmatpush1.msra.mxu0 0.0
        %570 = vmatprep.subr.mxu0 0.0
        %571 = vmatpush1.msra.mxu0 0.0
        %572 = vmatprep.subr.mxu0 0.0
        %573 = vmatpush1.msra.mxu0 0.0
        %574 = vmatprep.subr.mxu0 0.0
        %575 = vmatpush1.msra.mxu0 0.0
        %576 = vmatprep.subr.mxu0 0.0
        %577 = vmatpush1.msra.mxu0 0.0
        %578 = vmatprep.subr.mxu0 0.0
        %579 = vmatpush1.msra.mxu0 0.0
        %580 = vmatprep.subr.mxu0 0.0
        %581 = vmatpush1.msra.mxu0 0.0
        %582 = vmatprep.subr.mxu0 0.0
        %583 = vmatpush1.msra.mxu0 0.0
        %584 = vmatprep.subr.mxu0 0.0
        %585 = vmatpush1.msra.mxu0 0.0
        %586 = vmatprep.subr.mxu0 0.0
        %587 = vmatpush1.msra.mxu0 0.0
        %588 = vmatprep.subr.mxu0 0.0
        %589 = vmatpush1.msra.mxu0 0.0
        %590 = vmatprep.subr.mxu0 0.0
        %591 = vmatpush1.msra.mxu0 0.0
        %592 = vmatprep.subr.mxu0 0.0
        %593 = vmatpush1.msra.mxu0 0.0
        %594 = vmatprep.mubr.f32.mxu0 0.0
        %595 = vmatmul.mubr.f32.gmra.mrb[0].mxu0 %v519
        %v596 = vpop.f32.mrb[0].mxu0
        %v597 = vadd.f32 0.0, %v596
        %v598 = vpop.f32.mrb[0].mxu0
        %v599 = vadd.f32 0.0, %v598
        %600 = vmatprep.mubr.f32.mxu0 0.0
        %601 = vmatmul.mubr.f32.gmra.mrb[0].mxu0 %v522
        %v602 = vpop.f32.mrb[0].mxu0
        %v603 = vadd.f32 0.0, %v602
        %v604 = vpop.f32.mrb[0].mxu0
        %v605 = vadd.f32 0.0, %v604
        %606 = vmatprep.mubr.f32.mxu0 0.0
        %607 = vmatmul.mubr.f32.gmra.mrb[0].mxu0 %v525
        %v608 = vpop.f32.mrb[0].mxu0
        %v609 = vadd.f32 0.0, %v608
        %v610 = vpop.f32.mrb[0].mxu0
        %v611 = vadd.f32 0.0, %v610
        %612 = vmatprep.mubr.f32.mxu0 0.0
        %613 = vmatmul.mubr.f32.gmra.mrb[0].mxu0 %v528
        %v614 = vpop.f32.mrb[0].mxu0
        %v615 = vadd.f32 0.0, %v614
        %v616 = vpop.f32.mrb[0].mxu0
        %v617 = vadd.f32 0.0, %v616
        %618 = vdwg.mxu0
        %v620 = vsel %vm517, %v492, 0
        %v623 = vsel %vm517, %v493, 0
        %v626 = vsel %vm517, %v494, 0
        %v629 = vsel %vm517, %v495, 0
        %631 = vmatprep.subr.mxu0 %v497
        %632 = vmatpush1.msra.mxu0 %v496
        %633 = vmatprep.subr.mxu0 %v499
        %634 = vmatpush1.msra.mxu0 %v498
        %635 = vmatprep.subr.mxu0 %v501
        %636 = vmatpush1.msra.mxu0 %v500
        %637 = vmatprep.subr.mxu0 %v503
        %638 = vmatpush1.msra.mxu0 %v502
        %639 = vmatprep.subr.mxu0 0.0
        %640 = vmatpush1.msra.mxu0 0.0
        %641 = vmatprep.subr.mxu0 0.0
        %642 = vmatpush1.msra.mxu0 0.0
        %643 = vmatprep.subr.mxu0 0.0
        %644 = vmatpush1.msra.mxu0 0.0
        %645 = vmatprep.subr.mxu0 0.0
        %646 = vmatpush1.msra.mxu0 0.0
        %647 = vmatprep.subr.mxu0 0.0
        %648 = vmatpush1.msra.mxu0 0.0
        %649 = vmatprep.subr.mxu0 0.0
        %650 = vmatpush1.msra.mxu0 0.0
        %651 = vmatprep.subr.mxu0 0.0
        %652 = vmatpush1.msra.mxu0 0.0
        %653 = vmatprep.subr.mxu0 0.0
        %654 = vmatpush1.msra.mxu0 0.0
        %655 = vmatprep.subr.mxu0 0.0
        %656 = vmatpush1.msra.mxu0 0.0
        %657 = vmatprep.subr.mxu0 0.0
        %658 = vmatpush1.msra.mxu0 0.0
        %659 = vmatprep.subr.mxu0 0.0
        %660 = vmatpush1.msra.mxu0 0.0
        %661 = vmatprep.subr.mxu0 0.0
        %662 = vmatpush1.msra.mxu0 0.0
        %663 = vmatprep.subr.mxu0 0.0
        %664 = vmatpush1.msra.mxu0 0.0
        %665 = vmatprep.subr.mxu0 0.0
        %666 = vmatpush1.msra.mxu0 0.0
        %667 = vmatprep.subr.mxu0 0.0
        %668 = vmatpush1.msra.mxu0 0.0
        %669 = vmatprep.subr.mxu0 0.0
        %670 = vmatpush1.msra.mxu0 0.0
        %671 = vmatprep.subr.mxu0 0.0
        %672 = vmatpush1.msra.mxu0 0.0
        %673 = vmatprep.subr.mxu0 0.0
        %674 = vmatpush1.msra.mxu0 0.0
        %675 = vmatprep.subr.mxu0 0.0
        %676 = vmatpush1.msra.mxu0 0.0
        %677 = vmatprep.subr.mxu0 0.0
        %678 = vmatpush1.msra.mxu0 0.0
        %679 = vmatprep.subr.mxu0 0.0
        %680 = vmatpush1.msra.mxu0 0.0
        %681 = vmatprep.subr.mxu0 0.0
        %682 = vmatpush1.msra.mxu0 0.0
        %683 = vmatprep.subr.mxu0 0.0
        %684 = vmatpush1.msra.mxu0 0.0
        %685 = vmatprep.subr.mxu0 0.0
        %686 = vmatpush1.msra.mxu0 0.0
        %687 = vmatprep.subr.mxu0 0.0
        %688 = vmatpush1.msra.mxu0 0.0
        %689 = vmatprep.subr.mxu0 0.0
        %690 = vmatpush1.msra.mxu0 0.0
        %691 = vmatprep.subr.mxu0 0.0
        %692 = vmatpush1.msra.mxu0 0.0
        %693 = vmatprep.subr.mxu0 0.0
        %694 = vmatpush1.msra.mxu0 0.0
        %695 = vmatprep.mubr.f32.mxu0 0.0
        %696 = vmatmul.mubr.f32.gmra.mrb[0].mxu0 %v620
        %v697 = vpop.f32.mrb[0].mxu0
        %v698 = vadd.f32 %v597, %v697
        %v699 = vpop.f32.mrb[0].mxu0
        %v700 = vadd.f32 %v599, %v699
        %701 = vmatprep.mubr.f32.mxu0 0.0
        %702 = vmatmul.mubr.f32.gmra.mrb[0].mxu0 %v623
        %v703 = vpop.f32.mrb[0].mxu0
        %v704 = vadd.f32 %v603, %v703
        %v705 = vpop.f32.mrb[0].mxu0
        %v706 = vadd.f32 %v605, %v705
        %707 = vmatprep.mubr.f32.mxu0 0.0
        %708 = vmatmul.mubr.f32.gmra.mrb[0].mxu0 %v626
        %v709 = vpop.f32.mrb[0].mxu0
        %v710 = vadd.f32 %v609, %v709
        %v711 = vpop.f32.mrb[0].mxu0
        %v712 = vadd.f32 %v611, %v711
        %713 = vmatprep.mubr.f32.mxu0 0.0
        %714 = vmatmul.mubr.f32.gmra.mrb[0].mxu0 %v629
        %v715 = vpop.f32.mrb[0].mxu0
        %v716 = vadd.f32 %v615, %v715
        %v717 = vpop.f32.mrb[0].mxu0
        %v718 = vadd.f32 %v617, %v717
        %719 = vdwg.mxu0
        %v720 = vld [vmem:[%s491 + $0x2] sm:$0xff]
        %v721 = vld [vmem:[%s491 + $0xa] sm:$0xff]
        %v722 = vld [vmem:[%s491 + $0x12] sm:$0xff]
        %v723 = vld [vmem:[%s491 + $0x1a] sm:$0xf]
        %s724 = scalar_lea.vmem %s1, 128
        %v725 = vld [vmem:[%s724] sm:$0xff]
        %v726 = vld [vmem:[%s724 + $0x8] sm:$0xff]
        %v727 = vld [vmem:[%s724 + $0x10] sm:$0xff]
        %v728 = vld [vmem:[%s724 + $0x18] sm:$0xff]
        %v729 = vld [vmem:[%s724 + $0x20] sm:$0xff]
        %v730 = vld [vmem:[%s724 + $0x28] sm:$0xff]
        %v731 = vld [vmem:[%s724 + $0x30] sm:$0xff]
        %v732 = vld [vmem:[%s724 + $0x38] sm:$0xff]
        %v734 = vsel %vm517, %v720, 0
        %v737 = vsel %vm517, %v721, 0
        %v740 = vsel %vm517, %v722, 0
        %v743 = vsel %vm517, %v723, 0
        %745 = vmatprep.subr.mxu0 %v726
        %746 = vmatpush1.msra.mxu0 %v725
        %747 = vmatprep.subr.mxu0 %v728
        %748 = vmatpush1.msra.mxu0 %v727
        %749 = vmatprep.subr.mxu0 %v730
        %750 = vmatpush1.msra.mxu0 %v729
        %751 = vmatprep.subr.mxu0 %v732
        %752 = vmatpush1.msra.mxu0 %v731
        %753 = vmatprep.subr.mxu0 0.0
        %754 = vmatpush1.msra.mxu0 0.0
        %755 = vmatprep.subr.mxu0 0.0
        %756 = vmatpush1.msra.mxu0 0.0
        %757 = vmatprep.subr.mxu0 0.0
        %758 = vmatpush1.msra.mxu0 0.0
        %759 = vmatprep.subr.mxu0 0.0
        %760 = vmatpush1.msra.mxu0 0.0
        %761 = vmatprep.subr.mxu0 0.0
        %762 = vmatpush1.msra.mxu0 0.0
        %763 = vmatprep.subr.mxu0 0.0
        %764 = vmatpush1.msra.mxu0 0.0
        %765 = vmatprep.subr.mxu0 0.0
        %766 = vmatpush1.msra.mxu0 0.0
        %767 = vmatprep.subr.mxu0 0.0
        %768 = vmatpush1.msra.mxu0 0.0
        %769 = vmatprep.subr.mxu0 0.0
        %770 = vmatpush1.msra.mxu0 0.0
        %771 = vmatprep.subr.mxu0 0.0
        %772 = vmatpush1.msra.mxu0 0.0
        %773 = vmatprep.subr.mxu0 0.0
        %774 = vmatpush1.msra.mxu0 0.0
        %775 = vmatprep.subr.mxu0 0.0
        %776 = vmatpush1.msra.mxu0 0.0
        %777 = vmatprep.subr.mxu0 0.0
        %778 = vmatpush1.msra.mxu0 0.0
        %779 = vmatprep.subr.mxu0 0.0
        %780 = vmatpush1.msra.mxu0 0.0
        %781 = vmatprep.subr.mxu0 0.0
        %782 = vmatpush1.msra.mxu0 0.0
        %783 = vmatprep.subr.mxu0 0.0
        %784 = vmatpush1.msra.mxu0 0.0
        %785 = vmatprep.subr.mxu0 0.0
        %786 = vmatpush1.msra.mxu0 0.0
        %787 = vmatprep.subr.mxu0 0.0
        %788 = vmatpush1.msra.mxu0 0.0
        %789 = vmatprep.subr.mxu0 0.0
        %790 = vmatpush1.msra.mxu0 0.0
        %791 = vmatprep.subr.mxu0 0.0
        %792 = vmatpush1.msra.mxu0 0.0
        %793 = vmatprep.subr.mxu0 0.0
        %794 = vmatpush1.msra.mxu0 0.0
        %795 = vmatprep.subr.mxu0 0.0
        %796 = vmatpush1.msra.mxu0 0.0
        %797 = vmatprep.subr.mxu0 0.0
        %798 = vmatpush1.msra.mxu0 0.0
        %799 = vmatprep.subr.mxu0 0.0
        %800 = vmatpush1.msra.mxu0 0.0
        %801 = vmatprep.subr.mxu0 0.0
        %802 = vmatpush1.msra.mxu0 0.0
        %803 = vmatprep.subr.mxu0 0.0
        %804 = vmatpush1.msra.mxu0 0.0
        %805 = vmatprep.subr.mxu0 0.0
        %806 = vmatpush1.msra.mxu0 0.0
        %807 = vmatprep.subr.mxu0 0.0
        %808 = vmatpush1.msra.mxu0 0.0
        %809 = vmatprep.mubr.f32.mxu0 0.0
        %810 = vmatmul.mubr.f32.gmra.mrb[0].mxu0 %v734
        %v811 = vpop.f32.mrb[0].mxu0
        %v812 = vadd.f32 0.0, %v811
        %v813 = vpop.f32.mrb[0].mxu0
        %v814 = vadd.f32 0.0, %v813
        %815 = vmatprep.mubr.f32.mxu0 0.0
        %816 = vmatmul.mubr.f32.gmra.mrb[0].mxu0 %v737
        %v817 = vpop.f32.mrb[0].mxu0
        %v818 = vadd.f32 0.0, %v817
        %v819 = vpop.f32.mrb[0].mxu0
        %v820 = vadd.f32 0.0, %v819
        %821 = vmatprep.mubr.f32.mxu0 0.0
        %822 = vmatmul.mubr.f32.gmra.mrb[0].mxu0 %v740
        %v823 = vpop.f32.mrb[0].mxu0
        %v824 = vadd.f32 0.0, %v823
        %v825 = vpop.f32.mrb[0].mxu0
        %v826 = vadd.f32 0.0, %v825
        %827 = vmatprep.mubr.f32.mxu0 0.0
        %828 = vmatmul.mubr.f32.gmra.mrb[0].mxu0 %v743
        %v829 = vpop.f32.mrb[0].mxu0
        %v830 = vadd.f32 0.0, %v829
        %v831 = vpop.f32.mrb[0].mxu0
        %v832 = vadd.f32 0.0, %v831
        %833 = vdwg.mxu0
        %v834 = vadd.f32 %v698, %v812
        %v835 = vadd.f32 %v700, %v814
        %v836 = vadd.f32 %v704, %v818
        %v837 = vadd.f32 %v706, %v820
        %v838 = vadd.f32 %v710, %v824
        %v839 = vadd.f32 %v712, %v826
        %v840 = vadd.f32 %v716, %v830
        %v841 = vadd.f32 %v718, %v832
        %v842 = vld [vmem:[%s491 + $0x3] sm:$0xff]
        %v843 = vld [vmem:[%s491 + $0xb] sm:$0xff]
        %v844 = vld [vmem:[%s491 + $0x13] sm:$0xff]
        %v845 = vld [vmem:[%s491 + $0x1b] sm:$0xf]
        %s846 = scalar_lea.vmem %s1, 192
        %v847 = vld [vmem:[%s846] sm:$0xff]
        %v848 = vld [vmem:[%s846 + $0x8] sm:$0xff]
        %v849 = vld [vmem:[%s846 + $0x10] sm:$0xff]
        %v850 = vld [vmem:[%s846 + $0x18] sm:$0xff]
        %v851 = vld [vmem:[%s846 + $0x20] sm:$0xff]
        %v852 = vld [vmem:[%s846 + $0x28] sm:$0xff]
        %v853 = vld [vmem:[%s846 + $0x30] sm:$0xff]
        %v854 = vld [vmem:[%s846 + $0x38] sm:$0xff]
        %v856 = vsel %vm517, %v842, 0
        %v859 = vsel %vm517, %v843, 0
        %v862 = vsel %vm517, %v844, 0
        %v865 = vsel %vm517, %v845, 0
        %867 = vmatprep.subr.mxu0 %v848
        %868 = vmatpush1.msra.mxu0 %v847
        %869 = vmatprep.subr.mxu0 %v850
        %870 = vmatpush1.msra.mxu0 %v849
        %871 = vmatprep.subr.mxu0 %v852
        %872 = vmatpush1.msra.mxu0 %v851
        %873 = vmatprep.subr.mxu0 %v854
        %874 = vmatpush1.msra.mxu0 %v853
        %875 = vmatprep.subr.mxu0 0.0
        %876 = vmatpush1.msra.mxu0 0.0
        %877 = vmatprep.subr.mxu0 0.0
        %878 = vmatpush1.msra.mxu0 0.0
        %879 = vmatprep.subr.mxu0 0.0
        %880 = vmatpush1.msra.mxu0 0.0
        %881 = vmatprep.subr.mxu0 0.0
        %882 = vmatpush1.msra.mxu0 0.0
        %883 = vmatprep.subr.mxu0 0.0
        %884 = vmatpush1.msra.mxu0 0.0
        %885 = vmatprep.subr.mxu0 0.0
        %886 = vmatpush1.msra.mxu0 0.0
        %887 = vmatprep.subr.mxu0 0.0
        %888 = vmatpush1.msra.mxu0 0.0
        %889 = vmatprep.subr.mxu0 0.0
        %890 = vmatpush1.msra.mxu0 0.0
        %891 = vmatprep.subr.mxu0 0.0
        %892 = vmatpush1.msra.mxu0 0.0
        %893 = vmatprep.subr.mxu0 0.0
        %894 = vmatpush1.msra.mxu0 0.0
        %895 = vmatprep.subr.mxu0 0.0
        %896 = vmatpush1.msra.mxu0 0.0
        %897 = vmatprep.subr.mxu0 0.0
        %898 = vmatpush1.msra.mxu0 0.0
        %899 = vmatprep.subr.mxu0 0.0
        %900 = vmatpush1.msra.mxu0 0.0
        %901 = vmatprep.subr.mxu0 0.0
        %902 = vmatpush1.msra.mxu0 0.0
        %903 = vmatprep.subr.mxu0 0.0
        %904 = vmatpush1.msra.mxu0 0.0
        %905 = vmatprep.subr.mxu0 0.0
        %906 = vmatpush1.msra.mxu0 0.0
        %907 = vmatprep.subr.mxu0 0.0
        %908 = vmatpush1.msra.mxu0 0.0
        %909 = vmatprep.subr.mxu0 0.0
        %910 = vmatpush1.msra.mxu0 0.0
        %911 = vmatprep.subr.mxu0 0.0
        %912 = vmatpush1.msra.mxu0 0.0
        %913 = vmatprep.subr.mxu0 0.0
        %914 = vmatpush1.msra.mxu0 0.0
        %915 = vmatprep.subr.mxu0 0.0
        %916 = vmatpush1.msra.mxu0 0.0
        %917 = vmatprep.subr.mxu0 0.0
        %918 = vmatpush1.msra.mxu0 0.0
        %919 = vmatprep.subr.mxu0 0.0
        %920 = vmatpush1.msra.mxu0 0.0
        %921 = vmatprep.subr.mxu0 0.0
        %922 = vmatpush1.msra.mxu0 0.0
        %923 = vmatprep.subr.mxu0 0.0
        %924 = vmatpush1.msra.mxu0 0.0
        %925 = vmatprep.subr.mxu0 0.0
        %926 = vmatpush1.msra.mxu0 0.0
        %927 = vmatprep.subr.mxu0 0.0
        %928 = vmatpush1.msra.mxu0 0.0
        %929 = vmatprep.subr.mxu0 0.0
        %930 = vmatpush1.msra.mxu0 0.0
        %931 = vmatprep.mubr.f32.mxu0 0.0
        %932 = vmatmul.mubr.f32.gmra.mrb[0].mxu0 %v856
        %v933 = vpop.f32.mrb[0].mxu0
        %v934 = vadd.f32 0.0, %v933
        %v935 = vpop.f32.mrb[0].mxu0
        %v936 = vadd.f32 0.0, %v935
        %937 = vmatprep.mubr.f32.mxu0 0.0
        %938 = vmatmul.mubr.f32.gmra.mrb[0].mxu0 %v859
        %v939 = vpop.f32.mrb[0].mxu0
        %v940 = vadd.f32 0.0, %v939
        %v941 = vpop.f32.mrb[0].mxu0
        %v942 = vadd.f32 0.0, %v941
        %943 = vmatprep.mubr.f32.mxu0 0.0
        %944 = vmatmul.mubr.f32.gmra.mrb[0].mxu0 %v862
        %v945 = vpop.f32.mrb[0].mxu0
        %v946 = vadd.f32 0.0, %v945
        %v947 = vpop.f32.mrb[0].mxu0
        %v948 = vadd.f32 0.0, %v947
        %949 = vmatprep.mubr.f32.mxu0 0.0
        %950 = vmatmul.mubr.f32.gmra.mrb[0].mxu0 %v865
        %v951 = vpop.f32.mrb[0].mxu0
        %v952 = vadd.f32 0.0, %v951
        %v953 = vpop.f32.mrb[0].mxu0
        %v954 = vadd.f32 0.0, %v953
        %955 = vdwg.mxu0
        %v956 = vadd.f32 %v834, %v934
        %v957 = vadd.f32 %v835, %v936
        %v958 = vadd.f32 %v836, %v940
        %v959 = vadd.f32 %v837, %v942
        %v960 = vadd.f32 %v838, %v946
        %v961 = vadd.f32 %v839, %v948
        %v962 = vadd.f32 %v840, %v952
        %v963 = vadd.f32 %v841, %v954
        %v964 = vld [vmem:[%s491 + $0x4] sm:$0xff]
        %v965 = vld [vmem:[%s491 + $0xc] sm:$0xff]
        %v966 = vld [vmem:[%s491 + $0x14] sm:$0xff]
        %v967 = vld [vmem:[%s491 + $0x1c] sm:$0xf]
        %s968 = scalar_lea.vmem %s1, 256
        %v969 = vld [vmem:[%s968] sm:$0xff]
        %v970 = vld [vmem:[%s968 + $0x8] sm:$0xff]
        %v971 = vld [vmem:[%s968 + $0x10] sm:$0xff]
        %v972 = vld [vmem:[%s968 + $0x18] sm:$0xff]
        %v973 = vld [vmem:[%s968 + $0x20] sm:$0xff]
        %v974 = vld [vmem:[%s968 + $0x28] sm:$0xff]
        %v975 = vld [vmem:[%s968 + $0x30] sm:$0xff]
        %v976 = vld [vmem:[%s968 + $0x38] sm:$0xff]
        %v978 = vsel %vm517, %v964, 0
        %v981 = vsel %vm517, %v965, 0
        %v984 = vsel %vm517, %v966, 0
        %v987 = vsel %vm517, %v967, 0
        %989 = vmatprep.subr.mxu0 %v970
        %990 = vmatpush1.msra.mxu0 %v969
        %991 = vmatprep.subr.mxu0 %v972
        %992 = vmatpush1.msra.mxu0 %v971
        %993 = vmatprep.subr.mxu0 %v974
        %994 = vmatpush1.msra.mxu0 %v973
        %995 = vmatprep.subr.mxu0 %v976
        %996 = vmatpush1.msra.mxu0 %v975
        %997 = vmatprep.subr.mxu0 0.0
        %998 = vmatpush1.msra.mxu0 0.0
        %999 = vmatprep.subr.mxu0 0.0
        %1000 = vmatpush1.msra.mxu0 0.0
        %1001 = vmatprep.subr.mxu0 0.0
        %1002 = vmatpush1.msra.mxu0 0.0
        %1003 = vmatprep.subr.mxu0 0.0
        %1004 = vmatpush1.msra.mxu0 0.0
        %1005 = vmatprep.subr.mxu0 0.0
        %1006 = vmatpush1.msra.mxu0 0.0
        %1007 = vmatprep.subr.mxu0 0.0
        %1008 = vmatpush1.msra.mxu0 0.0
        %1009 = vmatprep.subr.mxu0 0.0
        %1010 = vmatpush1.msra.mxu0 0.0
        %1011 = vmatprep.subr.mxu0 0.0
        %1012 = vmatpush1.msra.mxu0 0.0
        %1013 = vmatprep.subr.mxu0 0.0
        %1014 = vmatpush1.msra.mxu0 0.0
        %1015 = vmatprep.subr.mxu0 0.0
        %1016 = vmatpush1.msra.mxu0 0.0
        %1017 = vmatprep.subr.mxu0 0.0
        %1018 = vmatpush1.msra.mxu0 0.0
        %1019 = vmatprep.subr.mxu0 0.0
        %1020 = vmatpush1.msra.mxu0 0.0
        %1021 = vmatprep.subr.mxu0 0.0
        %1022 = vmatpush1.msra.mxu0 0.0
        %1023 = vmatprep.subr.mxu0 0.0
        %1024 = vmatpush1.msra.mxu0 0.0
        %1025 = vmatprep.subr.mxu0 0.0
        %1026 = vmatpush1.msra.mxu0 0.0
        %1027 = vmatprep.subr.mxu0 0.0
        %1028 = vmatpush1.msra.mxu0 0.0
        %1029 = vmatprep.subr.mxu0 0.0
        %1030 = vmatpush1.msra.mxu0 0.0
        %1031 = vmatprep.subr.mxu0 0.0
        %1032 = vmatpush1.msra.mxu0 0.0
        %1033 = vmatprep.subr.mxu0 0.0
        %1034 = vmatpush1.msra.mxu0 0.0
        %1035 = vmatprep.subr.mxu0 0.0
        %1036 = vmatpush1.msra.mxu0 0.0
        %1037 = vmatprep.subr.mxu0 0.0
        %1038 = vmatpush1.msra.mxu0 0.0
        %1039 = vmatprep.subr.mxu0 0.0
        %1040 = vmatpush1.msra.mxu0 0.0
        %1041 = vmatprep.subr.mxu0 0.0
        %1042 = vmatpush1.msra.mxu0 0.0
        %1043 = vmatprep.subr.mxu0 0.0
        %1044 = vmatpush1.msra.mxu0 0.0
        %1045 = vmatprep.subr.mxu0 0.0
        %1046 = vmatpush1.msra.mxu0 0.0
        %1047 = vmatprep.subr.mxu0 0.0
        %1048 = vmatpush1.msra.mxu0 0.0
        %1049 = vmatprep.subr.mxu0 0.0
        %1050 = vmatpush1.msra.mxu0 0.0
        %1051 = vmatprep.subr.mxu0 0.0
        %1052 = vmatpush1.msra.mxu0 0.0
        %1053 = vmatprep.mubr.f32.mxu0 0.0
        %1054 = vmatmul.mubr.f32.gmra.mrb[0].mxu0 %v978
        %v1055 = vpop.f32.mrb[0].mxu0
        %v1056 = vadd.f32 0.0, %v1055
        %v1057 = vpop.f32.mrb[0].mxu0
        %v1058 = vadd.f32 0.0, %v1057
        %1059 = vmatprep.mubr.f32.mxu0 0.0
        %1060 = vmatmul.mubr.f32.gmra.mrb[0].mxu0 %v981
        %v1061 = vpop.f32.mrb[0].mxu0
        %v1062 = vadd.f32 0.0, %v1061
        %v1063 = vpop.f32.mrb[0].mxu0
        %v1064 = vadd.f32 0.0, %v1063
        %1065 = vmatprep.mubr.f32.mxu0 0.0
        %1066 = vmatmul.mubr.f32.gmra.mrb[0].mxu0 %v984
        %v1067 = vpop.f32.mrb[0].mxu0
        %v1068 = vadd.f32 0.0, %v1067
        %v1069 = vpop.f32.mrb[0].mxu0
        %v1070 = vadd.f32 0.0, %v1069
        %1071 = vmatprep.mubr.f32.mxu0 0.0
        %1072 = vmatmul.mubr.f32.gmra.mrb[0].mxu0 %v987
        %v1073 = vpop.f32.mrb[0].mxu0
        %v1074 = vadd.f32 0.0, %v1073
        %v1075 = vpop.f32.mrb[0].mxu0
        %v1076 = vadd.f32 0.0, %v1075
        %1077 = vdwg.mxu0
        %v1078 = vadd.f32 %v956, %v1056
        %v1079 = vadd.f32 %v957, %v1058
        %v1080 = vadd.f32 %v958, %v1062
        %v1081 = vadd.f32 %v959, %v1064
        %v1082 = vadd.f32 %v960, %v1068
        %v1083 = vadd.f32 %v961, %v1070
        %v1084 = vadd.f32 %v962, %v1074
        %v1085 = vadd.f32 %v963, %v1076
        %v1086 = vld [vmem:[%s2] sm:$0x3]
        %v1088 = vlaneseq
        %v1089 = vshrl.u32 %v1088, 7
        %v1090 = vsub.s32 0, %v1089
        %v1091 = vrot.slane %v1086, %v1090
        %v1092 = vlaneseq
        %v1093 = vshrl.u32 %v1092, 7
        %v1094 = vsub.s32 1, %v1093
        %v1095 = vrot.slane %v1086, %v1094
        %v1098 = vadd.f32 %v1078, %v1091
        %v1099 = vadd.f32 %v1079, %v1095
        %v1100 = vadd.f32 %v1080, %v1091
        %v1101 = vadd.f32 %v1081, %v1095
        %v1102 = vadd.f32 %v1082, %v1091
        %v1103 = vadd.f32 %v1083, %v1095
        %v1104 = vadd.f32 %v1084, %v1091
        %v1105 = vadd.f32 %v1085, %v1095
        %v1106 = vmax.f32 %v1098, 0.0
        %v1107 = vmax.f32 %v1099, 0.0
        %v1108 = vmax.f32 %v1100, 0.0
        %v1109 = vmax.f32 %v1101, 0.0
        %v1110 = vmax.f32 %v1102, 0.0
        %v1111 = vmax.f32 %v1103, 0.0
        %v1112 = vmax.f32 %v1104, 0.0
        %v1113 = vmax.f32 %v1105, 0.0
        %v1114 = vld [vmem:[%s3] sm:$0xff]
        %v1115 = vld [vmem:[%s3 + $0x8] sm:$0xff]
        %v1116 = vld [vmem:[%s3 + $0x10] sm:$0xff]
        %v1117 = vld [vmem:[%s3 + $0x18] sm:$0xff]
        %v1118 = vld [vmem:[%s3 + $0x20] sm:$0xff]
        %v1119 = vld [vmem:[%s3 + $0x28] sm:$0xff]
        %v1120 = vld [vmem:[%s3 + $0x30] sm:$0xff]
        %v1121 = vld [vmem:[%s3 + $0x38] sm:$0xff]
        %v1122 = vld [vmem:[%s3 + $0x40] sm:$0xff]
        %v1123 = vld [vmem:[%s3 + $0x48] sm:$0xff]
        %v1124 = vld [vmem:[%s3 + $0x50] sm:$0xff]
        %v1125 = vld [vmem:[%s3 + $0x58] sm:$0xff]
        %v1126 = vld [vmem:[%s3 + $0x60] sm:$0xff]
        %v1127 = vld [vmem:[%s3 + $0x68] sm:$0xff]
        %v1128 = vld [vmem:[%s3 + $0x70] sm:$0xff]
        %v1129 = vld [vmem:[%s3 + $0x78] sm:$0xff]
        %v1130 = vld [vmem:[%s3 + $0x80] sm:$0xff]
        %v1131 = vld [vmem:[%s3 + $0x88] sm:$0xff]
        %v1132 = vld [vmem:[%s3 + $0x90] sm:$0xff]
        %v1133 = vld [vmem:[%s3 + $0x98] sm:$0xff]
        %v1134 = vld [vmem:[%s3 + $0xa0] sm:$0xff]
        %vm1135 = vcmask 326656
        %v1137 = vsel %vm1135, %v1107, 0
        %v1140 = vsel %vm1135, %v1109, 0
        %v1143 = vsel %vm1135, %v1111, 0
        %v1146 = vsel %vm1135, %v1113, 0
        %1148 = vmatprep.subr.mxu0 0.0
        %1149 = vmatpush1.msra.mxu0 %v1114
        %1150 = vmatprep.subr.mxu0 0.0
        %1151 = vmatpush1.msra.mxu0 %v1115
        %1152 = vmatprep.subr.mxu0 0.0
        %1153 = vmatpush1.msra.mxu0 %v1116
        %1154 = vmatprep.subr.mxu0 0.0
        %1155 = vmatpush1.msra.mxu0 %v1117
        %1156 = vmatprep.subr.mxu0 0.0
        %1157 = vmatpush1.msra.mxu0 %v1118
        %1158 = vmatprep.subr.mxu0 0.0
        %1159 = vmatpush1.msra.mxu0 %v1119
        %1160 = vmatprep.subr.mxu0 0.0
        %1161 = vmatpush1.msra.mxu0 %v1120
        %1162 = vmatprep.subr.mxu0 0.0
        %1163 = vmatpush1.msra.mxu0 %v1121
        %1164 = vmatprep.subr.mxu0 0.0
        %1165 = vmatpush1.msra.mxu0 %v1122
        %1166 = vmatprep.subr.mxu0 0.0
        %1167 = vmatpush1.msra.mxu0 %v1123
        %1168 = vmatprep.subr.mxu0 0.0
        %1169 = vmatpush1.msra.mxu0 %v1124
        %1170 = vmatprep.subr.mxu0 0.0
        %1171 = vmatpush1.msra.mxu0 %v1125
        %1172 = vmatprep.subr.mxu0 0.0
        %1173 = vmatpush1.msra.mxu0 %v1126
        %1174 = vmatprep.subr.mxu0 0.0
        %1175 = vmatpush1.msra.mxu0 %v1127
        %1176 = vmatprep.subr.mxu0 0.0
        %1177 = vmatpush1.msra.mxu0 %v1128
        %1178 = vmatprep.subr.mxu0 0.0
        %1179 = vmatpush1.msra.mxu0 %v1129
        %1180 = vmatprep.subr.mxu0 0.0
        %1181 = vmatpush1.msra.mxu0 %v1130
        %1182 = vmatprep.subr.mxu0 0.0
        %1183 = vmatpush1.msra.mxu0 %v1131
        %1184 = vmatprep.subr.mxu0 0.0
        %1185 = vmatpush1.msra.mxu0 %v1132
        %1186 = vmatprep.subr.mxu0 0.0
        %1187 = vmatpush1.msra.mxu0 %v1133
        %1188 = vmatprep.subr.mxu0 0.0
        %1189 = vmatpush1.msra.mxu0 %v1134
        %1190 = vmatprep.subr.mxu0 0.0
        %1191 = vmatpush1.msra.mxu0 0.0
        %1192 = vmatprep.subr.mxu0 0.0
        %1193 = vmatpush1.msra.mxu0 0.0
        %1194 = vmatprep.subr.mxu0 0.0
        %1195 = vmatpush1.msra.mxu0 0.0
        %1196 = vmatprep.subr.mxu0 0.0
        %1197 = vmatpush1.msra.mxu0 0.0
        %1198 = vmatprep.subr.mxu0 0.0
        %1199 = vmatpush1.msra.mxu0 0.0
        %1200 = vmatprep.subr.mxu0 0.0
        %1201 = vmatpush1.msra.mxu0 0.0
        %1202 = vmatprep.subr.mxu0 0.0
        %1203 = vmatpush1.msra.mxu0 0.0
        %1204 = vmatprep.subr.mxu0 0.0
        %1205 = vmatpush1.msra.mxu0 0.0
        %1206 = vmatprep.subr.mxu0 0.0
        %1207 = vmatpush1.msra.mxu0 0.0
        %1208 = vmatprep.subr.mxu0 0.0
        %1209 = vmatpush1.msra.mxu0 0.0
        %1210 = vmatprep.subr.mxu0 0.0
        %1211 = vmatpush1.msra.mxu0 0.0
        %1212 = vmatprep.mubr.f32.mxu0 %v1137
        %1213 = vmatmul.mubr.f32.gmra.mrb[0].mxu0 %v1106
        %v1214 = vpop.f32.mrb[0].mxu0
        %v1215 = vadd.f32 0.0, %v1214
        %v1216 = vpop.f32.mrb[0].mxu0
        %1217 = vmatprep.mubr.f32.mxu0 %v1140
        %1218 = vmatmul.mubr.f32.gmra.mrb[0].mxu0 %v1108
        %v1219 = vpop.f32.mrb[0].mxu0
        %v1220 = vadd.f32 0.0, %v1219
        %v1221 = vpop.f32.mrb[0].mxu0
        %1222 = vmatprep.mubr.f32.mxu0 %v1143
        %1223 = vmatmul.mubr.f32.gmra.mrb[0].mxu0 %v1110
        %v1224 = vpop.f32.mrb[0].mxu0
        %v1225 = vadd.f32 0.0, %v1224
        %v1226 = vpop.f32.mrb[0].mxu0
        %1227 = vmatprep.mubr.f32.mxu0 %v1146
        %1228 = vmatmul.mubr.f32.gmra.mrb[0].mxu0 %v1112
        %v1229 = vpop.f32.mrb[0].mxu0
        %v1230 = vadd.f32 0.0, %v1229
        %v1231 = vpop.f32.mrb[0].mxu0
        %1232 = vdwg.mxu0
        %s1233 = scalar_lea.vmem %s3, 168
        %v1234 = vld [vmem:[%s1233] sm:$0xff]
        %v1235 = vld [vmem:[%s1233 + $0x8] sm:$0xff]
        %v1236 = vld [vmem:[%s1233 + $0x10] sm:$0xff]
        %v1237 = vld [vmem:[%s1233 + $0x18] sm:$0xff]
        %v1238 = vld [vmem:[%s1233 + $0x20] sm:$0xff]
        %v1239 = vld [vmem:[%s1233 + $0x28] sm:$0xff]
        %v1240 = vld [vmem:[%s1233 + $0x30] sm:$0xff]
        %v1241 = vld [vmem:[%s1233 + $0x38] sm:$0xff]
        %v1242 = vld [vmem:[%s1233 + $0x40] sm:$0xff]
        %v1243 = vld [vmem:[%s1233 + $0x48] sm:$0xff]
        %v1244 = vld [vmem:[%s1233 + $0x50] sm:$0xff]
        %v1245 = vld [vmem:[%s1233 + $0x58] sm:$0xff]
        %v1246 = vld [vmem:[%s1233 + $0x60] sm:$0xff]
        %v1247 = vld [vmem:[%s1233 + $0x68] sm:$0xff]
        %v1248 = vld [vmem:[%s1233 + $0x70] sm:$0xff]
        %v1249 = vld [vmem:[%s1233 + $0x78] sm:$0xff]
        %v1250 = vld [vmem:[%s1233 + $0x80] sm:$0xff]
        %v1251 = vld [vmem:[%s1233 + $0x88] sm:$0xff]
        %v1252 = vld [vmem:[%s1233 + $0x90] sm:$0xff]
        %v1253 = vld [vmem:[%s1233 + $0x98] sm:$0xff]
        %v1254 = vld [vmem:[%s1233 + $0xa0] sm:$0xff]
        %1255 = vmatprep.subr.mxu0 0.0
        %1256 = vmatpush1.msra.mxu0 %v1234
        %1257 = vmatprep.subr.mxu0 0.0
        %1258 = vmatpush1.msra.mxu0 %v1235
        %1259 = vmatprep.subr.mxu0 0.0
        %1260 = vmatpush1.msra.mxu0 %v1236
        %1261 = vmatprep.subr.mxu0 0.0
        %1262 = vmatpush1.msra.mxu0 %v1237
        %1263 = vmatprep.subr.mxu0 0.0
        %1264 = vmatpush1.msra.mxu0 %v1238
        %1265 = vmatprep.subr.mxu0 0.0
        %1266 = vmatpush1.msra.mxu0 %v1239
        %1267 = vmatprep.subr.mxu0 0.0
        %1268 = vmatpush1.msra.mxu0 %v1240
        %1269 = vmatprep.subr.mxu0 0.0
        %1270 = vmatpush1.msra.mxu0 %v1241
        %1271 = vmatprep.subr.mxu0 0.0
        %1272 = vmatpush1.msra.mxu0 %v1242
        %1273 = vmatprep.subr.mxu0 0.0
        %1274 = vmatpush1.msra.mxu0 %v1243
        %1275 = vmatprep.subr.mxu0 0.0
        %1276 = vmatpush1.msra.mxu0 %v1244
        %1277 = vmatprep.subr.mxu0 0.0
        %1278 = vmatpush1.msra.mxu0 %v1245
        %1279 = vmatprep.subr.mxu0 0.0
        %1280 = vmatpush1.msra.mxu0 %v1246
        %1281 = vmatprep.subr.mxu0 0.0
        %1282 = vmatpush1.msra.mxu0 %v1247
        %1283 = vmatprep.subr.mxu0 0.0
        %1284 = vmatpush1.msra.mxu0 %v1248
        %1285 = vmatprep.subr.mxu0 0.0
        %1286 = vmatpush1.msra.mxu0 %v1249
        %1287 = vmatprep.subr.mxu0 0.0
        %1288 = vmatpush1.msra.mxu0 %v1250
        %1289 = vmatprep.subr.mxu0 0.0
        %1290 = vmatpush1.msra.mxu0 %v1251
        %1291 = vmatprep.subr.mxu0 0.0
        %1292 = vmatpush1.msra.mxu0 %v1252
        %1293 = vmatprep.subr.mxu0 0.0
        %1294 = vmatpush1.msra.mxu0 %v1253
        %1295 = vmatprep.subr.mxu0 0.0
        %1296 = vmatpush1.msra.mxu0 %v1254
        %1297 = vmatprep.subr.mxu0 0.0
        %1298 = vmatpush1.msra.mxu0 0.0
        %1299 = vmatprep.subr.mxu0 0.0
        %1300 = vmatpush1.msra.mxu0 0.0
        %1301 = vmatprep.subr.mxu0 0.0
        %1302 = vmatpush1.msra.mxu0 0.0
        %1303 = vmatprep.subr.mxu0 0.0
        %1304 = vmatpush1.msra.mxu0 0.0
        %1305 = vmatprep.subr.mxu0 0.0
        %1306 = vmatpush1.msra.mxu0 0.0
        %1307 = vmatprep.subr.mxu0 0.0
        %1308 = vmatpush1.msra.mxu0 0.0
        %1309 = vmatprep.subr.mxu0 0.0
        %1310 = vmatpush1.msra.mxu0 0.0
        %1311 = vmatprep.subr.mxu0 0.0
        %1312 = vmatpush1.msra.mxu0 0.0
        %1313 = vmatprep.subr.mxu0 0.0
        %1314 = vmatpush1.msra.mxu0 0.0
        %1315 = vmatprep.subr.mxu0 0.0
        %1316 = vmatpush1.msra.mxu0 0.0
        %1317 = vmatprep.subr.mxu0 0.0
        %1318 = vmatpush1.msra.mxu0 0.0
        %1319 = vmatprep.mubr.f32.mxu0 %v1137
        %1320 = vmatmul.mubr.f32.gmra.mrb[0].mxu0 %v1106
        %v1321 = vpop.f32.mrb[0].mxu0
        %v1322 = vadd.f32 0.0, %v1321
        %v1323 = vpop.f32.mrb[0].mxu0
        %1324 = vmatprep.mubr.f32.mxu0 %v1140
        %1325 = vmatmul.mubr.f32.gmra.mrb[0].mxu0 %v1108
        %v1326 = vpop.f32.mrb[0].mxu0
        %v1327 = vadd.f32 0.0, %v1326
        %v1328 = vpop.f32.mrb[0].mxu0
        %1329 = vmatprep.mubr.f32.mxu0 %v1143
        %1330 = vmatmul.mubr.f32.gmra.mrb[0].mxu0 %v1110
        %v1331 = vpop.f32.mrb[0].mxu0
        %v1332 = vadd.f32 0.0, %v1331
        %v1333 = vpop.f32.mrb[0].mxu0
        %1334 = vmatprep.mubr.f32.mxu0 %v1146
        %1335 = vmatmul.mubr.f32.gmra.mrb[0].mxu0 %v1112
        %v1336 = vpop.f32.mrb[0].mxu0
        %v1337 = vadd.f32 0.0, %v1336
        %v1338 = vpop.f32.mrb[0].mxu0
        %1339 = vdwg.mxu0
        %v1340 = vmax.f32 %v1215, %v1322
        %v1341 = vmax.f32 %v1220, %v1327
        %v1342 = vmax.f32 %v1225, %v1332
        %v1343 = vmax.f32 %v1230, %v1337
        %v1344 = vld [vmem:[%s4] sm:$0xff]
        %v1345 = vld [vmem:[%s4 + $0x8] sm:$0x3f]
        %vm1346 = vcmask 228352
        %v1348 = vsel %vm1346, %v1344, 0
        %v1351 = vsel %vm1346, %v1345, 0
        %vm1353 = vcmask 1043456
        %v1355 = vsel %vm1353, %v1343, 0
        %1357 = vmatprep.subr.mxu0 0.0
        %1358 = vmatpush1.msra.mxu0 %v1340
        %1359 = vmatprep.subr.mxu0 0.0
        %1360 = vmatpush1.msra.mxu0 %v1341
        %1361 = vmatprep.subr.mxu0 0.0
        %1362 = vmatpush1.msra.mxu0 %v1342
        %1363 = vmatprep.subr.mxu0 0.0
        %1364 = vmatpush1.msra.mxu0 %v1355
        %1365 = vmatprep.subr.mxu0 0.0
        %1366 = vmatpush1.msra.mxu0 0.0
        %1367 = vmatprep.subr.mxu0 0.0
        %1368 = vmatpush1.msra.mxu0 0.0
        %1369 = vmatprep.subr.mxu0 0.0
        %1370 = vmatpush1.msra.mxu0 0.0
        %1371 = vmatprep.subr.mxu0 0.0
        %1372 = vmatpush1.msra.mxu0 0.0
        %1373 = vmatprep.subr.mxu0 0.0
        %1374 = vmatpush1.msra.mxu0 0.0
        %1375 = vmatprep.subr.mxu0 0.0
        %1376 = vmatpush1.msra.mxu0 0.0
        %1377 = vmatprep.subr.mxu0 0.0
        %1378 = vmatpush1.msra.mxu0 0.0
        %1379 = vmatprep.subr.mxu0 0.0
        %1380 = vmatpush1.msra.mxu0 0.0
        %1381 = vmatprep.subr.mxu0 0.0
        %1382 = vmatpush1.msra.mxu0 0.0
        %1383 = vmatprep.subr.mxu0 0.0
        %1384 = vmatpush1.msra.mxu0 0.0
        %1385 = vmatprep.subr.mxu0 0.0
        %1386 = vmatpush1.msra.mxu0 0.0
        %1387 = vmatprep.subr.mxu0 0.0
        %1388 = vmatpush1.msra.mxu0 0.0
        %1389 = vmatprep.subr.mxu0 0.0
        %1390 = vmatpush1.msra.mxu0 0.0
        %1391 = vmatprep.subr.mxu0 0.0
        %1392 = vmatpush1.msra.mxu0 0.0
        %1393 = vmatprep.subr.mxu0 0.0
        %1394 = vmatpush1.msra.mxu0 0.0
        %1395 = vmatprep.subr.mxu0 0.0
        %1396 = vmatpush1.msra.mxu0 0.0
        %1397 = vmatprep.subr.mxu0 0.0
        %1398 = vmatpush1.msra.mxu0 0.0
        %1399 = vmatprep.subr.mxu0 0.0
        %1400 = vmatpush1.msra.mxu0 0.0
        %1401 = vmatprep.subr.mxu0 0.0
        %1402 = vmatpush1.msra.mxu0 0.0
        %1403 = vmatprep.subr.mxu0 0.0
        %1404 = vmatpush1.msra.mxu0 0.0
        %1405 = vmatprep.subr.mxu0 0.0
        %1406 = vmatpush1.msra.mxu0 0.0
        %1407 = vmatprep.subr.mxu0 0.0
        %1408 = vmatpush1.msra.mxu0 0.0
        %1409 = vmatprep.subr.mxu0 0.0
        %1410 = vmatpush1.msra.mxu0 0.0
        %1411 = vmatprep.subr.mxu0 0.0
        %1412 = vmatpush1.msra.mxu0 0.0
        %1413 = vmatprep.subr.mxu0 0.0
        %1414 = vmatpush1.msra.mxu0 0.0
        %1415 = vmatprep.subr.mxu0 0.0
        %1416 = vmatpush1.msra.mxu0 0.0
        %1417 = vmatprep.subr.mxu0 0.0
        %1418 = vmatpush1.msra.mxu0 0.0
        %1419 = vmatprep.subr.mxu0 0.0
        %1420 = vmatpush1.msra.mxu0 0.0
        %1421 = vmatprep.mubr.f32.mxu0 0.0
        %1422 = vmatmul.mubr.f32.gmra.mrb[0].mxu0 %v1348
        %v1423 = vpop.f32.mrb[0].mxu0
        %v1424 = vadd.f32 0.0, %v1423
        %v1425 = vpop.f32.mrb[0].mxu0
        %1426 = vmatprep.mubr.f32.mxu0 0.0
        %1427 = vmatmul.mubr.f32.gmra.mrb[0].mxu0 %v1351
        %v1428 = vpop.f32.mrb[0].mxu0
        %v1429 = vadd.f32 0.0, %v1428
        %v1430 = vpop.f32.mrb[0].mxu0
        %1431 = vdwg.mxu0
        %s1432 = scalar_lea.vmem %s4, 16
        %v1433 = vld [vmem:[%s1432] sm:$0xff]
        %v1434 = vld [vmem:[%s1432 + $0x8] sm:$0x3f]
        %v1436 = vsel %vm1346, %v1433, 0
        %v1439 = vsel %vm1346, %v1434, 0
        %1441 = vmatprep.subr.mxu0 0.0
        %1442 = vmatpush1.msra.mxu0 %v1340
        %1443 = vmatprep.subr.mxu0 0.0
        %1444 = vmatpush1.msra.mxu0 %v1341
        %1445 = vmatprep.subr.mxu0 0.0
        %1446 = vmatpush1.msra.mxu0 %v1342
        %1447 = vmatprep.subr.mxu0 0.0
        %1448 = vmatpush1.msra.mxu0 %v1355
        %1449 = vmatprep.subr.mxu0 0.0
        %1450 = vmatpush1.msra.mxu0 0.0
        %1451 = vmatprep.subr.mxu0 0.0
        %1452 = vmatpush1.msra.mxu0 0.0
        %1453 = vmatprep.subr.mxu0 0.0
        %1454 = vmatpush1.msra.mxu0 0.0
        %1455 = vmatprep.subr.mxu0 0.0
        %1456 = vmatpush1.msra.mxu0 0.0
        %1457 = vmatprep.subr.mxu0 0.0
        %1458 = vmatpush1.msra.mxu0 0.0
        %1459 = vmatprep.subr.mxu0 0.0
        %1460 = vmatpush1.msra.mxu0 0.0
        %1461 = vmatprep.subr.mxu0 0.0
        %1462 = vmatpush1.msra.mxu0 0.0
        %1463 = vmatprep.subr.mxu0 0.0
        %1464 = vmatpush1.msra.mxu0 0.0
        %1465 = vmatprep.subr.mxu0 0.0
        %1466 = vmatpush1.msra.mxu0 0.0
        %1467 = vmatprep.subr.mxu0 0.0
        %1468 = vmatpush1.msra.mxu0 0.0
        %1469 = vmatprep.subr.mxu0 0.0
        %1470 = vmatpush1.msra.mxu0 0.0
        %1471 = vmatprep.subr.mxu0 0.0
        %1472 = vmatpush1.msra.mxu0 0.0
        %1473 = vmatprep.subr.mxu0 0.0
        %1474 = vmatpush1.msra.mxu0 0.0
        %1475 = vmatprep.subr.mxu0 0.0
        %1476 = vmatpush1.msra.mxu0 0.0
        %1477 = vmatprep.subr.mxu0 0.0
        %1478 = vmatpush1.msra.mxu0 0.0
        %1479 = vmatprep.subr.mxu0 0.0
        %1480 = vmatpush1.msra.mxu0 0.0
        %1481 = vmatprep.subr.mxu0 0.0
        %1482 = vmatpush1.msra.mxu0 0.0
        %1483 = vmatprep.subr.mxu0 0.0
        %1484 = vmatpush1.msra.mxu0 0.0
        %1485 = vmatprep.subr.mxu0 0.0
        %1486 = vmatpush1.msra.mxu0 0.0
        %1487 = vmatprep.subr.mxu0 0.0
        %1488 = vmatpush1.msra.mxu0 0.0
        %1489 = vmatprep.subr.mxu0 0.0
        %1490 = vmatpush1.msra.mxu0 0.0
        %1491 = vmatprep.subr.mxu0 0.0
        %1492 = vmatpush1.msra.mxu0 0.0
        %1493 = vmatprep.subr.mxu0 0.0
        %1494 = vmatpush1.msra.mxu0 0.0
        %1495 = vmatprep.subr.mxu0 0.0
        %1496 = vmatpush1.msra.mxu0 0.0
        %1497 = vmatprep.subr.mxu0 0.0
        %1498 = vmatpush1.msra.mxu0 0.0
        %1499 = vmatprep.subr.mxu0 0.0
        %1500 = vmatpush1.msra.mxu0 0.0
        %1501 = vmatprep.subr.mxu0 0.0
        %1502 = vmatpush1.msra.mxu0 0.0
        %1503 = vmatprep.subr.mxu0 0.0
        %1504 = vmatpush1.msra.mxu0 0.0
        %1505 = vmatprep.mubr.f32.mxu0 0.0
        %1506 = vmatmul.mubr.f32.gmra.mrb[0].mxu0 %v1436
        %v1507 = vpop.f32.mrb[0].mxu0
        %v1508 = vadd.f32 0.0, %v1507
        %v1509 = vpop.f32.mrb[0].mxu0
        %1510 = vmatprep.mubr.f32.mxu0 0.0
        %1511 = vmatmul.mubr.f32.gmra.mrb[0].mxu0 %v1439
        %v1512 = vpop.f32.mrb[0].mxu0
        %v1513 = vadd.f32 0.0, %v1512
        %v1514 = vpop.f32.mrb[0].mxu0
        %1515 = vdwg.mxu0
        %v1516 = vmax.f32 %v1424, %v1508
        %v1517 = vmax.f32 %v1429, %v1513
        %vm1518 = vcmask 687104
        %1519 = vst.msk [vmem:[#allocation2] sm:$0xff] %vm1518, %v1516
        %vm1520 = vcmask 685056
        %1521 = vst.msk [vmem:[#allocation2 + $0x8] sm:$0x3f] %vm1520, %v1517
        %v1522 = vld [vmem:[#allocation2] sm:$0xff]
        %v1523 = vld [vmem:[#allocation2 + $0x8] sm:$0x3]
        %v1524 = vld [vmem:[%s5] sm:$0xff]
        %v1525 = vld [vmem:[%s5 + $0x8] sm:$0xff]
        %v1526 = vld [vmem:[%s5 + $0x10] sm:$0xff]
        %v1527 = vld [vmem:[%s5 + $0x18] sm:$0xff]
        %v1528 = vld [vmem:[%s5 + $0x20] sm:$0xff]
        %v1529 = vld [vmem:[%s5 + $0x28] sm:$0xff]
        %v1530 = vld [vmem:[%s5 + $0x30] sm:$0xff]
        %v1531 = vld [vmem:[%s5 + $0x38] sm:$0xff]
        %v1532 = vld [vmem:[%s5 + $0x40] sm:$0xff]
        %v1533 = vld [vmem:[%s5 + $0x48] sm:$0xff]
        %v1534 = vld [vmem:[%s5 + $0x50] sm:$0xff]
        %v1535 = vld [vmem:[%s5 + $0x58] sm:$0xff]
        %v1536 = vld [vmem:[%s5 + $0x60] sm:$0xff]
        %v1537 = vld [vmem:[%s5 + $0x68] sm:$0xff]
        %v1538 = vld [vmem:[%s5 + $0x70] sm:$0xff]
        %v1539 = vld [vmem:[%s5 + $0x78] sm:$0xff]
        %v1540 = vld [vmem:[%s5 + $0x80] sm:$0xff]
        %v1541 = vld [vmem:[%s5 + $0x88] sm:$0xff]
        %v1542 = vld [vmem:[%s5 + $0x90] sm:$0xff]
        %v1543 = vld [vmem:[%s5 + $0x98] sm:$0xff]
        %v1544 = vld [vmem:[%s5 + $0xa0] sm:$0xf]
        %v1545 = vld [vmem:[%s5 + $0xa8] sm:$0xf]
        %v1546 = vld [vmem:[#allocation2 + $0x1] sm:$0xff]
        %v1547 = vld [vmem:[#allocation2 + $0x9] sm:$0x3]
        %s1548 = scalar_lea.vmem %s5, 176
        %v1549 = vld [vmem:[%s1548] sm:$0xff]
        %v1550 = vld [vmem:[%s1548 + $0x8] sm:$0xff]
        %v1551 = vld [vmem:[%s1548 + $0x10] sm:$0xff]
        %v1552 = vld [vmem:[%s1548 + $0x18] sm:$0xff]
        %v1553 = vld [vmem:[%s1548 + $0x20] sm:$0xff]
        %v1554 = vld [vmem:[%s1548 + $0x28] sm:$0xff]
        %v1555 = vld [vmem:[%s1548 + $0x30] sm:$0xff]
        %v1556 = vld [vmem:[%s1548 + $0x38] sm:$0xff]
        %v1557 = vld [vmem:[%s1548 + $0x40] sm:$0xff]
        %v1558 = vld [vmem:[%s1548 + $0x48] sm:$0xff]
        %v1559 = vld [vmem:[%s1548 + $0x50] sm:$0xff]
        %v1560 = vld [vmem:[%s1548 + $0x58] sm:$0xff]
        %v1561 = vld [vmem:[%s1548 + $0x60] sm:$0xff]
        %v1562 = vld [vmem:[%s1548 + $0x68] sm:$0xff]
        %v1563 = vld [vmem:[%s1548 + $0x70] sm:$0xff]
        %v1564 = vld [vmem:[%s1548 + $0x78] sm:$0xff]
        %v1565 = vld [vmem:[%s1548 + $0x80] sm:$0xff]
        %v1566 = vld [vmem:[%s1548 + $0x88] sm:$0xff]
        %v1567 = vld [vmem:[%s1548 + $0x90] sm:$0xff]
        %v1568 = vld [vmem:[%s1548 + $0x98] sm:$0xff]
        %v1569 = vld [vmem:[%s1548 + $0xa0] sm:$0xf]
        %v1570 = vld [vmem:[%s1548 + $0xa8] sm:$0xf]
        %v1572 = vsel %vm1518, %v1546, 0
        %v1575 = vsel %vm1518, %v1547, 0
        %v1578 = vsel %vm1353, %v1569, 0
        %v1581 = vsel %vm1353, %v1570, 0
        %1583 = vmatprep.subr.mxu0 %v1550
        %1584 = vmatpush1.msra.mxu0 %v1549
        %1585 = vmatprep.subr.mxu0 %v1552
        %1586 = vmatpush1.msra.mxu0 %v1551
        %1587 = vmatprep.subr.mxu0 %v1554
        %1588 = vmatpush1.msra.mxu0 %v1553
        %1589 = vmatprep.subr.mxu0 %v1556
        %1590 = vmatpush1.msra.mxu0 %v1555
        %1591 = vmatprep.subr.mxu0 %v1558
        %1592 = vmatpush1.msra.mxu0 %v1557
        %1593 = vmatprep.subr.mxu0 %v1560
        %1594 = vmatpush1.msra.mxu0 %v1559
        %1595 = vmatprep.subr.mxu0 %v1562
        %1596 = vmatpush1.msra.mxu0 %v1561
        %1597 = vmatprep.subr.mxu0 %v1564
        %1598 = vmatpush1.msra.mxu0 %v1563
        %1599 = vmatprep.subr.mxu0 %v1566
        %1600 = vmatpush1.msra.mxu0 %v1565
        %1601 = vmatprep.subr.mxu0 %v1568
        %1602 = vmatpush1.msra.mxu0 %v1567
        %1603 = vmatprep.subr.mxu0 %v1581
        %1604 = vmatpush1.msra.mxu0 %v1578
        %1605 = vmatprep.subr.mxu0 0.0
        %1606 = vmatpush1.msra.mxu0 0.0
        %1607 = vmatprep.subr.mxu0 0.0
        %1608 = vmatpush1.msra.mxu0 0.0
        %1609 = vmatprep.subr.mxu0 0.0
        %1610 = vmatpush1.msra.mxu0 0.0
        %1611 = vmatprep.subr.mxu0 0.0
        %1612 = vmatpush1.msra.mxu0 0.0
        %1613 = vmatprep.subr.mxu0 0.0
        %1614 = vmatpush1.msra.mxu0 0.0
        %1615 = vmatprep.subr.mxu0 0.0
        %1616 = vmatpush1.msra.mxu0 0.0
        %1617 = vmatprep.subr.mxu0 0.0
        %1618 = vmatpush1.msra.mxu0 0.0
        %1619 = vmatprep.subr.mxu0 0.0
        %1620 = vmatpush1.msra.mxu0 0.0
        %1621 = vmatprep.subr.mxu0 0.0
        %1622 = vmatpush1.msra.mxu0 0.0
        %1623 = vmatprep.subr.mxu0 0.0
        %1624 = vmatpush1.msra.mxu0 0.0
        %1625 = vmatprep.subr.mxu0 0.0
        %1626 = vmatpush1.msra.mxu0 0.0
        %1627 = vmatprep.subr.mxu0 0.0
        %1628 = vmatpush1.msra.mxu0 0.0
        %1629 = vmatprep.subr.mxu0 0.0
        %1630 = vmatpush1.msra.mxu0 0.0
        %1631 = vmatprep.subr.mxu0 0.0
        %1632 = vmatpush1.msra.mxu0 0.0
        %1633 = vmatprep.subr.mxu0 0.0
        %1634 = vmatpush1.msra.mxu0 0.0
        %1635 = vmatprep.subr.mxu0 0.0
        %1636 = vmatpush1.msra.mxu0 0.0
        %1637 = vmatprep.subr.mxu0 0.0
        %1638 = vmatpush1.msra.mxu0 0.0
        %1639 = vmatprep.subr.mxu0 0.0
        %1640 = vmatpush1.msra.mxu0 0.0
        %1641 = vmatprep.subr.mxu0 0.0
        %1642 = vmatpush1.msra.mxu0 0.0
        %1643 = vmatprep.subr.mxu0 0.0
        %1644 = vmatpush1.msra.mxu0 0.0
        %1645 = vmatprep.subr.mxu0 0.0
        %1646 = vmatpush1.msra.mxu0 0.0
        %1647 = vmatprep.mubr.f32.mxu0 0.0
        %1648 = vmatmul.mubr.f32.gmra.mrb[0].mxu0 %v1572
        %v1649 = vpop.f32.mrb[0].mxu0
        %v1650 = vadd.f32 0.0, %v1649
        %v1651 = vpop.f32.mrb[0].mxu0
        %v1652 = vadd.f32 0.0, %v1651
        %1653 = vmatprep.mubr.f32.mxu0 0.0
        %1654 = vmatmul.mubr.f32.gmra.mrb[0].mxu0 %v1575
        %v1655 = vpop.f32.mrb[0].mxu0
        %v1656 = vadd.f32 0.0, %v1655
        %v1657 = vpop.f32.mrb[0].mxu0
        %v1658 = vadd.f32 0.0, %v1657
        %1659 = vdwg.mxu0
        %v1661 = vsel %vm1518, %v1522, 0
        %v1664 = vsel %vm1518, %v1523, 0
        %v1667 = vsel %vm1353, %v1544, 0
        %v1670 = vsel %vm1353, %v1545, 0
        %1672 = vmatprep.subr.mxu0 %v1525
        %1673 = vmatpush1.msra.mxu0 %v1524
        %1674 = vmatprep.subr.mxu0 %v1527
        %1675 = vmatpush1.msra.mxu0 %v1526
        %1676 = vmatprep.subr.mxu0 %v1529
        %1677 = vmatpush1.msra.mxu0 %v1528
        %1678 = vmatprep.subr.mxu0 %v1531
        %1679 = vmatpush1.msra.mxu0 %v1530
        %1680 = vmatprep.subr.mxu0 %v1533
        %1681 = vmatpush1.msra.mxu0 %v1532
        %1682 = vmatprep.subr.mxu0 %v1535
        %1683 = vmatpush1.msra.mxu0 %v1534
        %1684 = vmatprep.subr.mxu0 %v1537
        %1685 = vmatpush1.msra.mxu0 %v1536
        %1686 = vmatprep.subr.mxu0 %v1539
        %1687 = vmatpush1.msra.mxu0 %v1538
        %1688 = vmatprep.subr.mxu0 %v1541
        %1689 = vmatpush1.msra.mxu0 %v1540
        %1690 = vmatprep.subr.mxu0 %v1543
        %1691 = vmatpush1.msra.mxu0 %v1542
        %1692 = vmatprep.subr.mxu0 %v1670
        %1693 = vmatpush1.msra.mxu0 %v1667
        %1694 = vmatprep.subr.mxu0 0.0
        %1695 = vmatpush1.msra.mxu0 0.0
        %1696 = vmatprep.subr.mxu0 0.0
        %1697 = vmatpush1.msra.mxu0 0.0
        %1698 = vmatprep.subr.mxu0 0.0
        %1699 = vmatpush1.msra.mxu0 0.0
        %1700 = vmatprep.subr.mxu0 0.0
        %1701 = vmatpush1.msra.mxu0 0.0
        %1702 = vmatprep.subr.mxu0 0.0
        %1703 = vmatpush1.msra.mxu0 0.0
        %1704 = vmatprep.subr.mxu0 0.0
        %1705 = vmatpush1.msra.mxu0 0.0
        %1706 = vmatprep.subr.mxu0 0.0
        %1707 = vmatpush1.msra.mxu0 0.0
        %1708 = vmatprep.subr.mxu0 0.0
        %1709 = vmatpush1.msra.mxu0 0.0
        %1710 = vmatprep.subr.mxu0 0.0
        %1711 = vmatpush1.msra.mxu0 0.0
        %1712 = vmatprep.subr.mxu0 0.0
        %1713 = vmatpush1.msra.mxu0 0.0
        %1714 = vmatprep.subr.mxu0 0.0
        %1715 = vmatpush1.msra.mxu0 0.0
        %1716 = vmatprep.subr.mxu0 0.0
        %1717 = vmatpush1.msra.mxu0 0.0
        %1718 = vmatprep.subr.mxu0 0.0
        %1719 = vmatpush1.msra.mxu0 0.0
        %1720 = vmatprep.subr.mxu0 0.0
        %1721 = vmatpush1.msra.mxu0 0.0
        %1722 = vmatprep.subr.mxu0 0.0
        %1723 = vmatpush1.msra.mxu0 0.0
        %1724 = vmatprep.subr.mxu0 0.0
        %1725 = vmatpush1.msra.mxu0 0.0
        %1726 = vmatprep.subr.mxu0 0.0
        %1727 = vmatpush1.msra.mxu0 0.0
        %1728 = vmatprep.subr.mxu0 0.0
        %1729 = vmatpush1.msra.mxu0 0.0
        %1730 = vmatprep.subr.mxu0 0.0
        %1731 = vmatpush1.msra.mxu0 0.0
        %1732 = vmatprep.subr.mxu0 0.0
        %1733 = vmatpush1.msra.mxu0 0.0
        %1734 = vmatprep.subr.mxu0 0.0
        %1735 = vmatpush1.msra.mxu0 0.0
        %1736 = vmatprep.mubr.f32.mxu0 0.0
        %1737 = vmatmul.mubr.f32.gmra.mrb[0].mxu0 %v1661
        %v1738 = vpop.f32.mrb[0].mxu0
        %v1739 = vadd.f32 %v1650, %v1738
        %v1740 = vpop.f32.mrb[0].mxu0
        %v1741 = vadd.f32 %v1652, %v1740
        %1742 = vmatprep.mubr.f32.mxu0 0.0
        %1743 = vmatmul.mubr.f32.gmra.mrb[0].mxu0 %v1664
        %v1744 = vpop.f32.mrb[0].mxu0
        %v1745 = vadd.f32 %v1656, %v1744
        %v1746 = vpop.f32.mrb[0].mxu0
        %v1747 = vadd.f32 %v1658, %v1746
        %1748 = vdwg.mxu0
        %v1749 = vld [vmem:[#allocation2 + $0x2] sm:$0xff]
        %v1750 = vld [vmem:[#allocation2 + $0xa] sm:$0x3]
        %s1751 = scalar_lea.vmem %s5, 352
        %v1752 = vld [vmem:[%s1751] sm:$0xff]
        %v1753 = vld [vmem:[%s1751 + $0x8] sm:$0xff]
        %v1754 = vld [vmem:[%s1751 + $0x10] sm:$0xff]
        %v1755 = vld [vmem:[%s1751 + $0x18] sm:$0xff]
        %v1756 = vld [vmem:[%s1751 + $0x20] sm:$0xff]
        %v1757 = vld [vmem:[%s1751 + $0x28] sm:$0xff]
        %v1758 = vld [vmem:[%s1751 + $0x30] sm:$0xff]
        %v1759 = vld [vmem:[%s1751 + $0x38] sm:$0xff]
        %v1760 = vld [vmem:[%s1751 + $0x40] sm:$0xff]
        %v1761 = vld [vmem:[%s1751 + $0x48] sm:$0xff]
        %v1762 = vld [vmem:[%s1751 + $0x50] sm:$0xff]
        %v1763 = vld [vmem:[%s1751 + $0x58] sm:$0xff]
        %v1764 = vld [vmem:[%s1751 + $0x60] sm:$0xff]
        %v1765 = vld [vmem:[%s1751 + $0x68] sm:$0xff]
        %v1766 = vld [vmem:[%s1751 + $0x70] sm:$0xff]
        %v1767 = vld [vmem:[%s1751 + $0x78] sm:$0xff]
        %v1768 = vld [vmem:[%s1751 + $0x80] sm:$0xff]
        %v1769 = vld [vmem:[%s1751 + $0x88] sm:$0xff]
        %v1770 = vld [vmem:[%s1751 + $0x90] sm:$0xff]
        %v1771 = vld [vmem:[%s1751 + $0x98] sm:$0xff]
        %v1772 = vld [vmem:[%s1751 + $0xa0] sm:$0xf]
        %v1773 = vld [vmem:[%s1751 + $0xa8] sm:$0xf]
        %v1775 = vsel %vm1518, %v1749, 0
        %v1778 = vsel %vm1518, %v1750, 0
        %v1781 = vsel %vm1353, %v1772, 0
        %v1784 = vsel %vm1353, %v1773, 0
        %1786 = vmatprep.subr.mxu0 %v1753
        %1787 = vmatpush1.msra.mxu0 %v1752
        %1788 = vmatprep.subr.mxu0 %v1755
        %1789 = vmatpush1.msra.mxu0 %v1754
        %1790 = vmatprep.subr.mxu0 %v1757
        %1791 = vmatpush1.msra.mxu0 %v1756
        %1792 = vmatprep.subr.mxu0 %v1759
        %1793 = vmatpush1.msra.mxu0 %v1758
        %1794 = vmatprep.subr.mxu0 %v1761
        %1795 = vmatpush1.msra.mxu0 %v1760
        %1796 = vmatprep.subr.mxu0 %v1763
        %1797 = vmatpush1.msra.mxu0 %v1762
        %1798 = vmatprep.subr.mxu0 %v1765
        %1799 = vmatpush1.msra.mxu0 %v1764
        %1800 = vmatprep.subr.mxu0 %v1767
        %1801 = vmatpush1.msra.mxu0 %v1766
        %1802 = vmatprep.subr.mxu0 %v1769
        %1803 = vmatpush1.msra.mxu0 %v1768
        %1804 = vmatprep.subr.mxu0 %v1771
        %1805 = vmatpush1.msra.mxu0 %v1770
        %1806 = vmatprep.subr.mxu0 %v1784
        %1807 = vmatpush1.msra.mxu0 %v1781
        %1808 = vmatprep.subr.mxu0 0.0
        %1809 = vmatpush1.msra.mxu0 0.0
        %1810 = vmatprep.subr.mxu0 0.0
        %1811 = vmatpush1.msra.mxu0 0.0
        %1812 = vmatprep.subr.mxu0 0.0
        %1813 = vmatpush1.msra.mxu0 0.0
        %1814 = vmatprep.subr.mxu0 0.0
        %1815 = vmatpush1.msra.mxu0 0.0
        %1816 = vmatprep.subr.mxu0 0.0
        %1817 = vmatpush1.msra.mxu0 0.0
        %1818 = vmatprep.subr.mxu0 0.0
        %1819 = vmatpush1.msra.mxu0 0.0
        %1820 = vmatprep.subr.mxu0 0.0
        %1821 = vmatpush1.msra.mxu0 0.0
        %1822 = vmatprep.subr.mxu0 0.0
        %1823 = vmatpush1.msra.mxu0 0.0
        %1824 = vmatprep.subr.mxu0 0.0
        %1825 = vmatpush1.msra.mxu0 0.0
        %1826 = vmatprep.subr.mxu0 0.0
        %1827 = vmatpush1.msra.mxu0 0.0
        %1828 = vmatprep.subr.mxu0 0.0
        %1829 = vmatpush1.msra.mxu0 0.0
        %1830 = vmatprep.subr.mxu0 0.0
        %1831 = vmatpush1.msra.mxu0 0.0
        %1832 = vmatprep.subr.mxu0 0.0
        %1833 = vmatpush1.msra.mxu0 0.0
        %1834 = vmatprep.subr.mxu0 0.0
        %1835 = vmatpush1.msra.mxu0 0.0
        %1836 = vmatprep.subr.mxu0 0.0
        %1837 = vmatpush1.msra.mxu0 0.0
        %1838 = vmatprep.subr.mxu0 0.0
        %1839 = vmatpush1.msra.mxu0 0.0
        %1840 = vmatprep.subr.mxu0 0.0
        %1841 = vmatpush1.msra.mxu0 0.0
        %1842 = vmatprep.subr.mxu0 0.0
        %1843 = vmatpush1.msra.mxu0 0.0
        %1844 = vmatprep.subr.mxu0 0.0
        %1845 = vmatpush1.msra.mxu0 0.0
        %1846 = vmatprep.subr.mxu0 0.0
        %1847 = vmatpush1.msra.mxu0 0.0
        %1848 = vmatprep.subr.mxu0 0.0
        %1849 = vmatpush1.msra.mxu0 0.0
        %1850 = vmatprep.mubr.f32.mxu0 0.0
        %1851 = vmatmul.mubr.f32.gmra.mrb[0].mxu0 %v1775
        %v1852 = vpop.f32.mrb[0].mxu0
        %v1853 = vadd.f32 0.0, %v1852
        %v1854 = vpop.f32.mrb[0].mxu0
        %v1855 = vadd.f32 0.0, %v1854
        %1856 = vmatprep.mubr.f32.mxu0 0.0
        %1857 = vmatmul.mubr.f32.gmra.mrb[0].mxu0 %v1778
        %v1858 = vpop.f32.mrb[0].mxu0
        %v1859 = vadd.f32 0.0, %v1858
        %v1860 = vpop.f32.mrb[0].mxu0
        %v1861 = vadd.f32 0.0, %v1860
        %1862 = vdwg.mxu0
        %v1863 = vadd.f32 %v1739, %v1853
        %v1864 = vadd.f32 %v1741, %v1855
        %v1865 = vadd.f32 %v1745, %v1859
        %v1866 = vadd.f32 %v1747, %v1861
        %v1867 = vld [vmem:[#allocation2 + $0x3] sm:$0xff]
        %v1868 = vld [vmem:[#allocation2 + $0xb] sm:$0x3]
        %s1869 = scalar_lea.vmem %s5, 528
        %v1870 = vld [vmem:[%s1869] sm:$0xff]
        %v1871 = vld [vmem:[%s1869 + $0x8] sm:$0xff]
        %v1872 = vld [vmem:[%s1869 + $0x10] sm:$0xff]
        %v1873 = vld [vmem:[%s1869 + $0x18] sm:$0xff]
        %v1874 = vld [vmem:[%s1869 + $0x20] sm:$0xff]
        %v1875 = vld [vmem:[%s1869 + $0x28] sm:$0xff]
        %v1876 = vld [vmem:[%s1869 + $0x30] sm:$0xff]
        %v1877 = vld [vmem:[%s1869 + $0x38] sm:$0xff]
        %v1878 = vld [vmem:[%s1869 + $0x40] sm:$0xff]
        %v1879 = vld [vmem:[%s1869 + $0x48] sm:$0xff]
        %v1880 = vld [vmem:[%s1869 + $0x50] sm:$0xff]
        %v1881 = vld [vmem:[%s1869 + $0x58] sm:$0xff]
        %v1882 = vld [vmem:[%s1869 + $0x60] sm:$0xff]
        %v1883 = vld [vmem:[%s1869 + $0x68] sm:$0xff]
        %v1884 = vld [vmem:[%s1869 + $0x70] sm:$0xff]
        %v1885 = vld [vmem:[%s1869 + $0x78] sm:$0xff]
        %v1886 = vld [vmem:[%s1869 + $0x80] sm:$0xff]
        %v1887 = vld [vmem:[%s1869 + $0x88] sm:$0xff]
        %v1888 = vld [vmem:[%s1869 + $0x90] sm:$0xff]
        %v1889 = vld [vmem:[%s1869 + $0x98] sm:$0xff]
        %v1890 = vld [vmem:[%s1869 + $0xa0] sm:$0xf]
        %v1891 = vld [vmem:[%s1869 + $0xa8] sm:$0xf]
        %v1893 = vsel %vm1518, %v1867, 0
        %v1896 = vsel %vm1518, %v1868, 0
        %v1899 = vsel %vm1353, %v1890, 0
        %v1902 = vsel %vm1353, %v1891, 0
        %1904 = vmatprep.subr.mxu0 %v1871
        %1905 = vmatpush1.msra.mxu0 %v1870
        %1906 = vmatprep.subr.mxu0 %v1873
        %1907 = vmatpush1.msra.mxu0 %v1872
        %1908 = vmatprep.subr.mxu0 %v1875
        %1909 = vmatpush1.msra.mxu0 %v1874
        %1910 = vmatprep.subr.mxu0 %v1877
        %1911 = vmatpush1.msra.mxu0 %v1876
        %1912 = vmatprep.subr.mxu0 %v1879
        %1913 = vmatpush1.msra.mxu0 %v1878
        %1914 = vmatprep.subr.mxu0 %v1881
        %1915 = vmatpush1.msra.mxu0 %v1880
        %1916 = vmatprep.subr.mxu0 %v1883
        %1917 = vmatpush1.msra.mxu0 %v1882
        %1918 = vmatprep.subr.mxu0 %v1885
        %1919 = vmatpush1.msra.mxu0 %v1884
        %1920 = vmatprep.subr.mxu0 %v1887
        %1921 = vmatpush1.msra.mxu0 %v1886
        %1922 = vmatprep.subr.mxu0 %v1889
        %1923 = vmatpush1.msra.mxu0 %v1888
        %1924 = vmatprep.subr.mxu0 %v1902
        %1925 = vmatpush1.msra.mxu0 %v1899
        %1926 = vmatprep.subr.mxu0 0.0
        %1927 = vmatpush1.msra.mxu0 0.0
        %1928 = vmatprep.subr.mxu0 0.0
        %1929 = vmatpush1.msra.mxu0 0.0
        %1930 = vmatprep.subr.mxu0 0.0
        %1931 = vmatpush1.msra.mxu0 0.0
        %1932 = vmatprep.subr.mxu0 0.0
        %1933 = vmatpush1.msra.mxu0 0.0
        %1934 = vmatprep.subr.mxu0 0.0
        %1935 = vmatpush1.msra.mxu0 0.0
        %1936 = vmatprep.subr.mxu0 0.0
        %1937 = vmatpush1.msra.mxu0 0.0
        %1938 = vmatprep.subr.mxu0 0.0
        %1939 = vmatpush1.msra.mxu0 0.0
        %1940 = vmatprep.subr.mxu0 0.0
        %1941 = vmatpush1.msra.mxu0 0.0
        %1942 = vmatprep.subr.mxu0 0.0
        %1943 = vmatpush1.msra.mxu0 0.0
        %1944 = vmatprep.subr.mxu0 0.0
        %1945 = vmatpush1.msra.mxu0 0.0
        %1946 = vmatprep.subr.mxu0 0.0
        %1947 = vmatpush1.msra.mxu0 0.0
        %1948 = vmatprep.subr.mxu0 0.0
        %1949 = vmatpush1.msra.mxu0 0.0
        %1950 = vmatprep.subr.mxu0 0.0
        %1951 = vmatpush1.msra.mxu0 0.0
        %1952 = vmatprep.subr.mxu0 0.0
        %1953 = vmatpush1.msra.mxu0 0.0
        %1954 = vmatprep.subr.mxu0 0.0
        %1955 = vmatpush1.msra.mxu0 0.0
        %1956 = vmatprep.subr.mxu0 0.0
        %1957 = vmatpush1.msra.mxu0 0.0
        %1958 = vmatprep.subr.mxu0 0.0
        %1959 = vmatpush1.msra.mxu0 0.0
        %1960 = vmatprep.subr.mxu0 0.0
        %1961 = vmatpush1.msra.mxu0 0.0
        %1962 = vmatprep.subr.mxu0 0.0
        %1963 = vmatpush1.msra.mxu0 0.0
        %1964 = vmatprep.subr.mxu0 0.0
        %1965 = vmatpush1.msra.mxu0 0.0
        %1966 = vmatprep.subr.mxu0 0.0
        %1967 = vmatpush1.msra.mxu0 0.0
        %1968 = vmatprep.mubr.f32.mxu0 0.0
        %1969 = vmatmul.mubr.f32.gmra.mrb[0].mxu0 %v1893
        %v1970 = vpop.f32.mrb[0].mxu0
        %v1971 = vadd.f32 0.0, %v1970
        %v1972 = vpop.f32.mrb[0].mxu0
        %v1973 = vadd.f32 0.0, %v1972
        %1974 = vmatprep.mubr.f32.mxu0 0.0
        %1975 = vmatmul.mubr.f32.gmra.mrb[0].mxu0 %v1896
        %v1976 = vpop.f32.mrb[0].mxu0
        %v1977 = vadd.f32 0.0, %v1976
        %v1978 = vpop.f32.mrb[0].mxu0
        %v1979 = vadd.f32 0.0, %v1978
        %1980 = vdwg.mxu0
        %v1981 = vadd.f32 %v1863, %v1971
        %v1982 = vadd.f32 %v1864, %v1973
        %v1983 = vadd.f32 %v1865, %v1977
        %v1984 = vadd.f32 %v1866, %v1979
        %v1985 = vld [vmem:[#allocation2 + $0x4] sm:$0xff]
        %v1986 = vld [vmem:[#allocation2 + $0xc] sm:$0x3]
        %s1987 = scalar_lea.vmem %s5, 704
        %v1988 = vld [vmem:[%s1987] sm:$0xff]
        %v1989 = vld [vmem:[%s1987 + $0x8] sm:$0xff]
        %v1990 = vld [vmem:[%s1987 + $0x10] sm:$0xff]
        %v1991 = vld [vmem:[%s1987 + $0x18] sm:$0xff]
        %v1992 = vld [vmem:[%s1987 + $0x20] sm:$0xff]
        %v1993 = vld [vmem:[%s1987 + $0x28] sm:$0xff]
        %v1994 = vld [vmem:[%s1987 + $0x30] sm:$0xff]
        %v1995 = vld [vmem:[%s1987 + $0x38] sm:$0xff]
        %v1996 = vld [vmem:[%s1987 + $0x40] sm:$0xff]
        %v1997 = vld [vmem:[%s1987 + $0x48] sm:$0xff]
        %v1998 = vld [vmem:[%s1987 + $0x50] sm:$0xff]
        %v1999 = vld [vmem:[%s1987 + $0x58] sm:$0xff]
        %v2000 = vld [vmem:[%s1987 + $0x60] sm:$0xff]
        %v2001 = vld [vmem:[%s1987 + $0x68] sm:$0xff]
        %v2002 = vld [vmem:[%s1987 + $0x70] sm:$0xff]
        %v2003 = vld [vmem:[%s1987 + $0x78] sm:$0xff]
        %v2004 = vld [vmem:[%s1987 + $0x80] sm:$0xff]
        %v2005 = vld [vmem:[%s1987 + $0x88] sm:$0xff]
        %v2006 = vld [vmem:[%s1987 + $0x90] sm:$0xff]
        %v2007 = vld [vmem:[%s1987 + $0x98] sm:$0xff]
        %v2008 = vld [vmem:[%s1987 + $0xa0] sm:$0xf]
        %v2009 = vld [vmem:[%s1987 + $0xa8] sm:$0xf]
        %v2011 = vsel %vm1518, %v1985, 0
        %v2014 = vsel %vm1518, %v1986, 0
        %v2017 = vsel %vm1353, %v2008, 0
        %v2020 = vsel %vm1353, %v2009, 0
        %2022 = vmatprep.subr.mxu0 %v1989
        %2023 = vmatpush1.msra.mxu0 %v1988
        %2024 = vmatprep.subr.mxu0 %v1991
        %2025 = vmatpush1.msra.mxu0 %v1990
        %2026 = vmatprep.subr.mxu0 %v1993
        %2027 = vmatpush1.msra.mxu0 %v1992
        %2028 = vmatprep.subr.mxu0 %v1995
        %2029 = vmatpush1.msra.mxu0 %v1994
        %2030 = vmatprep.subr.mxu0 %v1997
        %2031 = vmatpush1.msra.mxu0 %v1996
        %2032 = vmatprep.subr.mxu0 %v1999
        %2033 = vmatpush1.msra.mxu0 %v1998
        %2034 = vmatprep.subr.mxu0 %v2001
        %2035 = vmatpush1.msra.mxu0 %v2000
        %2036 = vmatprep.subr.mxu0 %v2003
        %2037 = vmatpush1.msra.mxu0 %v2002
        %2038 = vmatprep.subr.mxu0 %v2005
        %2039 = vmatpush1.msra.mxu0 %v2004
        %2040 = vmatprep.subr.mxu0 %v2007
        %2041 = vmatpush1.msra.mxu0 %v2006
        %2042 = vmatprep.subr.mxu0 %v2020
        %2043 = vmatpush1.msra.mxu0 %v2017
        %2044 = vmatprep.subr.mxu0 0.0
        %2045 = vmatpush1.msra.mxu0 0.0
        %2046 = vmatprep.subr.mxu0 0.0
        %2047 = vmatpush1.msra.mxu0 0.0
        %2048 = vmatprep.subr.mxu0 0.0
        %2049 = vmatpush1.msra.mxu0 0.0
        %2050 = vmatprep.subr.mxu0 0.0
        %2051 = vmatpush1.msra.mxu0 0.0
        %2052 = vmatprep.subr.mxu0 0.0
        %2053 = vmatpush1.msra.mxu0 0.0
        %2054 = vmatprep.subr.mxu0 0.0
        %2055 = vmatpush1.msra.mxu0 0.0
        %2056 = vmatprep.subr.mxu0 0.0
        %2057 = vmatpush1.msra.mxu0 0.0
        %2058 = vmatprep.subr.mxu0 0.0
        %2059 = vmatpush1.msra.mxu0 0.0
        %2060 = vmatprep.subr.mxu0 0.0
        %2061 = vmatpush1.msra.mxu0 0.0
        %2062 = vmatprep.subr.mxu0 0.0
        %2063 = vmatpush1.msra.mxu0 0.0
        %2064 = vmatprep.subr.mxu0 0.0
        %2065 = vmatpush1.msra.mxu0 0.0
        %2066 = vmatprep.subr.mxu0 0.0
        %2067 = vmatpush1.msra.mxu0 0.0
        %2068 = vmatprep.subr.mxu0 0.0
        %2069 = vmatpush1.msra.mxu0 0.0
        %2070 = vmatprep.subr.mxu0 0.0
        %2071 = vmatpush1.msra.mxu0 0.0
        %2072 = vmatprep.subr.mxu0 0.0
        %2073 = vmatpush1.msra.mxu0 0.0
        %2074 = vmatprep.subr.mxu0 0.0
        %2075 = vmatpush1.msra.mxu0 0.0
        %2076 = vmatprep.subr.mxu0 0.0
        %2077 = vmatpush1.msra.mxu0 0.0
        %2078 = vmatprep.subr.mxu0 0.0
        %2079 = vmatpush1.msra.mxu0 0.0
        %2080 = vmatprep.subr.mxu0 0.0
        %2081 = vmatpush1.msra.mxu0 0.0
        %2082 = vmatprep.subr.mxu0 0.0
        %2083 = vmatpush1.msra.mxu0 0.0
        %2084 = vmatprep.subr.mxu0 0.0
        %2085 = vmatpush1.msra.mxu0 0.0
        %2086 = vmatprep.mubr.f32.mxu0 0.0
        %2087 = vmatmul.mubr.f32.gmra.mrb[0].mxu0 %v2011
        %v2088 = vpop.f32.mrb[0].mxu0
        %v2089 = vadd.f32 0.0, %v2088
        %v2090 = vpop.f32.mrb[0].mxu0
        %v2091 = vadd.f32 0.0, %v2090
        %2092 = vmatprep.mubr.f32.mxu0 0.0
        %2093 = vmatmul.mubr.f32.gmra.mrb[0].mxu0 %v2014
        %v2094 = vpop.f32.mrb[0].mxu0
        %v2095 = vadd.f32 0.0, %v2094
        %v2096 = vpop.f32.mrb[0].mxu0
        %v2097 = vadd.f32 0.0, %v2096
        %2098 = vdwg.mxu0
        %v2099 = vadd.f32 %v1981, %v2089
        %v2100 = vadd.f32 %v1982, %v2091
        %v2101 = vadd.f32 %v1983, %v2095
        %v2102 = vadd.f32 %v1984, %v2097
        %v2103 = vld [vmem:[%s6] sm:$0x3]
        %v2105 = vlaneseq
        %v2106 = vshrl.u32 %v2105, 7
        %v2107 = vsub.s32 0, %v2106
        %v2108 = vrot.slane %v2103, %v2107
        %v2109 = vlaneseq
        %v2110 = vshrl.u32 %v2109, 7
        %v2111 = vsub.s32 1, %v2110
        %v2112 = vrot.slane %v2103, %v2111
        %v2115 = vadd.f32 %v2099, %v2108
        %v2116 = vadd.f32 %v2100, %v2112
        %v2117 = vadd.f32 %v2101, %v2108
        %v2118 = vadd.f32 %v2102, %v2112
        %v2119 = vmax.f32 %v2115, 0.0
        %v2120 = vmax.f32 %v2116, 0.0
        %v2121 = vmax.f32 %v2117, 0.0
        %v2122 = vmax.f32 %v2118, 0.0
        %v2123 = vld [vmem:[%s7] sm:$0xff]
        %v2124 = vld [vmem:[%s7 + $0x8] sm:$0xff]
        %v2125 = vld [vmem:[%s7 + $0x10] sm:$0xff]
        %v2126 = vld [vmem:[%s7 + $0x18] sm:$0xff]
        %v2127 = vld [vmem:[%s7 + $0x20] sm:$0xff]
        %v2128 = vld [vmem:[%s7 + $0x28] sm:$0xff]
        %v2129 = vld [vmem:[%s7 + $0x30] sm:$0xff]
        %v2130 = vld [vmem:[%s7 + $0x38] sm:$0xff]
        %v2131 = vld [vmem:[%s7 + $0x40] sm:$0xff]
        %v2132 = vld [vmem:[%s7 + $0x48] sm:$0xff]
        %v2133 = vld [vmem:[%s7 + $0x50] sm:$0xff]
        %v2134 = vld [vmem:[%s7 + $0x58] sm:$0xff]
        %v2135 = vld [vmem:[%s7 + $0x60] sm:$0xff]
        %v2136 = vld [vmem:[%s7 + $0x68] sm:$0xff]
        %v2137 = vld [vmem:[%s7 + $0x70] sm:$0xff]
        %v2138 = vld [vmem:[%s7 + $0x78] sm:$0xff]
        %v2139 = vld [vmem:[%s7 + $0x80] sm:$0xff]
        %v2140 = vld [vmem:[%s7 + $0x88] sm:$0xff]
        %v2141 = vld [vmem:[%s7 + $0x90] sm:$0xff]
        %v2142 = vld [vmem:[%s7 + $0x98] sm:$0xff]
        %v2144 = vsel %vm517, %v2120, 0
        %v2147 = vsel %vm517, %v2122, 0
        %2149 = vmatprep.subr.mxu0 0.0
        %2150 = vmatpush1.msra.mxu0 %v2123
        %2151 = vmatprep.subr.mxu0 0.0
        %2152 = vmatpush1.msra.mxu0 %v2124
        %2153 = vmatprep.subr.mxu0 0.0
        %2154 = vmatpush1.msra.mxu0 %v2125
        %2155 = vmatprep.subr.mxu0 0.0
        %2156 = vmatpush1.msra.mxu0 %v2126
        %2157 = vmatprep.subr.mxu0 0.0
        %2158 = vmatpush1.msra.mxu0 %v2127
        %2159 = vmatprep.subr.mxu0 0.0
        %2160 = vmatpush1.msra.mxu0 %v2128
        %2161 = vmatprep.subr.mxu0 0.0
        %2162 = vmatpush1.msra.mxu0 %v2129
        %2163 = vmatprep.subr.mxu0 0.0
        %2164 = vmatpush1.msra.mxu0 %v2130
        %2165 = vmatprep.subr.mxu0 0.0
        %2166 = vmatpush1.msra.mxu0 %v2131
        %2167 = vmatprep.subr.mxu0 0.0
        %2168 = vmatpush1.msra.mxu0 %v2132
        %2169 = vmatprep.subr.mxu0 0.0
        %2170 = vmatpush1.msra.mxu0 %v2133
        %2171 = vmatprep.subr.mxu0 0.0
        %2172 = vmatpush1.msra.mxu0 %v2134
        %2173 = vmatprep.subr.mxu0 0.0
        %2174 = vmatpush1.msra.mxu0 %v2135
        %2175 = vmatprep.subr.mxu0 0.0
        %2176 = vmatpush1.msra.mxu0 %v2136
        %2177 = vmatprep.subr.mxu0 0.0
        %2178 = vmatpush1.msra.mxu0 %v2137
        %2179 = vmatprep.subr.mxu0 0.0
        %2180 = vmatpush1.msra.mxu0 %v2138
        %2181 = vmatprep.subr.mxu0 0.0
        %2182 = vmatpush1.msra.mxu0 %v2139
        %2183 = vmatprep.subr.mxu0 0.0
        %2184 = vmatpush1.msra.mxu0 %v2140
        %2185 = vmatprep.subr.mxu0 0.0
        %2186 = vmatpush1.msra.mxu0 %v2141
        %2187 = vmatprep.subr.mxu0 0.0
        %2188 = vmatpush1.msra.mxu0 %v2142
        %2189 = vmatprep.subr.mxu0 0.0
        %2190 = vmatpush1.msra.mxu0 0.0
        %2191 = vmatprep.subr.mxu0 0.0
        %2192 = vmatpush1.msra.mxu0 0.0
        %2193 = vmatprep.subr.mxu0 0.0
        %2194 = vmatpush1.msra.mxu0 0.0
        %2195 = vmatprep.subr.mxu0 0.0
        %2196 = vmatpush1.msra.mxu0 0.0
        %2197 = vmatprep.subr.mxu0 0.0
        %2198 = vmatpush1.msra.mxu0 0.0
        %2199 = vmatprep.subr.mxu0 0.0
        %2200 = vmatpush1.msra.mxu0 0.0
        %2201 = vmatprep.subr.mxu0 0.0
        %2202 = vmatpush1.msra.mxu0 0.0
        %2203 = vmatprep.subr.mxu0 0.0
        %2204 = vmatpush1.msra.mxu0 0.0
        %2205 = vmatprep.subr.mxu0 0.0
        %2206 = vmatpush1.msra.mxu0 0.0
        %2207 = vmatprep.subr.mxu0 0.0
        %2208 = vmatpush1.msra.mxu0 0.0
        %2209 = vmatprep.subr.mxu0 0.0
        %2210 = vmatpush1.msra.mxu0 0.0
        %2211 = vmatprep.subr.mxu0 0.0
        %2212 = vmatpush1.msra.mxu0 0.0
        %2213 = vmatprep.mubr.f32.mxu0 %v2144
        %2214 = vmatmul.mubr.f32.gmra.mrb[0].mxu0 %v2119
        %v2215 = vpop.f32.mrb[0].mxu0
        %v2216 = vadd.f32 0.0, %v2215
        %v2217 = vpop.f32.mrb[0].mxu0
        %2218 = vmatprep.mubr.f32.mxu0 %v2147
        %2219 = vmatmul.mubr.f32.gmra.mrb[0].mxu0 %v2121
        %v2220 = vpop.f32.mrb[0].mxu0
        %v2221 = vadd.f32 0.0, %v2220
        %v2222 = vpop.f32.mrb[0].mxu0
        %2223 = vdwg.mxu0
        %s2224 = scalar_lea.vmem %s7, 160
        %v2225 = vld [vmem:[%s2224] sm:$0xff]
        %v2226 = vld [vmem:[%s2224 + $0x8] sm:$0xff]
        %v2227 = vld [vmem:[%s2224 + $0x10] sm:$0xff]
        %v2228 = vld [vmem:[%s2224 + $0x18] sm:$0xff]
        %v2229 = vld [vmem:[%s2224 + $0x20] sm:$0xff]
        %v2230 = vld [vmem:[%s2224 + $0x28] sm:$0xff]
        %v2231 = vld [vmem:[%s2224 + $0x30] sm:$0xff]
        %v2232 = vld [vmem:[%s2224 + $0x38] sm:$0xff]
        %v2233 = vld [vmem:[%s2224 + $0x40] sm:$0xff]
        %v2234 = vld [vmem:[%s2224 + $0x48] sm:$0xff]
        %v2235 = vld [vmem:[%s2224 + $0x50] sm:$0xff]
        %v2236 = vld [vmem:[%s2224 + $0x58] sm:$0xff]
        %v2237 = vld [vmem:[%s2224 + $0x60] sm:$0xff]
        %v2238 = vld [vmem:[%s2224 + $0x68] sm:$0xff]
        %v2239 = vld [vmem:[%s2224 + $0x70] sm:$0xff]
        %v2240 = vld [vmem:[%s2224 + $0x78] sm:$0xff]
        %v2241 = vld [vmem:[%s2224 + $0x80] sm:$0xff]
        %v2242 = vld [vmem:[%s2224 + $0x88] sm:$0xff]
        %v2243 = vld [vmem:[%s2224 + $0x90] sm:$0xff]
        %v2244 = vld [vmem:[%s2224 + $0x98] sm:$0xff]
        %2245 = vmatprep.subr.mxu0 0.0
        %2246 = vmatpush1.msra.mxu0 %v2225
        %2247 = vmatprep.subr.mxu0 0.0
        %2248 = vmatpush1.msra.mxu0 %v2226
        %2249 = vmatprep.subr.mxu0 0.0
        %2250 = vmatpush1.msra.mxu0 %v2227
        %2251 = vmatprep.subr.mxu0 0.0
        %2252 = vmatpush1.msra.mxu0 %v2228
        %2253 = vmatprep.subr.mxu0 0.0
        %2254 = vmatpush1.msra.mxu0 %v2229
        %2255 = vmatprep.subr.mxu0 0.0
        %2256 = vmatpush1.msra.mxu0 %v2230
        %2257 = vmatprep.subr.mxu0 0.0
        %2258 = vmatpush1.msra.mxu0 %v2231
        %2259 = vmatprep.subr.mxu0 0.0
        %2260 = vmatpush1.msra.mxu0 %v2232
        %2261 = vmatprep.subr.mxu0 0.0
        %2262 = vmatpush1.msra.mxu0 %v2233
        %2263 = vmatprep.subr.mxu0 0.0
        %2264 = vmatpush1.msra.mxu0 %v2234
        %2265 = vmatprep.subr.mxu0 0.0
        %2266 = vmatpush1.msra.mxu0 %v2235
        %2267 = vmatprep.subr.mxu0 0.0
        %2268 = vmatpush1.msra.mxu0 %v2236
        %2269 = vmatprep.subr.mxu0 0.0
        %2270 = vmatpush1.msra.mxu0 %v2237
        %2271 = vmatprep.subr.mxu0 0.0
        %2272 = vmatpush1.msra.mxu0 %v2238
        %2273 = vmatprep.subr.mxu0 0.0
        %2274 = vmatpush1.msra.mxu0 %v2239
        %2275 = vmatprep.subr.mxu0 0.0
        %2276 = vmatpush1.msra.mxu0 %v2240
        %2277 = vmatprep.subr.mxu0 0.0
        %2278 = vmatpush1.msra.mxu0 %v2241
        %2279 = vmatprep.subr.mxu0 0.0
        %2280 = vmatpush1.msra.mxu0 %v2242
        %2281 = vmatprep.subr.mxu0 0.0
        %2282 = vmatpush1.msra.mxu0 %v2243
        %2283 = vmatprep.subr.mxu0 0.0
        %2284 = vmatpush1.msra.mxu0 %v2244
        %2285 = vmatprep.subr.mxu0 0.0
        %2286 = vmatpush1.msra.mxu0 0.0
        %2287 = vmatprep.subr.mxu0 0.0
        %2288 = vmatpush1.msra.mxu0 0.0
        %2289 = vmatprep.subr.mxu0 0.0
        %2290 = vmatpush1.msra.mxu0 0.0
        %2291 = vmatprep.subr.mxu0 0.0
        %2292 = vmatpush1.msra.mxu0 0.0
        %2293 = vmatprep.subr.mxu0 0.0
        %2294 = vmatpush1.msra.mxu0 0.0
        %2295 = vmatprep.subr.mxu0 0.0
        %2296 = vmatpush1.msra.mxu0 0.0
        %2297 = vmatprep.subr.mxu0 0.0
        %2298 = vmatpush1.msra.mxu0 0.0
        %2299 = vmatprep.subr.mxu0 0.0
        %2300 = vmatpush1.msra.mxu0 0.0
        %2301 = vmatprep.subr.mxu0 0.0
        %2302 = vmatpush1.msra.mxu0 0.0
        %2303 = vmatprep.subr.mxu0 0.0
        %2304 = vmatpush1.msra.mxu0 0.0
        %2305 = vmatprep.subr.mxu0 0.0
        %2306 = vmatpush1.msra.mxu0 0.0
        %2307 = vmatprep.subr.mxu0 0.0
        %2308 = vmatpush1.msra.mxu0 0.0
        %2309 = vmatprep.mubr.f32.mxu0 %v2144
        %2310 = vmatmul.mubr.f32.gmra.mrb[0].mxu0 %v2119
        %v2311 = vpop.f32.mrb[0].mxu0
        %v2312 = vadd.f32 0.0, %v2311
        %v2313 = vpop.f32.mrb[0].mxu0
        %2314 = vmatprep.mubr.f32.mxu0 %v2147
        %2315 = vmatmul.mubr.f32.gmra.mrb[0].mxu0 %v2121
        %v2316 = vpop.f32.mrb[0].mxu0
        %v2317 = vadd.f32 0.0, %v2316
        %v2318 = vpop.f32.mrb[0].mxu0
        %2319 = vdwg.mxu0
        %v2320 = vmax.f32 %v2216, %v2312
        %v2321 = vmax.f32 %v2221, %v2317
        %v2322 = vld [vmem:[%s8] sm:$0x1f]
        %vm2323 = vcmask 80896
        %v2325 = vsel %vm2323, %v2322, 0
        %vm2327 = vcmask 1041408
        %v2329 = vsel %vm2327, %v2321, 0
        %2331 = vmatprep.subr.mxu0 0.0
        %2332 = vmatpush1.msra.mxu0 %v2320
        %2333 = vmatprep.subr.mxu0 0.0
        %2334 = vmatpush1.msra.mxu0 %v2329
        %2335 = vmatprep.subr.mxu0 0.0
        %2336 = vmatpush1.msra.mxu0 0.0
        %2337 = vmatprep.subr.mxu0 0.0
        %2338 = vmatpush1.msra.mxu0 0.0
        %2339 = vmatprep.subr.mxu0 0.0
        %2340 = vmatpush1.msra.mxu0 0.0
        %2341 = vmatprep.subr.mxu0 0.0
        %2342 = vmatpush1.msra.mxu0 0.0
        %2343 = vmatprep.subr.mxu0 0.0
        %2344 = vmatpush1.msra.mxu0 0.0
        %2345 = vmatprep.subr.mxu0 0.0
        %2346 = vmatpush1.msra.mxu0 0.0
        %2347 = vmatprep.subr.mxu0 0.0
        %2348 = vmatpush1.msra.mxu0 0.0
        %2349 = vmatprep.subr.mxu0 0.0
        %2350 = vmatpush1.msra.mxu0 0.0
        %2351 = vmatprep.subr.mxu0 0.0
        %2352 = vmatpush1.msra.mxu0 0.0
        %2353 = vmatprep.subr.mxu0 0.0
        %2354 = vmatpush1.msra.mxu0 0.0
        %2355 = vmatprep.subr.mxu0 0.0
        %2356 = vmatpush1.msra.mxu0 0.0
        %2357 = vmatprep.subr.mxu0 0.0
        %2358 = vmatpush1.msra.mxu0 0.0
        %2359 = vmatprep.subr.mxu0 0.0
        %2360 = vmatpush1.msra.mxu0 0.0
        %2361 = vmatprep.subr.mxu0 0.0
        %2362 = vmatpush1.msra.mxu0 0.0
        %2363 = vmatprep.subr.mxu0 0.0
        %2364 = vmatpush1.msra.mxu0 0.0
        %2365 = vmatprep.subr.mxu0 0.0
        %2366 = vmatpush1.msra.mxu0 0.0
        %2367 = vmatprep.subr.mxu0 0.0
        %2368 = vmatpush1.msra.mxu0 0.0
        %2369 = vmatprep.subr.mxu0 0.0
        %2370 = vmatpush1.msra.mxu0 0.0
        %2371 = vmatprep.subr.mxu0 0.0
        %2372 = vmatpush1.msra.mxu0 0.0
        %2373 = vmatprep.subr.mxu0 0.0
        %2374 = vmatpush1.msra.mxu0 0.0
        %2375 = vmatprep.subr.mxu0 0.0
        %2376 = vmatpush1.msra.mxu0 0.0
        %2377 = vmatprep.subr.mxu0 0.0
        %2378 = vmatpush1.msra.mxu0 0.0
        %2379 = vmatprep.subr.mxu0 0.0
        %2380 = vmatpush1.msra.mxu0 0.0
        %2381 = vmatprep.subr.mxu0 0.0
        %2382 = vmatpush1.msra.mxu0 0.0
        %2383 = vmatprep.subr.mxu0 0.0
        %2384 = vmatpush1.msra.mxu0 0.0
        %2385 = vmatprep.subr.mxu0 0.0
        %2386 = vmatpush1.msra.mxu0 0.0
        %2387 = vmatprep.subr.mxu0 0.0
        %2388 = vmatpush1.msra.mxu0 0.0
        %2389 = vmatprep.subr.mxu0 0.0
        %2390 = vmatpush1.msra.mxu0 0.0
        %2391 = vmatprep.subr.mxu0 0.0
        %2392 = vmatpush1.msra.mxu0 0.0
        %2393 = vmatprep.subr.mxu0 0.0
        %2394 = vmatpush1.msra.mxu0 0.0
        %2395 = vmatprep.mubr.f32.mxu0 0.0
        %2396 = vmatmul.mubr.f32.gmra.mrb[0].mxu0 %v2325
        %v2397 = vpop.f32.mrb[0].mxu0
        %v2398 = vadd.f32 0.0, %v2397
        %v2399 = vpop.f32.mrb[0].mxu0
        %2400 = vdwg.mxu0
        %s2401 = scalar_lea.vmem %s8, 8
        %v2402 = vld [vmem:[%s2401] sm:$0x1f]
        %v2404 = vsel %vm2323, %v2402, 0
        %2406 = vmatprep.subr.mxu0 0.0
        %2407 = vmatpush1.msra.mxu0 %v2320
        %2408 = vmatprep.subr.mxu0 0.0
        %2409 = vmatpush1.msra.mxu0 %v2329
        %2410 = vmatprep.subr.mxu0 0.0
        %2411 = vmatpush1.msra.mxu0 0.0
        %2412 = vmatprep.subr.mxu0 0.0
        %2413 = vmatpush1.msra.mxu0 0.0
        %2414 = vmatprep.subr.mxu0 0.0
        %2415 = vmatpush1.msra.mxu0 0.0
        %2416 = vmatprep.subr.mxu0 0.0
        %2417 = vmatpush1.msra.mxu0 0.0
        %2418 = vmatprep.subr.mxu0 0.0
        %2419 = vmatpush1.msra.mxu0 0.0
        %2420 = vmatprep.subr.mxu0 0.0
        %2421 = vmatpush1.msra.mxu0 0.0
        %2422 = vmatprep.subr.mxu0 0.0
        %2423 = vmatpush1.msra.mxu0 0.0
        %2424 = vmatprep.subr.mxu0 0.0
        %2425 = vmatpush1.msra.mxu0 0.0
        %2426 = vmatprep.subr.mxu0 0.0
        %2427 = vmatpush1.msra.mxu0 0.0
        %2428 = vmatprep.subr.mxu0 0.0
        %2429 = vmatpush1.msra.mxu0 0.0
        %2430 = vmatprep.subr.mxu0 0.0
        %2431 = vmatpush1.msra.mxu0 0.0
        %2432 = vmatprep.subr.mxu0 0.0
        %2433 = vmatpush1.msra.mxu0 0.0
        %2434 = vmatprep.subr.mxu0 0.0
        %2435 = vmatpush1.msra.mxu0 0.0
        %2436 = vmatprep.subr.mxu0 0.0
        %2437 = vmatpush1.msra.mxu0 0.0
        %2438 = vmatprep.subr.mxu0 0.0
        %2439 = vmatpush1.msra.mxu0 0.0
        %2440 = vmatprep.subr.mxu0 0.0
        %2441 = vmatpush1.msra.mxu0 0.0
        %2442 = vmatprep.subr.mxu0 0.0
        %2443 = vmatpush1.msra.mxu0 0.0
        %2444 = vmatprep.subr.mxu0 0.0
        %2445 = vmatpush1.msra.mxu0 0.0
        %2446 = vmatprep.subr.mxu0 0.0
        %2447 = vmatpush1.msra.mxu0 0.0
        %2448 = vmatprep.subr.mxu0 0.0
        %2449 = vmatpush1.msra.mxu0 0.0
        %2450 = vmatprep.subr.mxu0 0.0
        %2451 = vmatpush1.msra.mxu0 0.0
        %2452 = vmatprep.subr.mxu0 0.0
        %2453 = vmatpush1.msra.mxu0 0.0
        %2454 = vmatprep.subr.mxu0 0.0
        %2455 = vmatpush1.msra.mxu0 0.0
        %2456 = vmatprep.subr.mxu0 0.0
        %2457 = vmatpush1.msra.mxu0 0.0
        %2458 = vmatprep.subr.mxu0 0.0
        %2459 = vmatpush1.msra.mxu0 0.0
        %2460 = vmatprep.subr.mxu0 0.0
        %2461 = vmatpush1.msra.mxu0 0.0
        %2462 = vmatprep.subr.mxu0 0.0
        %2463 = vmatpush1.msra.mxu0 0.0
        %2464 = vmatprep.subr.mxu0 0.0
        %2465 = vmatpush1.msra.mxu0 0.0
        %2466 = vmatprep.subr.mxu0 0.0
        %2467 = vmatpush1.msra.mxu0 0.0
        %2468 = vmatprep.subr.mxu0 0.0
        %2469 = vmatpush1.msra.mxu0 0.0
        %2470 = vmatprep.mubr.f32.mxu0 0.0
        %2471 = vmatmul.mubr.f32.gmra.mrb[0].mxu0 %v2404
        %v2472 = vpop.f32.mrb[0].mxu0
        %v2473 = vadd.f32 0.0, %v2472
        %v2474 = vpop.f32.mrb[0].mxu0
        %2475 = vdwg.mxu0
        %v2476 = vmax.f32 %v2398, %v2473
        %vm2477 = vcmask 651264
        %2478 = vst.msk [vmem:[#allocation3] sm:$0x1f] %vm2477, %v2476
        %v2479 = vld [vmem:[%s10] sm:$0x1]
        %v2480 = vld [vmem:[#allocation3] sm:$0x1]
        %v2481 = vld [vmem:[%s9] sm:$0xff]
        %v2482 = vld [vmem:[%s9 + $0x8] sm:$0xff]
        %v2483 = vld [vmem:[%s9 + $0x10] sm:$0xff]
        %v2484 = vld [vmem:[%s9 + $0x18] sm:$0xff]
        %v2485 = vld [vmem:[%s9 + $0x20] sm:$0xff]
        %v2486 = vld [vmem:[%s9 + $0x28] sm:$0xff]
        %v2487 = vld [vmem:[%s9 + $0x30] sm:$0xff]
        %v2488 = vld [vmem:[%s9 + $0x38] sm:$0xff]
        %v2489 = vld [vmem:[%s9 + $0x40] sm:$0xff]
        %v2490 = vld [vmem:[%s9 + $0x48] sm:$0xff]
        %vm2491 = vcmask 654336
        %v2493 = vsel %vm2491, %v2480, 0
        %2495 = vmatprep.subr.mxu0 0.0
        %2496 = vmatpush1.msra.mxu0 %v2481
        %2497 = vmatprep.subr.mxu0 0.0
        %2498 = vmatpush1.msra.mxu0 %v2482
        %2499 = vmatprep.subr.mxu0 0.0
        %2500 = vmatpush1.msra.mxu0 %v2483
        %2501 = vmatprep.subr.mxu0 0.0
        %2502 = vmatpush1.msra.mxu0 %v2484
        %2503 = vmatprep.subr.mxu0 0.0
        %2504 = vmatpush1.msra.mxu0 %v2485
        %2505 = vmatprep.subr.mxu0 0.0
        %2506 = vmatpush1.msra.mxu0 %v2486
        %2507 = vmatprep.subr.mxu0 0.0
        %2508 = vmatpush1.msra.mxu0 %v2487
        %2509 = vmatprep.subr.mxu0 0.0
        %2510 = vmatpush1.msra.mxu0 %v2488
        %2511 = vmatprep.subr.mxu0 0.0
        %2512 = vmatpush1.msra.mxu0 %v2489
        %2513 = vmatprep.subr.mxu0 0.0
        %2514 = vmatpush1.msra.mxu0 %v2490
        %2515 = vmatprep.subr.mxu0 0.0
        %2516 = vmatpush1.msra.mxu0 0.0
        %2517 = vmatprep.subr.mxu0 0.0
        %2518 = vmatpush1.msra.mxu0 0.0
        %2519 = vmatprep.subr.mxu0 0.0
        %2520 = vmatpush1.msra.mxu0 0.0
        %2521 = vmatprep.subr.mxu0 0.0
        %2522 = vmatpush1.msra.mxu0 0.0
        %2523 = vmatprep.subr.mxu0 0.0
        %2524 = vmatpush1.msra.mxu0 0.0
        %2525 = vmatprep.subr.mxu0 0.0
        %2526 = vmatpush1.msra.mxu0 0.0
        %2527 = vmatprep.subr.mxu0 0.0
        %2528 = vmatpush1.msra.mxu0 0.0
        %2529 = vmatprep.subr.mxu0 0.0
        %2530 = vmatpush1.msra.mxu0 0.0
        %2531 = vmatprep.subr.mxu0 0.0
        %2532 = vmatpush1.msra.mxu0 0.0
        %2533 = vmatprep.subr.mxu0 0.0
        %2534 = vmatpush1.msra.mxu0 0.0
        %2535 = vmatprep.subr.mxu0 0.0
        %2536 = vmatpush1.msra.mxu0 0.0
        %2537 = vmatprep.subr.mxu0 0.0
        %2538 = vmatpush1.msra.mxu0 0.0
        %2539 = vmatprep.subr.mxu0 0.0
        %2540 = vmatpush1.msra.mxu0 0.0
        %2541 = vmatprep.subr.mxu0 0.0
        %2542 = vmatpush1.msra.mxu0 0.0
        %2543 = vmatprep.subr.mxu0 0.0
        %2544 = vmatpush1.msra.mxu0 0.0
        %2545 = vmatprep.subr.mxu0 0.0
        %2546 = vmatpush1.msra.mxu0 0.0
        %2547 = vmatprep.subr.mxu0 0.0
        %2548 = vmatpush1.msra.mxu0 0.0
        %2549 = vmatprep.subr.mxu0 0.0
        %2550 = vmatpush1.msra.mxu0 0.0
        %2551 = vmatprep.subr.mxu0 0.0
        %2552 = vmatpush1.msra.mxu0 0.0
        %2553 = vmatprep.subr.mxu0 0.0
        %2554 = vmatpush1.msra.mxu0 0.0
        %2555 = vmatprep.subr.mxu0 0.0
        %2556 = vmatpush1.msra.mxu0 0.0
        %2557 = vmatprep.subr.mxu0 0.0
        %2558 = vmatpush1.msra.mxu0 0.0
        %2559 = vmatprep.mubr.f32.mxu0 0.0
        %2560 = vmatmul.mubr.f32.gmra.mrb[0].mxu0 %v2493
        %v2561 = vpop.f32.mrb[0].mxu0
        %v2562 = vadd.f32 0.0, %v2561
        %v2563 = vpop.f32.mrb[0].mxu0
        %2564 = vdwg.mxu0
        %v2565 = vadd.f32 %v2479, %v2562
        %v2566 = vld [vmem:[#allocation3 + $0x1] sm:$0x1]
        %s2567 = scalar_lea.vmem %s9, 80
        %v2568 = vld [vmem:[%s2567] sm:$0xff]
        %v2569 = vld [vmem:[%s2567 + $0x8] sm:$0xff]
        %v2570 = vld [vmem:[%s2567 + $0x10] sm:$0xff]
        %v2571 = vld [vmem:[%s2567 + $0x18] sm:$0xff]
        %v2572 = vld [vmem:[%s2567 + $0x20] sm:$0xff]
        %v2573 = vld [vmem:[%s2567 + $0x28] sm:$0xff]
        %v2574 = vld [vmem:[%s2567 + $0x30] sm:$0xff]
        %v2575 = vld [vmem:[%s2567 + $0x38] sm:$0xff]
        %v2576 = vld [vmem:[%s2567 + $0x40] sm:$0xff]
        %v2577 = vld [vmem:[%s2567 + $0x48] sm:$0xff]
        %v2579 = vsel %vm2491, %v2566, 0
        %2581 = vmatprep.subr.mxu0 0.0
        %2582 = vmatpush1.msra.mxu0 %v2568
        %2583 = vmatprep.subr.mxu0 0.0
        %2584 = vmatpush1.msra.mxu0 %v2569
        %2585 = vmatprep.subr.mxu0 0.0
        %2586 = vmatpush1.msra.mxu0 %v2570
        %2587 = vmatprep.subr.mxu0 0.0
        %2588 = vmatpush1.msra.mxu0 %v2571
        %2589 = vmatprep.subr.mxu0 0.0
        %2590 = vmatpush1.msra.mxu0 %v2572
        %2591 = vmatprep.subr.mxu0 0.0
        %2592 = vmatpush1.msra.mxu0 %v2573
        %2593 = vmatprep.subr.mxu0 0.0
        %2594 = vmatpush1.msra.mxu0 %v2574
        %2595 = vmatprep.subr.mxu0 0.0
        %2596 = vmatpush1.msra.mxu0 %v2575
        %2597 = vmatprep.subr.mxu0 0.0
        %2598 = vmatpush1.msra.mxu0 %v2576
        %2599 = vmatprep.subr.mxu0 0.0
        %2600 = vmatpush1.msra.mxu0 %v2577
        %2601 = vmatprep.subr.mxu0 0.0
        %2602 = vmatpush1.msra.mxu0 0.0
        %2603 = vmatprep.subr.mxu0 0.0
        %2604 = vmatpush1.msra.mxu0 0.0
        %2605 = vmatprep.subr.mxu0 0.0
        %2606 = vmatpush1.msra.mxu0 0.0
        %2607 = vmatprep.subr.mxu0 0.0
        %2608 = vmatpush1.msra.mxu0 0.0
        %2609 = vmatprep.subr.mxu0 0.0
        %2610 = vmatpush1.msra.mxu0 0.0
        %2611 = vmatprep.subr.mxu0 0.0
        %2612 = vmatpush1.msra.mxu0 0.0
        %2613 = vmatprep.subr.mxu0 0.0
        %2614 = vmatpush1.msra.mxu0 0.0
        %2615 = vmatprep.subr.mxu0 0.0
        %2616 = vmatpush1.msra.mxu0 0.0
        %2617 = vmatprep.subr.mxu0 0.0
        %2618 = vmatpush1.msra.mxu0 0.0
        %2619 = vmatprep.subr.mxu0 0.0
        %2620 = vmatpush1.msra.mxu0 0.0
        %2621 = vmatprep.subr.mxu0 0.0
        %2622 = vmatpush1.msra.mxu0 0.0
        %2623 = vmatprep.subr.mxu0 0.0
        %2624 = vmatpush1.msra.mxu0 0.0
        %2625 = vmatprep.subr.mxu0 0.0
        %2626 = vmatpush1.msra.mxu0 0.0
        %2627 = vmatprep.subr.mxu0 0.0
        %2628 = vmatpush1.msra.mxu0 0.0
        %2629 = vmatprep.subr.mxu0 0.0
        %2630 = vmatpush1.msra.mxu0 0.0
        %2631 = vmatprep.subr.mxu0 0.0
        %2632 = vmatpush1.msra.mxu0 0.0
        %2633 = vmatprep.subr.mxu0 0.0
        %2634 = vmatpush1.msra.mxu0 0.0
        %2635 = vmatprep.subr.mxu0 0.0
        %2636 = vmatpush1.msra.mxu0 0.0
        %2637 = vmatprep.subr.mxu0 0.0
        %2638 = vmatpush1.msra.mxu0 0.0
        %2639 = vmatprep.subr.mxu0 0.0
        %2640 = vmatpush1.msra.mxu0 0.0
        %2641 = vmatprep.subr.mxu0 0.0
        %2642 = vmatpush1.msra.mxu0 0.0
        %2643 = vmatprep.subr.mxu0 0.0
        %2644 = vmatpush1.msra.mxu0 0.0
        %2645 = vmatprep.mubr.f32.mxu0 0.0
        %2646 = vmatmul.mubr.f32.gmra.mrb[0].mxu0 %v2579
        %v2647 = vpop.f32.mrb[0].mxu0
        %v2648 = vadd.f32 0.0, %v2647
        %v2649 = vpop.f32.mrb[0].mxu0
        %2650 = vdwg.mxu0
        %v2651 = vadd.f32 %v2565, %v2648
        %v2652 = vld [vmem:[#allocation3 + $0x2] sm:$0x1]
        %s2653 = scalar_lea.vmem %s9, 160
        %v2654 = vld [vmem:[%s2653] sm:$0xff]
        %v2655 = vld [vmem:[%s2653 + $0x8] sm:$0xff]
        %v2656 = vld [vmem:[%s2653 + $0x10] sm:$0xff]
        %v2657 = vld [vmem:[%s2653 + $0x18] sm:$0xff]
        %v2658 = vld [vmem:[%s2653 + $0x20] sm:$0xff]
        %v2659 = vld [vmem:[%s2653 + $0x28] sm:$0xff]
        %v2660 = vld [vmem:[%s2653 + $0x30] sm:$0xff]
        %v2661 = vld [vmem:[%s2653 + $0x38] sm:$0xff]
        %v2662 = vld [vmem:[%s2653 + $0x40] sm:$0xff]
        %v2663 = vld [vmem:[%s2653 + $0x48] sm:$0xff]
        %v2665 = vsel %vm2491, %v2652, 0
        %2667 = vmatprep.subr.mxu0 0.0
        %2668 = vmatpush1.msra.mxu0 %v2654
        %2669 = vmatprep.subr.mxu0 0.0
        %2670 = vmatpush1.msra.mxu0 %v2655
        %2671 = vmatprep.subr.mxu0 0.0
        %2672 = vmatpush1.msra.mxu0 %v2656
        %2673 = vmatprep.subr.mxu0 0.0
        %2674 = vmatpush1.msra.mxu0 %v2657
        %2675 = vmatprep.subr.mxu0 0.0
        %2676 = vmatpush1.msra.mxu0 %v2658
        %2677 = vmatprep.subr.mxu0 0.0
        %2678 = vmatpush1.msra.mxu0 %v2659
        %2679 = vmatprep.subr.mxu0 0.0
        %2680 = vmatpush1.msra.mxu0 %v2660
        %2681 = vmatprep.subr.mxu0 0.0
        %2682 = vmatpush1.msra.mxu0 %v2661
        %2683 = vmatprep.subr.mxu0 0.0
        %2684 = vmatpush1.msra.mxu0 %v2662
        %2685 = vmatprep.subr.mxu0 0.0
        %2686 = vmatpush1.msra.mxu0 %v2663
        %2687 = vmatprep.subr.mxu0 0.0
        %2688 = vmatpush1.msra.mxu0 0.0
        %2689 = vmatprep.subr.mxu0 0.0
        %2690 = vmatpush1.msra.mxu0 0.0
        %2691 = vmatprep.subr.mxu0 0.0
        %2692 = vmatpush1.msra.mxu0 0.0
        %2693 = vmatprep.subr.mxu0 0.0
        %2694 = vmatpush1.msra.mxu0 0.0
        %2695 = vmatprep.subr.mxu0 0.0
        %2696 = vmatpush1.msra.mxu0 0.0
        %2697 = vmatprep.subr.mxu0 0.0
        %2698 = vmatpush1.msra.mxu0 0.0
        %2699 = vmatprep.subr.mxu0 0.0
        %2700 = vmatpush1.msra.mxu0 0.0
        %2701 = vmatprep.subr.mxu0 0.0
        %2702 = vmatpush1.msra.mxu0 0.0
        %2703 = vmatprep.subr.mxu0 0.0
        %2704 = vmatpush1.msra.mxu0 0.0
        %2705 = vmatprep.subr.mxu0 0.0
        %2706 = vmatpush1.msra.mxu0 0.0
        %2707 = vmatprep.subr.mxu0 0.0
        %2708 = vmatpush1.msra.mxu0 0.0
        %2709 = vmatprep.subr.mxu0 0.0
        %2710 = vmatpush1.msra.mxu0 0.0
        %2711 = vmatprep.subr.mxu0 0.0
        %2712 = vmatpush1.msra.mxu0 0.0
        %2713 = vmatprep.subr.mxu0 0.0
        %2714 = vmatpush1.msra.mxu0 0.0
        %2715 = vmatprep.subr.mxu0 0.0
        %2716 = vmatpush1.msra.mxu0 0.0
        %2717 = vmatprep.subr.mxu0 0.0
        %2718 = vmatpush1.msra.mxu0 0.0
        %2719 = vmatprep.subr.mxu0 0.0
        %2720 = vmatpush1.msra.mxu0 0.0
        %2721 = vmatprep.subr.mxu0 0.0
        %2722 = vmatpush1.msra.mxu0 0.0
        %2723 = vmatprep.subr.mxu0 0.0
        %2724 = vmatpush1.msra.mxu0 0.0
        %2725 = vmatprep.subr.mxu0 0.0
        %2726 = vmatpush1.msra.mxu0 0.0
        %2727 = vmatprep.subr.mxu0 0.0
        %2728 = vmatpush1.msra.mxu0 0.0
        %2729 = vmatprep.subr.mxu0 0.0
        %2730 = vmatpush1.msra.mxu0 0.0
        %2731 = vmatprep.mubr.f32.mxu0 0.0
        %2732 = vmatmul.mubr.f32.gmra.mrb[0].mxu0 %v2665
        %v2733 = vpop.f32.mrb[0].mxu0
        %v2734 = vadd.f32 0.0, %v2733
        %v2735 = vpop.f32.mrb[0].mxu0
        %2736 = vdwg.mxu0
        %v2737 = vadd.f32 %v2651, %v2734
        %v2738 = vld [vmem:[#allocation3 + $0x3] sm:$0x1]
        %s2739 = scalar_lea.vmem %s9, 240
        %v2740 = vld [vmem:[%s2739] sm:$0xff]
        %v2741 = vld [vmem:[%s2739 + $0x8] sm:$0xff]
        %v2742 = vld [vmem:[%s2739 + $0x10] sm:$0xff]
        %v2743 = vld [vmem:[%s2739 + $0x18] sm:$0xff]
        %v2744 = vld [vmem:[%s2739 + $0x20] sm:$0xff]
        %v2745 = vld [vmem:[%s2739 + $0x28] sm:$0xff]
        %v2746 = vld [vmem:[%s2739 + $0x30] sm:$0xff]
        %v2747 = vld [vmem:[%s2739 + $0x38] sm:$0xff]
        %v2748 = vld [vmem:[%s2739 + $0x40] sm:$0xff]
        %v2749 = vld [vmem:[%s2739 + $0x48] sm:$0xff]
        %v2751 = vsel %vm2491, %v2738, 0
        %2753 = vmatprep.subr.mxu0 0.0
        %2754 = vmatpush1.msra.mxu0 %v2740
        %2755 = vmatprep.subr.mxu0 0.0
        %2756 = vmatpush1.msra.mxu0 %v2741
        %2757 = vmatprep.subr.mxu0 0.0
        %2758 = vmatpush1.msra.mxu0 %v2742
        %2759 = vmatprep.subr.mxu0 0.0
        %2760 = vmatpush1.msra.mxu0 %v2743
        %2761 = vmatprep.subr.mxu0 0.0
        %2762 = vmatpush1.msra.mxu0 %v2744
        %2763 = vmatprep.subr.mxu0 0.0
        %2764 = vmatpush1.msra.mxu0 %v2745
        %2765 = vmatprep.subr.mxu0 0.0
        %2766 = vmatpush1.msra.mxu0 %v2746
        %2767 = vmatprep.subr.mxu0 0.0
        %2768 = vmatpush1.msra.mxu0 %v2747
        %2769 = vmatprep.subr.mxu0 0.0
        %2770 = vmatpush1.msra.mxu0 %v2748
        %2771 = vmatprep.subr.mxu0 0.0
        %2772 = vmatpush1.msra.mxu0 %v2749
        %2773 = vmatprep.subr.mxu0 0.0
        %2774 = vmatpush1.msra.mxu0 0.0
        %2775 = vmatprep.subr.mxu0 0.0
        %2776 = vmatpush1.msra.mxu0 0.0
        %2777 = vmatprep.subr.mxu0 0.0
        %2778 = vmatpush1.msra.mxu0 0.0
        %2779 = vmatprep.subr.mxu0 0.0
        %2780 = vmatpush1.msra.mxu0 0.0
        %2781 = vmatprep.subr.mxu0 0.0
        %2782 = vmatpush1.msra.mxu0 0.0
        %2783 = vmatprep.subr.mxu0 0.0
        %2784 = vmatpush1.msra.mxu0 0.0
        %2785 = vmatprep.subr.mxu0 0.0
        %2786 = vmatpush1.msra.mxu0 0.0
        %2787 = vmatprep.subr.mxu0 0.0
        %2788 = vmatpush1.msra.mxu0 0.0
        %2789 = vmatprep.subr.mxu0 0.0
        %2790 = vmatpush1.msra.mxu0 0.0
        %2791 = vmatprep.subr.mxu0 0.0
        %2792 = vmatpush1.msra.mxu0 0.0
        %2793 = vmatprep.subr.mxu0 0.0
        %2794 = vmatpush1.msra.mxu0 0.0
        %2795 = vmatprep.subr.mxu0 0.0
        %2796 = vmatpush1.msra.mxu0 0.0
        %2797 = vmatprep.subr.mxu0 0.0
        %2798 = vmatpush1.msra.mxu0 0.0
        %2799 = vmatprep.subr.mxu0 0.0
        %2800 = vmatpush1.msra.mxu0 0.0
        %2801 = vmatprep.subr.mxu0 0.0
        %2802 = vmatpush1.msra.mxu0 0.0
        %2803 = vmatprep.subr.mxu0 0.0
        %2804 = vmatpush1.msra.mxu0 0.0
        %2805 = vmatprep.subr.mxu0 0.0
        %2806 = vmatpush1.msra.mxu0 0.0
        %2807 = vmatprep.subr.mxu0 0.0
        %2808 = vmatpush1.msra.mxu0 0.0
        %2809 = vmatprep.subr.mxu0 0.0
        %2810 = vmatpush1.msra.mxu0 0.0
        %2811 = vmatprep.subr.mxu0 0.0
        %2812 = vmatpush1.msra.mxu0 0.0
        %2813 = vmatprep.subr.mxu0 0.0
        %2814 = vmatpush1.msra.mxu0 0.0
        %2815 = vmatprep.subr.mxu0 0.0
        %2816 = vmatpush1.msra.mxu0 0.0
        %2817 = vmatprep.mubr.f32.mxu0 0.0
        %2818 = vmatmul.mubr.f32.gmra.mrb[0].mxu0 %v2751
        %v2819 = vpop.f32.mrb[0].mxu0
        %v2820 = vadd.f32 0.0, %v2819
        %v2821 = vpop.f32.mrb[0].mxu0
        %2822 = vdwg.mxu0
        %v2823 = vadd.f32 %v2737, %v2820
        %v2824 = vld [vmem:[#allocation3 + $0x4] sm:$0x1]
        %s2825 = scalar_lea.vmem %s9, 320
        %v2826 = vld [vmem:[%s2825] sm:$0xff]
        %v2827 = vld [vmem:[%s2825 + $0x8] sm:$0xff]
        %v2828 = vld [vmem:[%s2825 + $0x10] sm:$0xff]
        %v2829 = vld [vmem:[%s2825 + $0x18] sm:$0xff]
        %v2830 = vld [vmem:[%s2825 + $0x20] sm:$0xff]
        %v2831 = vld [vmem:[%s2825 + $0x28] sm:$0xff]
        %v2832 = vld [vmem:[%s2825 + $0x30] sm:$0xff]
        %v2833 = vld [vmem:[%s2825 + $0x38] sm:$0xff]
        %v2834 = vld [vmem:[%s2825 + $0x40] sm:$0xff]
        %v2835 = vld [vmem:[%s2825 + $0x48] sm:$0xff]
        %v2837 = vsel %vm2491, %v2824, 0
        %2839 = vmatprep.subr.mxu0 0.0
        %2840 = vmatpush1.msra.mxu0 %v2826
        %2841 = vmatprep.subr.mxu0 0.0
        %2842 = vmatpush1.msra.mxu0 %v2827
        %2843 = vmatprep.subr.mxu0 0.0
        %2844 = vmatpush1.msra.mxu0 %v2828
        %2845 = vmatprep.subr.mxu0 0.0
        %2846 = vmatpush1.msra.mxu0 %v2829
        %2847 = vmatprep.subr.mxu0 0.0
        %2848 = vmatpush1.msra.mxu0 %v2830
        %2849 = vmatprep.subr.mxu0 0.0
        %2850 = vmatpush1.msra.mxu0 %v2831
        %2851 = vmatprep.subr.mxu0 0.0
        %2852 = vmatpush1.msra.mxu0 %v2832
        %2853 = vmatprep.subr.mxu0 0.0
        %2854 = vmatpush1.msra.mxu0 %v2833
        %2855 = vmatprep.subr.mxu0 0.0
        %2856 = vmatpush1.msra.mxu0 %v2834
        %2857 = vmatprep.subr.mxu0 0.0
        %2858 = vmatpush1.msra.mxu0 %v2835
        %2859 = vmatprep.subr.mxu0 0.0
        %2860 = vmatpush1.msra.mxu0 0.0
        %2861 = vmatprep.subr.mxu0 0.0
        %2862 = vmatpush1.msra.mxu0 0.0
        %2863 = vmatprep.subr.mxu0 0.0
        %2864 = vmatpush1.msra.mxu0 0.0
        %2865 = vmatprep.subr.mxu0 0.0
        %2866 = vmatpush1.msra.mxu0 0.0
        %2867 = vmatprep.subr.mxu0 0.0
        %2868 = vmatpush1.msra.mxu0 0.0
        %2869 = vmatprep.subr.mxu0 0.0
        %2870 = vmatpush1.msra.mxu0 0.0
        %2871 = vmatprep.subr.mxu0 0.0
        %2872 = vmatpush1.msra.mxu0 0.0
        %2873 = vmatprep.subr.mxu0 0.0
        %2874 = vmatpush1.msra.mxu0 0.0
        %2875 = vmatprep.subr.mxu0 0.0
        %2876 = vmatpush1.msra.mxu0 0.0
        %2877 = vmatprep.subr.mxu0 0.0
        %2878 = vmatpush1.msra.mxu0 0.0
        %2879 = vmatprep.subr.mxu0 0.0
        %2880 = vmatpush1.msra.mxu0 0.0
        %2881 = vmatprep.subr.mxu0 0.0
        %2882 = vmatpush1.msra.mxu0 0.0
        %2883 = vmatprep.subr.mxu0 0.0
        %2884 = vmatpush1.msra.mxu0 0.0
        %2885 = vmatprep.subr.mxu0 0.0
        %2886 = vmatpush1.msra.mxu0 0.0
        %2887 = vmatprep.subr.mxu0 0.0
        %2888 = vmatpush1.msra.mxu0 0.0
        %2889 = vmatprep.subr.mxu0 0.0
        %2890 = vmatpush1.msra.mxu0 0.0
        %2891 = vmatprep.subr.mxu0 0.0
        %2892 = vmatpush1.msra.mxu0 0.0
        %2893 = vmatprep.subr.mxu0 0.0
        %2894 = vmatpush1.msra.mxu0 0.0
        %2895 = vmatprep.subr.mxu0 0.0
        %2896 = vmatpush1.msra.mxu0 0.0
        %2897 = vmatprep.subr.mxu0 0.0
        %2898 = vmatpush1.msra.mxu0 0.0
        %2899 = vmatprep.subr.mxu0 0.0
        %2900 = vmatpush1.msra.mxu0 0.0
        %2901 = vmatprep.subr.mxu0 0.0
        %2902 = vmatpush1.msra.mxu0 0.0
        %2903 = vmatprep.mubr.f32.mxu0 0.0
        %2904 = vmatmul.mubr.f32.gmra.mrb[0].mxu0 %v2837
        %v2905 = vpop.f32.mrb[0].mxu0
        %v2906 = vadd.f32 0.0, %v2905
        %v2907 = vpop.f32.mrb[0].mxu0
        %2908 = vdwg.mxu0
        %v2909 = vadd.f32 %v2823, %v2906
        %v2910 = vmax.f32 %v2909, 0.0
        %v2911 = vld [vmem:[%s11] sm:$0xff]
        %v2912 = vld [vmem:[%s11 + $0x8] sm:$0xff]
        %v2913 = vld [vmem:[%s11 + $0x10] sm:$0xff]
        %v2914 = vld [vmem:[%s11 + $0x18] sm:$0xff]
        %v2915 = vld [vmem:[%s11 + $0x20] sm:$0xff]
        %v2916 = vld [vmem:[%s11 + $0x28] sm:$0xff]
        %v2917 = vld [vmem:[%s11 + $0x30] sm:$0xff]
        %v2918 = vld [vmem:[%s11 + $0x38] sm:$0xff]
        %v2919 = vld [vmem:[%s11 + $0x40] sm:$0xff]
        %v2920 = vld [vmem:[%s11 + $0x48] sm:$0xff]
        %v2921 = vld [vmem:[%s11 + $0x50] sm:$0xff]
        %v2922 = vld [vmem:[%s11 + $0x58] sm:$0xff]
        %v2923 = vld [vmem:[%s11 + $0x60] sm:$0xff]
        %v2924 = vld [vmem:[%s11 + $0x68] sm:$0xff]
        %v2925 = vld [vmem:[%s11 + $0x70] sm:$0xff]
        %v2926 = vld [vmem:[%s12] sm:$0x1]
        %vm2927 = vcmask 982016
        %v2929 = vsel %vm2927, %v2910, 0
        %2931 = vmatprep.subr.mxu0 0.0
        %2932 = vmatpush1.msra.mxu0 %v2911
        %2933 = vmatprep.subr.mxu0 0.0
        %2934 = vmatpush1.msra.mxu0 %v2912
        %2935 = vmatprep.subr.mxu0 0.0
        %2936 = vmatpush1.msra.mxu0 %v2913
        %2937 = vmatprep.subr.mxu0 0.0
        %2938 = vmatpush1.msra.mxu0 %v2914
        %2939 = vmatprep.subr.mxu0 0.0
        %2940 = vmatpush1.msra.mxu0 %v2915
        %2941 = vmatprep.subr.mxu0 0.0
        %2942 = vmatpush1.msra.mxu0 %v2916
        %2943 = vmatprep.subr.mxu0 0.0
        %2944 = vmatpush1.msra.mxu0 %v2917
        %2945 = vmatprep.subr.mxu0 0.0
        %2946 = vmatpush1.msra.mxu0 %v2918
        %2947 = vmatprep.subr.mxu0 0.0
        %2948 = vmatpush1.msra.mxu0 %v2919
        %2949 = vmatprep.subr.mxu0 0.0
        %2950 = vmatpush1.msra.mxu0 %v2920
        %2951 = vmatprep.subr.mxu0 0.0
        %2952 = vmatpush1.msra.mxu0 %v2921
        %2953 = vmatprep.subr.mxu0 0.0
        %2954 = vmatpush1.msra.mxu0 %v2922
        %2955 = vmatprep.subr.mxu0 0.0
        %2956 = vmatpush1.msra.mxu0 %v2923
        %2957 = vmatprep.subr.mxu0 0.0
        %2958 = vmatpush1.msra.mxu0 %v2924
        %2959 = vmatprep.subr.mxu0 0.0
        %2960 = vmatpush1.msra.mxu0 %v2925
        %2961 = vmatprep.subr.mxu0 0.0
        %2962 = vmatpush1.msra.mxu0 0.0
        %2963 = vmatprep.subr.mxu0 0.0
        %2964 = vmatpush1.msra.mxu0 0.0
        %2965 = vmatprep.subr.mxu0 0.0
        %2966 = vmatpush1.msra.mxu0 0.0
        %2967 = vmatprep.subr.mxu0 0.0
        %2968 = vmatpush1.msra.mxu0 0.0
        %2969 = vmatprep.subr.mxu0 0.0
        %2970 = vmatpush1.msra.mxu0 0.0
        %2971 = vmatprep.subr.mxu0 0.0
        %2972 = vmatpush1.msra.mxu0 0.0
        %2973 = vmatprep.subr.mxu0 0.0
        %2974 = vmatpush1.msra.mxu0 0.0
        %2975 = vmatprep.subr.mxu0 0.0
        %2976 = vmatpush1.msra.mxu0 0.0
        %2977 = vmatprep.subr.mxu0 0.0
        %2978 = vmatpush1.msra.mxu0 0.0
        %2979 = vmatprep.subr.mxu0 0.0
        %2980 = vmatpush1.msra.mxu0 0.0
        %2981 = vmatprep.subr.mxu0 0.0
        %2982 = vmatpush1.msra.mxu0 0.0
        %2983 = vmatprep.subr.mxu0 0.0
        %2984 = vmatpush1.msra.mxu0 0.0
        %2985 = vmatprep.subr.mxu0 0.0
        %2986 = vmatpush1.msra.mxu0 0.0
        %2987 = vmatprep.subr.mxu0 0.0
        %2988 = vmatpush1.msra.mxu0 0.0
        %2989 = vmatprep.subr.mxu0 0.0
        %2990 = vmatpush1.msra.mxu0 0.0
        %2991 = vmatprep.subr.mxu0 0.0
        %2992 = vmatpush1.msra.mxu0 0.0
        %2993 = vmatprep.subr.mxu0 0.0
        %2994 = vmatpush1.msra.mxu0 0.0
        %2995 = vmatprep.mubr.f32.mxu0 0.0
        %2996 = vmatmul.mubr.f32.gmra.mrb[0].mxu0 %v2929
        %v2997 = vpop.f32.mrb[0].mxu0
        %v2998 = vadd.f32 %v2926, %v2997
        %v2999 = vpop.f32.mrb[0].mxu0
        %3000 = vdwg.mxu0
        %v3001 = vmax.f32 %v2998, 0.0
        %v3002 = vld [vmem:[%s13] sm:$0xff]
        %v3003 = vld [vmem:[%s13 + $0x8] sm:$0xff]
        %v3004 = vld [vmem:[%s13 + $0x10] sm:$0xff]
        %v3005 = vld [vmem:[%s13 + $0x18] sm:$0xff]
        %v3006 = vld [vmem:[%s13 + $0x20] sm:$0xff]
        %v3007 = vld [vmem:[%s13 + $0x28] sm:$0xff]
        %v3008 = vld [vmem:[%s13 + $0x30] sm:$0xff]
        %v3009 = vld [vmem:[%s13 + $0x38] sm:$0xff]
        %v3010 = vld [vmem:[%s13 + $0x40] sm:$0xff]
        %v3011 = vld [vmem:[%s13 + $0x48] sm:$0xff]
        %v3012 = vld [vmem:[%s13 + $0x50] sm:$0xf]
        %v3013 = vld [vmem:[%s14] sm:$0x1]
        %v3015 = vsel %vm1518, %v3001, 0
        %v3018 = vsel %vm1353, %v3012, 0
        %3020 = vmatprep.subr.mxu0 0.0
        %3021 = vmatpush1.msra.mxu0 %v3002
        %3022 = vmatprep.subr.mxu0 0.0
        %3023 = vmatpush1.msra.mxu0 %v3003
        %3024 = vmatprep.subr.mxu0 0.0
        %3025 = vmatpush1.msra.mxu0 %v3004
        %3026 = vmatprep.subr.mxu0 0.0
        %3027 = vmatpush1.msra.mxu0 %v3005
        %3028 = vmatprep.subr.mxu0 0.0
        %3029 = vmatpush1.msra.mxu0 %v3006
        %3030 = vmatprep.subr.mxu0 0.0
        %3031 = vmatpush1.msra.mxu0 %v3007
        %3032 = vmatprep.subr.mxu0 0.0
        %3033 = vmatpush1.msra.mxu0 %v3008
        %3034 = vmatprep.subr.mxu0 0.0
        %3035 = vmatpush1.msra.mxu0 %v3009
        %3036 = vmatprep.subr.mxu0 0.0
        %3037 = vmatpush1.msra.mxu0 %v3010
        %3038 = vmatprep.subr.mxu0 0.0
        %3039 = vmatpush1.msra.mxu0 %v3011
        %3040 = vmatprep.subr.mxu0 0.0
        %3041 = vmatpush1.msra.mxu0 %v3018
        %3042 = vmatprep.subr.mxu0 0.0
        %3043 = vmatpush1.msra.mxu0 0.0
        %3044 = vmatprep.subr.mxu0 0.0
        %3045 = vmatpush1.msra.mxu0 0.0
        %3046 = vmatprep.subr.mxu0 0.0
        %3047 = vmatpush1.msra.mxu0 0.0
        %3048 = vmatprep.subr.mxu0 0.0
        %3049 = vmatpush1.msra.mxu0 0.0
        %3050 = vmatprep.subr.mxu0 0.0
        %3051 = vmatpush1.msra.mxu0 0.0
        %3052 = vmatprep.subr.mxu0 0.0
        %3053 = vmatpush1.msra.mxu0 0.0
        %3054 = vmatprep.subr.mxu0 0.0
        %3055 = vmatpush1.msra.mxu0 0.0
        %3056 = vmatprep.subr.mxu0 0.0
        %3057 = vmatpush1.msra.mxu0 0.0
        %3058 = vmatprep.subr.mxu0 0.0
        %3059 = vmatpush1.msra.mxu0 0.0
        %3060 = vmatprep.subr.mxu0 0.0
        %3061 = vmatpush1.msra.mxu0 0.0
        %3062 = vmatprep.subr.mxu0 0.0
        %3063 = vmatpush1.msra.mxu0 0.0
        %3064 = vmatprep.subr.mxu0 0.0
        %3065 = vmatpush1.msra.mxu0 0.0
        %3066 = vmatprep.subr.mxu0 0.0
        %3067 = vmatpush1.msra.mxu0 0.0
        %3068 = vmatprep.subr.mxu0 0.0
        %3069 = vmatpush1.msra.mxu0 0.0
        %3070 = vmatprep.subr.mxu0 0.0
        %3071 = vmatpush1.msra.mxu0 0.0
        %3072 = vmatprep.subr.mxu0 0.0
        %3073 = vmatpush1.msra.mxu0 0.0
        %3074 = vmatprep.subr.mxu0 0.0
        %3075 = vmatpush1.msra.mxu0 0.0
        %3076 = vmatprep.subr.mxu0 0.0
        %3077 = vmatpush1.msra.mxu0 0.0
        %3078 = vmatprep.subr.mxu0 0.0
        %3079 = vmatpush1.msra.mxu0 0.0
        %3080 = vmatprep.subr.mxu0 0.0
        %3081 = vmatpush1.msra.mxu0 0.0
        %3082 = vmatprep.subr.mxu0 0.0
        %3083 = vmatpush1.msra.mxu0 0.0
        %3084 = vmatprep.mubr.f32.mxu0 0.0
        %3085 = vmatmul.mubr.f32.gmra.mrb[0].mxu0 %v3015
        %v3086 = vpop.f32.mrb[0].mxu0
        %v3087 = vadd.f32 %v3013, %v3086
        %v3088 = vpop.f32.mrb[0].mxu0
        %3089 = vdwg.mxu0
        %vm3090 = vcmask 73728
        %3091 = vst.msk [vmem:[%s486] sm:$0x1] %vm3090, %v3087
        %s3092 = sand.u32 %s357, 1
        %s3093 = scalar_lea.sflag [#allocation5], %s3092
        %s3094 = sand.u32 %s357, 1
        %s3095 = scalar_lea.vmem [#allocation4], %s3094
        // Predicated region
        $region81: #{lenet_forward.1} parent=79 // pred_check
          %p3096 = pneg %p367
        $region82: #{lenet_forward.1} parent=79 // pred_check_branch
          %3098 = sbr.rel (%p3096) target = $region84
        $region83: #{lenet_forward.1} parent=79 // pred_region
          %s3100 = ssub.s32 16, 16
          %3101 = vsyncadd %s3093, %s3100
          %s3102 = smul.addr %s29, 16
          %s3103 = scalar_lea.hbm %s15, %s3102
          %s3105 = sshll.u32 %s3095, 4
          %s3106 = int_to_ptr.vmem [resolvable:$true] %s3105
          %3108 = dma.vmem_to_hbm [thread:$0]  %s3106, 16, %s3103, %s3093
        $region84: #{lenet_forward.1} parent=79 // pred_fallthru
          _
      $region80: #{lenet_forward.1} parent=5 // pred_fallthru
        _
      %p3109 = scmp.le.s32.totalorder 2, %s24
      // Predicated region
      $region85: #{lenet_forward.1} parent=5 // pred_check
        %p3110 = pneg %p3109
      $region86: #{lenet_forward.1} parent=5 // pred_check_branch
        %3112 = sbr.rel (%p3110) target = $region88
      $region87: #{lenet_forward.1} parent=5 // pred_region
        %s3113 = ssub.s32 %s24, 2
        // Predicated region
        $region89: #{lenet_forward.1} parent=87 // pred_check
          %p3114 = pneg %p373
        $region90: #{lenet_forward.1} parent=87 // pred_check_branch
          %3116 = sbr.rel (%p3114) target = $region92
        $region91: #{lenet_forward.1} parent=87 // pred_region
          %s3117 = sand.u32 %s358, 1
          %s3118 = scalar_lea.sflag [#allocation5], %s3117
          %s3119 = sand.u32 %s358, 1
          %s3120 = scalar_lea.vmem [#allocation4], %s3119
          %3121 = dma.done %s3118, 16
        $region92: #{lenet_forward.1} parent=87 // pred_fallthru
          _
      $region88: #{lenet_forward.1} parent=5 // pred_fallthru
        _
    $region6: #{lenet_forward.1} parent=1 // loop_footer
      %s28 = sadd.s32 1, %s24
    $region7: #{lenet_forward.1} parent=1 // loop_footer_branch
      %23 = sbr.rel target = $region3
    $region8: #{lenet_forward.1} parent=1 // loop_exit
      _
    %3122 = vsyncpa [#allocation5], 1
    %s3123 = scalar_lea.sflag [#allocation5], 1
    %3124 = vsyncpa %s3123, 1

</llo_original>
